<compile_context>
chip_gen: v7x
topology: tpu7x:2x2x1
jax: 0.10.0
libtpu: 0.0.40
codegen_flags: <defaults>
</compile_context>

<pallas_src>
import functools

import jax
import jax.numpy as jnp
from jax.experimental import pallas as pl
from jax.experimental.pallas import tpu as pltpu

LANE = 128
SUBLANE = 8


def _round_up(x, m):
    return ((x + m - 1) // m) * m


# ---------------------------------------------------------------------------
# Fused Pallas kernel: all DCGRU layers in one invocation, everything in VMEM.
# ---------------------------------------------------------------------------
def _dcgru_stack_kernel(x_ref, h_ref, supT_ref, *rest, gcn_order):
    """Fused DCGRU encoder stack.

    x_ref    : (B, Cin0_pad, Np)  f32   layer-0 input features (channel & lane padded)
    h_ref    : (L, B, H, Np)      f32   previous hidden state per layer
    supT_ref : (S, Np, Np)        bf16  transposed supports (supT[s] = support[s].T)
    rest     : per layer l: W_A_l (3H, M*C_l) bf16, b_A_l (3H, 1) f32,
               W_Ch_l (H, M*H) bf16;  then out_ref (L, B, H, Np) f32.
    """
    num_layers = (len(rest) - 1) // 3
    layer_refs = rest[:3 * num_layers]
    out_ref = rest[-1]

    f32 = jnp.float32
    bf16 = jnp.bfloat16

    B = x_ref.shape[0]
    Np = x_ref.shape[-1]
    H = h_ref.shape[2]
    S = supT_ref.shape[0]
    M = gcn_order * S + 1

    # Load the (transposed, bf16) supports once; reused by every diffusion below.
    supports = [supT_ref[s] for s in range(S)]

    def mm(a, b):  # bf16 MXU operands, f32 accumulation
        return jnp.dot(a.astype(bf16), b.astype(bf16), preferred_element_type=f32)

    def diffusion(z):
        """Chebyshev diffusion along the node (lane) axis, whole batch at once.

        z: (R, Np) f32 with batch folded into the row/sublane axis.  x0 is carried
        across supports to match the canonical PyTorch/TF DCRNN ports.
        Returns M arrays of shape (R, Np).
        """
        xs = [z]
        x0 = z
        for s in range(S):
            supT = supports[s]
            x1 = mm(x0, supT)
            xs.append(x1)
            for _ in range(2, gcn_order + 1):
                x2 = 2.0 * mm(x1, supT) - x0
                xs.append(x2)
                x1, x0 = x2, x1
        return xs

    x_cur = x_ref[...].astype(f32)                          # (B, Cin_l, Np)
    for l in range(num_layers):
        wA_ref, bA_ref, wCh_ref = layer_refs[3 * l:3 * l + 3]
        C = wA_ref.shape[1] // M                            # padded Cin_l + H
        h_prev = h_ref[l].astype(f32)                       # (B, H, Np)

        # concat([x, h]) with batch folded into rows: row index = b*C + c.
        z = jnp.concatenate(
            [jnp.concatenate([x_cur[b], h_prev[b]], axis=0) for b in range(B)],
            axis=0)                                         # (B*C, Np)
        xs = diffusion(z)                                   # M x (B*C, Np)

        wA = wA_ref[...]                                    # (3H, M*C) bf16
        bA = bA_ref[...].astype(f32)                        # (3H, 1)
        wCh = wCh_ref[...]                                  # (H, M*H) bf16

        # Fused projection: rows [0,2H) -> r/u gates, rows [2H,3H) -> candidate x-part.
        r_parts, u_parts, cx_parts = [], [], []
        for b in range(B):
            slab = jnp.concatenate(
                [xs[m][b * C:(b + 1) * C, :] for m in range(M)], axis=0)  # (M*C, Np)
            A = jnp.dot(wA, slab.astype(bf16), preferred_element_type=f32) + bA
            ru = jax.nn.sigmoid(A[:2 * H, :])
            r_parts.append(ru[:H, :])
            u_parts.append(ru[H:, :])
            cx_parts.append(A[2 * H:, :])
        r = jnp.concatenate(r_parts, axis=0)                # (B*H, Np)
        u = jnp.concatenate(u_parts, axis=0)
        cx = jnp.concatenate(cx_parts, axis=0)              # candidate bias included

        h2d = h_prev.reshape(B * H, Np)                     # row index = b*H + ch
        xs_rh = diffusion(r * h2d)                          # M x (B*H, Np)

        ch_parts = []
        for b in range(B):
            slab = jnp.concatenate(
                [xs_rh[m][b * H:(b + 1) * H, :] for m in range(M)], axis=0)  # (M*H, Np)
            ch_parts.append(
                jnp.dot(wCh, slab.astype(bf16), preferred_element_type=f32))
        ch = jnp.concatenate(ch_parts, axis=0)              # (B*H, Np)

        c = jnp.tanh(cx + ch)
        h_new = (u * h2d + (1.0 - u) * c).reshape(B, H, Np)

        out_ref[l] = h_new                                  # lane-dense store
        x_cur = h_new                                       # feeds the next layer


# ---------------------------------------------------------------------------
# Parameter construction / packing (PyTorch layout -> kernel layout).
# ---------------------------------------------------------------------------
def init_cell_params_pt(key, in_dim, hid_dim, gcn_order, num_supports):
    """Synthetic params in the PyTorch DCGRUCell layout:
    weights (C*M, out_dim) with feature index c*M + m; gate bias init 1.0."""
    M = gcn_order * num_supports + 1
    C = in_dim + hid_dim
    k1, k2 = jax.random.split(key)
    w_ru = jax.random.normal(k1, (C * M, 2 * hid_dim), jnp.float32) * 0.1
    w_c = jax.random.normal(k2, (C * M, hid_dim), jnp.float32) * 0.1
    b_ru = jnp.ones((2 * hid_dim, 1), jnp.float32)
    b_c = jnp.zeros((hid_dim, 1), jnp.float32)
    return (w_ru, w_c, b_ru, b_c)


def _pack_cell_params(pt_params, in_dim, in_dim_pad, hid_dim, gcn_order,
                      num_supports, mxu_dtype=jnp.bfloat16):
    """Re-pack torch-layout weights into the kernel's stacked single-matmul form.

    W_A  : (3H, M*C_pad)  rows [0,2H) = r/u gate weights over all of concat([x,h]),
                          rows [2H,3H) = candidate x-part weights (h columns zeroed,
                          the candidate's h side uses the r*h diffusion instead).
    b_A  : (3H, 1)        [b_ru ; b_c]
    W_Ch : (H, M*H)       candidate weights for the (r*h) channels.
    Columns are ordered m*C_pad + c to match the stacked diffusion slab.
    """
    w_ru, w_c, b_ru, b_c = pt_params
    M = gcn_order * num_supports + 1
    C = in_dim + hid_dim
    Cp = in_dim_pad + hid_dim
    H = hid_dim

    def to_moc_padded(w, out_dim):
        w = jnp.transpose(w.reshape(C, M, out_dim), (2, 1, 0))          # (O, M, C)
        wx, wh = w[:, :, :in_dim], w[:, :, in_dim:]
        pad = jnp.zeros((out_dim, M, in_dim_pad - in_dim), w.dtype)
        return jnp.concatenate([wx, pad, wh], axis=2)                   # (O, M, Cp)

    w_ru_p = to_moc_padded(w_ru, 2 * H)
    w_c_p = to_moc_padded(w_c, H)
    w_cx = w_c_p.at[:, :, in_dim_pad:].set(0.0)                         # zero h columns
    W_A = jnp.concatenate([w_ru_p.reshape(2 * H, M * Cp),
                           w_cx.reshape(H, M * Cp)], axis=0).astype(mxu_dtype)
    W_Ch = w_c_p[:, :, in_dim_pad:].reshape(H, M * H).astype(mxu_dtype)
    b_A = jnp.concatenate([b_ru, b_c], axis=0).astype(jnp.float32)
    return W_A, b_A, W_Ch


# ---------------------------------------------------------------------------
# Model wrapper: equivalent of DCGRUModel.forward.
# ---------------------------------------------------------------------------
def dcgru_model_forward(inputs, supports, layer_params_pt, hidden_state=None,
                        *, hid_dim, gcn_order):
    """Returns the list of per-layer new hidden states, each (B, hid_dim, N)."""
    B, in_dim0, N = inputs.shape
    num_layers = len(layer_params_pt)
    num_supports = supports.shape[0]
    H = hid_dim
    assert H % SUBLANE == 0, "hid_dim must be a multiple of 8 for the packed kernel"
    Np = _round_up(N, LANE)
    in_dim_pad0 = _round_up(in_dim0, SUBLANE)

    if hidden_state is None:
        hidden_state = jnp.zeros((num_layers, B, H, N), jnp.float32)

    # Lane-pad the node axis to 128 (lane-dense loads/stores), channel-pad layer-0
    # input to a multiple of 8 (sublane-aligned concats/slices in the kernel).
    x_p = jnp.pad(inputs.astype(jnp.float32),
                  ((0, 0), (0, in_dim_pad0 - in_dim0), (0, Np - N)))
    h_p = jnp.pad(hidden_state.astype(jnp.float32),
                  ((0, 0), (0, 0), (0, 0), (0, Np - N)))
    # Pre-transpose + bf16-cast supports; zero padding keeps valid lanes exact.
    supT = jnp.transpose(supports, (0, 2, 1)).astype(jnp.bfloat16)
    supT_p = jnp.pad(supT, ((0, 0), (0, Np - N), (0, Np - N)))

    in_dims = [in_dim0] + [H] * (num_layers - 1)
    in_dims_pad = [in_dim_pad0] + [H] * (num_layers - 1)
    packed = []
    for l in range(num_layers):
        packed.extend(_pack_cell_params(layer_params_pt[l], in_dims[l],
                                        in_dims_pad[l], H, gcn_order, num_supports))

    vmem = pl.BlockSpec(memory_space=pltpu.MemorySpace.VMEM)
    kernel = functools.partial(_dcgru_stack_kernel, gcn_order=gcn_order)
    out = pl.pallas_call(
        kernel,
        out_shape=jax.ShapeDtypeStruct((num_layers, B, H, Np), jnp.float32),
        in_specs=[vmem] * (3 + len(packed)),
        out_specs=vmem,
    )(x_p, h_p, supT_p, *packed)

    return [out[l, :, :, :N] for l in range(num_layers)]


# ---------------------------------------------------------------------------
# Pure-JAX f32 reference (torch-layout weights) for validation.
# ---------------------------------------------------------------------------
def _gconv_ref(x, state, supports, w, b, *, gcn_order):
    B, _, N = x.shape
    z = jnp.concatenate([x, state], axis=1)                 # (B, C, N)
    C = z.shape[1]
    x0 = z
    xs = [x0]
    for s in range(supports.shape[0]):
        sup = supports[s]
        x1 = jnp.einsum('nm,bcm->bcn', sup, x0)
        xs.append(x1)
        for _ in range(2, gcn_order + 1):
            x2 = 2.0 * jnp.einsum('nm,bcm->bcn', sup, x1) - x0
            xs.append(x2)
            x1, x0 = x2, x1
    M = len(xs)
    xcat = jnp.stack(xs, axis=0)                            # (M, B, C, N)
    xcat = jnp.transpose(xcat, (1, 3, 2, 0)).reshape(B * N, C * M)  # idx c*M + m
    out = xcat @ w + b.reshape(1, -1)                       # (B*N, O)
    O = w.shape[1]
    return jnp.transpose(out.reshape(B, N, O), (0, 2, 1))   # (B, O, N)


def _dcgru_cell_ref(x, h, supports, pt_params, *, gcn_order):
    w_ru, w_c, b_ru, b_c = pt_params
    H = h.shape[1]
    ru = jax.nn.sigmoid(_gconv_ref(x, h, supports, w_ru, b_ru, gcn_order=gcn_order))
    r, u = ru[:, :H, :], ru[:, H:, :]
    c = jnp.tanh(_gconv_ref(x, r * h, supports, w_c, b_c, gcn_order=gcn_order))
    return u * h + (1.0 - u) * c


def _dcgru_model_ref(inputs, supports, pt_params_list, hidden_state, *, gcn_order):
    outs = []
    nxt = inputs
    for l, p in enumerate(pt_params_list):
        nxt = _dcgru_cell_ref(nxt, hidden_state[l], supports, p, gcn_order=gcn_order)
        outs.append(nxt)
    return outs


def _make_support(key, n):
    a = jax.random.uniform(key, (n, n), jnp.float32)
    return a / jnp.sum(a, axis=1, keepdims=True)            # row-normalized random walk


if __name__ == "__main__":
    B, in_dim, N = 2, 4, 16
    hid_dim, num_rnn_layers, gcn_order, num_supports = 32, 2, 2, 2

    key = jax.random.PRNGKey(0)
    k_x, k_s1, k_s2, k_h, k_p = jax.random.split(key, 5)

    inputs = jax.random.normal(k_x, (B, in_dim, N), jnp.float32)
    supports = jnp.stack([_make_support(k_s1, N), _make_support(k_s2, N)])
    hidden_state = jax.random.normal(
        k_h, (num_rnn_layers, B, hid_dim, N), jnp.float32) * 0.1

    pkeys = jax.random.split(k_p, num_rnn_layers)
    layer_params = [init_cell_params_pt(pkeys[0], in_dim, hid_dim,
                                        gcn_order, num_supports)]
    for li in range(1, num_rnn_layers):
        layer_params.append(init_cell_params_pt(pkeys[li], hid_dim, hid_dim,
                                                gcn_order, num_supports))

    fwd = jax.jit(functools.partial(dcgru_model_forward,
                                    hid_dim=hid_dim, gcn_order=gcn_order))
    outs = fwd(inputs, supports, layer_params, hidden_state)
    outs = [jax.block_until_ready(o) for o in outs]

    refs = _dcgru_model_ref(inputs, supports, layer_params, hidden_state,
                            gcn_order=gcn_order)

    assert len(outs) == num_rnn_layers
    for o, r in zip(outs, refs):
        assert o.shape == (B, hid_dim, N)
        assert bool(jnp.all(jnp.isfinite(o)))
        # bf16 MXU operands / f32 accumulation: loose but structure-bug-catching bound
        assert float(jnp.max(jnp.abs(o - r))) < 0.15
    print("KERNEL_OK")
</pallas_src>

<mosaic_0001>
module attributes {stable_mosaic.version = 11 : i64} {
  func.func @_dcgru_stack_kernel(%arg0: memref<2x8x128xf32, #tpu.memory_space<vmem>>, %arg1: memref<2x2x32x128xf32, #tpu.memory_space<vmem>>, %arg2: memref<2x128x128xbf16, #tpu.memory_space<vmem>>, %arg3: memref<96x200xbf16, #tpu.memory_space<vmem>>, %arg4: memref<96x1xf32, #tpu.memory_space<vmem>>, %arg5: memref<32x160xbf16, #tpu.memory_space<vmem>>, %arg6: memref<96x320xbf16, #tpu.memory_space<vmem>>, %arg7: memref<96x1xf32, #tpu.memory_space<vmem>>, %arg8: memref<32x160xbf16, #tpu.memory_space<vmem>>, %arg9: memref<2x2x32x128xf32, #tpu.memory_space<vmem>>) attributes {dimension_semantics = [], scalar_prefetch = 0 : i64, scratch_operands = 0 : i64, tpu.core_type = #tpu.core_type<tc>} {
    %c0 = arith.constant 0 : index
    %c0_0 = arith.constant 0 : index
    %c0_1 = arith.constant 0 : index
    %0 = vector.load %arg2[%c0, %c0_0, %c0_1] : memref<2x128x128xbf16, #tpu.memory_space<vmem>>, vector<1x128x128xbf16>
    %1 = vector.shape_cast %0 : vector<1x128x128xbf16> to vector<128x128xbf16>
    %c1 = arith.constant 1 : index
    %c0_2 = arith.constant 0 : index
    %c0_3 = arith.constant 0 : index
    %2 = vector.load %arg2[%c1, %c0_2, %c0_3] : memref<2x128x128xbf16, #tpu.memory_space<vmem>>, vector<1x128x128xbf16>
    %3 = vector.shape_cast %2 : vector<1x128x128xbf16> to vector<128x128xbf16>
    %c0_4 = arith.constant 0 : index
    %c0_5 = arith.constant 0 : index
    %c0_6 = arith.constant 0 : index
    %4 = vector.load %arg0[%c0_4, %c0_5, %c0_6] : memref<2x8x128xf32, #tpu.memory_space<vmem>>, vector<2x8x128xf32>
    %c0_7 = arith.constant 0 : index
    %c0_8 = arith.constant 0 : index
    %c0_9 = arith.constant 0 : index
    %c0_10 = arith.constant 0 : index
    %5 = vector.load %arg1[%c0_7, %c0_8, %c0_9, %c0_10] : memref<2x2x32x128xf32, #tpu.memory_space<vmem>>, vector<1x2x32x128xf32>
    %6 = vector.shape_cast %5 : vector<1x2x32x128xf32> to vector<2x32x128xf32>
    %7 = vector.extract_strided_slice %4 {offsets = [0, 0, 0], sizes = [1, 8, 128], strides = [1, 1, 1]} : vector<2x8x128xf32> to vector<1x8x128xf32>
    %8 = vector.shape_cast %7 : vector<1x8x128xf32> to vector<8x128xf32>
    %9 = vector.extract_strided_slice %6 {offsets = [0, 0, 0], sizes = [1, 32, 128], strides = [1, 1, 1]} : vector<2x32x128xf32> to vector<1x32x128xf32>
    %10 = vector.shape_cast %9 : vector<1x32x128xf32> to vector<32x128xf32>
    %11 = tpu.concatenate %8, %10 in 0 : vector<8x128xf32>, vector<32x128xf32> -> vector<40x128xf32>
    %12 = vector.extract_strided_slice %4 {offsets = [1, 0, 0], sizes = [1, 8, 128], strides = [1, 1, 1]} : vector<2x8x128xf32> to vector<1x8x128xf32>
    %13 = vector.shape_cast %12 : vector<1x8x128xf32> to vector<8x128xf32>
    %14 = vector.extract_strided_slice %6 {offsets = [1, 0, 0], sizes = [1, 32, 128], strides = [1, 1, 1]} : vector<2x32x128xf32> to vector<1x32x128xf32>
    %15 = vector.shape_cast %14 : vector<1x32x128xf32> to vector<32x128xf32>
    %16 = tpu.concatenate %13, %15 in 0 : vector<8x128xf32>, vector<32x128xf32> -> vector<40x128xf32>
    %17 = tpu.concatenate %11, %16 in 0 : vector<40x128xf32>, vector<40x128xf32> -> vector<80x128xf32>
    %18 = arith.truncf %17 : vector<80x128xf32> to vector<80x128xbf16>
    %cst = arith.constant dense<0.000000e+00> : vector<80x128xf32>
    %19 = tpu.matmul %18, %1, %cst {dimension_numbers = #tpu.dot_dimension_numbers<[1], [0], [0], [1], [0, 0, 1, 1], [], []>} : vector<80x128xbf16>, vector<128x128xbf16>, vector<80x128xf32> -> vector<80x128xf32>
    %20 = arith.truncf %19 : vector<80x128xf32> to vector<80x128xbf16>
    %cst_11 = arith.constant dense<0.000000e+00> : vector<80x128xf32>
    %21 = tpu.matmul %20, %1, %cst_11 {dimension_numbers = #tpu.dot_dimension_numbers<[1], [0], [0], [1], [0, 0, 1, 1], [], []>} : vector<80x128xbf16>, vector<128x128xbf16>, vector<80x128xf32> -> vector<80x128xf32>
    %cst_12 = arith.constant 2.000000e+00 : f32
    %22 = vector.broadcast %cst_12 : f32 to vector<80x128xf32>
    %23 = arith.mulf %22, %21 : vector<80x128xf32>
    %24 = arith.subf %23, %17 : vector<80x128xf32>
    %25 = arith.truncf %19 : vector<80x128xf32> to vector<80x128xbf16>
    %cst_13 = arith.constant dense<0.000000e+00> : vector<80x128xf32>
    %26 = tpu.matmul %25, %3, %cst_13 {dimension_numbers = #tpu.dot_dimension_numbers<[1], [0], [0], [1], [0, 0, 1, 1], [], []>} : vector<80x128xbf16>, vector<128x128xbf16>, vector<80x128xf32> -> vector<80x128xf32>
    %27 = arith.truncf %26 : vector<80x128xf32> to vector<80x128xbf16>
    %cst_14 = arith.constant dense<0.000000e+00> : vector<80x128xf32>
    %28 = tpu.matmul %27, %3, %cst_14 {dimension_numbers = #tpu.dot_dimension_numbers<[1], [0], [0], [1], [0, 0, 1, 1], [], []>} : vector<80x128xbf16>, vector<128x128xbf16>, vector<80x128xf32> -> vector<80x128xf32>
    %cst_15 = arith.constant 2.000000e+00 : f32
    %29 = vector.broadcast %cst_15 : f32 to vector<80x128xf32>
    %30 = arith.mulf %29, %28 : vector<80x128xf32>
    %31 = arith.subf %30, %19 : vector<80x128xf32>
    %c0_16 = arith.constant 0 : index
    %c0_17 = arith.constant 0 : index
    %32 = vector.load %arg3[%c0_16, %c0_17] : memref<96x200xbf16, #tpu.memory_space<vmem>>, vector<96x200xbf16>
    %c0_18 = arith.constant 0 : index
    %c0_19 = arith.constant 0 : index
    %33 = vector.load %arg4[%c0_18, %c0_19] : memref<96x1xf32, #tpu.memory_space<vmem>>, vector<96x1xf32>
    %c0_20 = arith.constant 0 : index
    %c0_21 = arith.constant 0 : index
    %34 = vector.load %arg5[%c0_20, %c0_21] : memref<32x160xbf16, #tpu.memory_space<vmem>>, vector<32x160xbf16>
    %35 = vector.extract_strided_slice %17 {offsets = [0, 0], sizes = [40, 128], strides = [1, 1]} : vector<80x128xf32> to vector<40x128xf32>
    %36 = vector.extract_strided_slice %19 {offsets = [0, 0], sizes = [40, 128], strides = [1, 1]} : vector<80x128xf32> to vector<40x128xf32>
    %37 = vector.extract_strided_slice %24 {offsets = [0, 0], sizes = [40, 128], strides = [1, 1]} : vector<80x128xf32> to vector<40x128xf32>
    %38 = vector.extract_strided_slice %26 {offsets = [0, 0], sizes = [40, 128], strides = [1, 1]} : vector<80x128xf32> to vector<40x128xf32>
    %39 = vector.extract_strided_slice %31 {offsets = [0, 0], sizes = [40, 128], strides = [1, 1]} : vector<80x128xf32> to vector<40x128xf32>
    %40 = tpu.concatenate %35, %36, %37, %38, %39 in 0 : vector<40x128xf32>, vector<40x128xf32>, vector<40x128xf32>, vector<40x128xf32>, vector<40x128xf32> -> vector<200x128xf32>
    %41 = arith.truncf %40 : vector<200x128xf32> to vector<200x128xbf16>
    %cst_22 = arith.constant dense<0.000000e+00> : vector<96x128xf32>
    %42 = tpu.matmul %32, %41, %cst_22 {dimension_numbers = #tpu.dot_dimension_numbers<[1], [0], [0], [1], [0, 0, 1, 1], [], []>} : vector<96x200xbf16>, vector<200x128xbf16>, vector<96x128xf32> -> vector<96x128xf32>
    %43 = vector.broadcast %33 : vector<96x1xf32> to vector<96x128xf32>
    %44 = arith.addf %42, %43 : vector<96x128xf32>
    %45 = vector.extract_strided_slice %44 {offsets = [0, 0], sizes = [64, 128], strides = [1, 1]} : vector<96x128xf32> to vector<64x128xf32>
    %46 = arith.negf %45 : vector<64x128xf32>
    %47 = math.exp %46 : vector<64x128xf32>
    %cst_23 = arith.constant 1.000000e+00 : f32
    %48 = vector.broadcast %cst_23 : f32 to vector<64x128xf32>
    %49 = arith.addf %48, %47 : vector<64x128xf32>
    %50 = arith.divf %48, %49 : vector<64x128xf32>
    %51 = vector.extract_strided_slice %50 {offsets = [0, 0], sizes = [32, 128], strides = [1, 1]} : vector<64x128xf32> to vector<32x128xf32>
    %52 = vector.extract_strided_slice %50 {offsets = [32, 0], sizes = [32, 128], strides = [1, 1]} : vector<64x128xf32> to vector<32x128xf32>
    %53 = vector.extract_strided_slice %44 {offsets = [64, 0], sizes = [32, 128], strides = [1, 1]} : vector<96x128xf32> to vector<32x128xf32>
    %54 = vector.extract_strided_slice %17 {offsets = [40, 0], sizes = [40, 128], strides = [1, 1]} : vector<80x128xf32> to vector<40x128xf32>
    %55 = vector.extract_strided_slice %19 {offsets = [40, 0], sizes = [40, 128], strides = [1, 1]} : vector<80x128xf32> to vector<40x128xf32>
    %56 = vector.extract_strided_slice %24 {offsets = [40, 0], sizes = [40, 128], strides = [1, 1]} : vector<80x128xf32> to vector<40x128xf32>
    %57 = vector.extract_strided_slice %26 {offsets = [40, 0], sizes = [40, 128], strides = [1, 1]} : vector<80x128xf32> to vector<40x128xf32>
    %58 = vector.extract_strided_slice %31 {offsets = [40, 0], sizes = [40, 128], strides = [1, 1]} : vector<80x128xf32> to vector<40x128xf32>
    %59 = tpu.concatenate %54, %55, %56, %57, %58 in 0 : vector<40x128xf32>, vector<40x128xf32>, vector<40x128xf32>, vector<40x128xf32>, vector<40x128xf32> -> vector<200x128xf32>
    %60 = arith.truncf %59 : vector<200x128xf32> to vector<200x128xbf16>
    %cst_24 = arith.constant dense<0.000000e+00> : vector<96x128xf32>
    %61 = tpu.matmul %32, %60, %cst_24 {dimension_numbers = #tpu.dot_dimension_numbers<[1], [0], [0], [1], [0, 0, 1, 1], [], []>} : vector<96x200xbf16>, vector<200x128xbf16>, vector<96x128xf32> -> vector<96x128xf32>
    %62 = vector.broadcast %33 : vector<96x1xf32> to vector<96x128xf32>
    %63 = arith.addf %61, %62 : vector<96x128xf32>
    %64 = vector.extract_strided_slice %63 {offsets = [0, 0], sizes = [64, 128], strides = [1, 1]} : vector<96x128xf32> to vector<64x128xf32>
    %65 = arith.negf %64 : vector<64x128xf32>
    %66 = math.exp %65 : vector<64x128xf32>
    %cst_25 = arith.constant 1.000000e+00 : f32
    %67 = vector.broadcast %cst_25 : f32 to vector<64x128xf32>
    %68 = arith.addf %67, %66 : vector<64x128xf32>
    %69 = arith.divf %67, %68 : vector<64x128xf32>
    %70 = vector.extract_strided_slice %69 {offsets = [0, 0], sizes = [32, 128], strides = [1, 1]} : vector<64x128xf32> to vector<32x128xf32>
    %71 = vector.extract_strided_slice %69 {offsets = [32, 0], sizes = [32, 128], strides = [1, 1]} : vector<64x128xf32> to vector<32x128xf32>
    %72 = vector.extract_strided_slice %63 {offsets = [64, 0], sizes = [32, 128], strides = [1, 1]} : vector<96x128xf32> to vector<32x128xf32>
    %73 = tpu.concatenate %51, %70 in 0 : vector<32x128xf32>, vector<32x128xf32> -> vector<64x128xf32>
    %74 = tpu.concatenate %52, %71 in 0 : vector<32x128xf32>, vector<32x128xf32> -> vector<64x128xf32>
    %75 = tpu.concatenate %53, %72 in 0 : vector<32x128xf32>, vector<32x128xf32> -> vector<64x128xf32>
    %76 = vector.shape_cast %6 : vector<2x32x128xf32> to vector<64x128xf32>
    %77 = arith.mulf %73, %76 : vector<64x128xf32>
    %78 = arith.truncf %77 : vector<64x128xf32> to vector<64x128xbf16>
    %cst_26 = arith.constant dense<0.000000e+00> : vector<64x128xf32>
    %79 = tpu.matmul %78, %1, %cst_26 {dimension_numbers = #tpu.dot_dimension_numbers<[1], [0], [0], [1], [0, 0, 1, 1], [], []>} : vector<64x128xbf16>, vector<128x128xbf16>, vector<64x128xf32> -> vector<64x128xf32>
    %80 = arith.truncf %79 : vector<64x128xf32> to vector<64x128xbf16>
    %cst_27 = arith.constant dense<0.000000e+00> : vector<64x128xf32>
    %81 = tpu.matmul %80, %1, %cst_27 {dimension_numbers = #tpu.dot_dimension_numbers<[1], [0], [0], [1], [0, 0, 1, 1], [], []>} : vector<64x128xbf16>, vector<128x128xbf16>, vector<64x128xf32> -> vector<64x128xf32>
    %cst_28 = arith.constant 2.000000e+00 : f32
    %82 = vector.broadcast %cst_28 : f32 to vector<64x128xf32>
    %83 = arith.mulf %82, %81 : vector<64x128xf32>
    %84 = arith.subf %83, %77 : vector<64x128xf32>
    %85 = arith.truncf %79 : vector<64x128xf32> to vector<64x128xbf16>
    %cst_29 = arith.constant dense<0.000000e+00> : vector<64x128xf32>
    %86 = tpu.matmul %85, %3, %cst_29 {dimension_numbers = #tpu.dot_dimension_numbers<[1], [0], [0], [1], [0, 0, 1, 1], [], []>} : vector<64x128xbf16>, vector<128x128xbf16>, vector<64x128xf32> -> vector<64x128xf32>
    %87 = arith.truncf %86 : vector<64x128xf32> to vector<64x128xbf16>
    %cst_30 = arith.constant dense<0.000000e+00> : vector<64x128xf32>
    %88 = tpu.matmul %87, %3, %cst_30 {dimension_numbers = #tpu.dot_dimension_numbers<[1], [0], [0], [1], [0, 0, 1, 1], [], []>} : vector<64x128xbf16>, vector<128x128xbf16>, vector<64x128xf32> -> vector<64x128xf32>
    %cst_31 = arith.constant 2.000000e+00 : f32
    %89 = vector.broadcast %cst_31 : f32 to vector<64x128xf32>
    %90 = arith.mulf %89, %88 : vector<64x128xf32>
    %91 = arith.subf %90, %79 : vector<64x128xf32>
    %92 = vector.extract_strided_slice %77 {offsets = [0, 0], sizes = [32, 128], strides = [1, 1]} : vector<64x128xf32> to vector<32x128xf32>
    %93 = vector.extract_strided_slice %79 {offsets = [0, 0], sizes = [32, 128], strides = [1, 1]} : vector<64x128xf32> to vector<32x128xf32>
    %94 = vector.extract_strided_slice %84 {offsets = [0, 0], sizes = [32, 128], strides = [1, 1]} : vector<64x128xf32> to vector<32x128xf32>
    %95 = vector.extract_strided_slice %86 {offsets = [0, 0], sizes = [32, 128], strides = [1, 1]} : vector<64x128xf32> to vector<32x128xf32>
    %96 = vector.extract_strided_slice %91 {offsets = [0, 0], sizes = [32, 128], strides = [1, 1]} : vector<64x128xf32> to vector<32x128xf32>
    %97 = tpu.concatenate %92, %93, %94, %95, %96 in 0 : vector<32x128xf32>, vector<32x128xf32>, vector<32x128xf32>, vector<32x128xf32>, vector<32x128xf32> -> vector<160x128xf32>
    %98 = arith.truncf %97 : vector<160x128xf32> to vector<160x128xbf16>
    %cst_32 = arith.constant dense<0.000000e+00> : vector<32x128xf32>
    %99 = tpu.matmul %34, %98, %cst_32 {dimension_numbers = #tpu.dot_dimension_numbers<[1], [0], [0], [1], [0, 0, 1, 1], [], []>} : vector<32x160xbf16>, vector<160x128xbf16>, vector<32x128xf32> -> vector<32x128xf32>
    %100 = vector.extract_strided_slice %77 {offsets = [32, 0], sizes = [32, 128], strides = [1, 1]} : vector<64x128xf32> to vector<32x128xf32>
    %101 = vector.extract_strided_slice %79 {offsets = [32, 0], sizes = [32, 128], strides = [1, 1]} : vector<64x128xf32> to vector<32x128xf32>
    %102 = vector.extract_strided_slice %84 {offsets = [32, 0], sizes = [32, 128], strides = [1, 1]} : vector<64x128xf32> to vector<32x128xf32>
    %103 = vector.extract_strided_slice %86 {offsets = [32, 0], sizes = [32, 128], strides = [1, 1]} : vector<64x128xf32> to vector<32x128xf32>
    %104 = vector.extract_strided_slice %91 {offsets = [32, 0], sizes = [32, 128], strides = [1, 1]} : vector<64x128xf32> to vector<32x128xf32>
    %105 = tpu.concatenate %100, %101, %102, %103, %104 in 0 : vector<32x128xf32>, vector<32x128xf32>, vector<32x128xf32>, vector<32x128xf32>, vector<32x128xf32> -> vector<160x128xf32>
    %106 = arith.truncf %105 : vector<160x128xf32> to vector<160x128xbf16>
    %cst_33 = arith.constant dense<0.000000e+00> : vector<32x128xf32>
    %107 = tpu.matmul %34, %106, %cst_33 {dimension_numbers = #tpu.dot_dimension_numbers<[1], [0], [0], [1], [0, 0, 1, 1], [], []>} : vector<32x160xbf16>, vector<160x128xbf16>, vector<32x128xf32> -> vector<32x128xf32>
    %108 = tpu.concatenate %99, %107 in 0 : vector<32x128xf32>, vector<32x128xf32> -> vector<64x128xf32>
    %109 = arith.addf %75, %108 : vector<64x128xf32>
    %110 = math.tanh %109 : vector<64x128xf32>
    %111 = arith.mulf %74, %76 : vector<64x128xf32>
    %cst_34 = arith.constant 1.000000e+00 : f32
    %112 = vector.broadcast %cst_34 : f32 to vector<64x128xf32>
    %113 = arith.subf %112, %74 : vector<64x128xf32>
    %114 = arith.mulf %113, %110 : vector<64x128xf32>
    %115 = arith.addf %111, %114 : vector<64x128xf32>
    %116 = vector.shape_cast %115 : vector<64x128xf32> to vector<2x32x128xf32>
    %c0_35 = arith.constant 0 : index
    %c0_36 = arith.constant 0 : index
    %c0_37 = arith.constant 0 : index
    %c0_38 = arith.constant 0 : index
    %117 = vector.load %arg9[%c0_35, %c0_36, %c0_37, %c0_38] : memref<2x2x32x128xf32, #tpu.memory_space<vmem>>, vector<1x2x32x128xf32>
    %118 = vector.shape_cast %117 : vector<1x2x32x128xf32> to vector<2x32x128xf32>
    %119 = vector.shape_cast %116 : vector<2x32x128xf32> to vector<1x2x32x128xf32>
    tpu.vector_store %arg9[%c0_35, %c0_36, %c0_37, %c0_38], %119 {strides = array<i32>} : memref<2x2x32x128xf32, #tpu.memory_space<vmem>>, vector<1x2x32x128xf32>,
    %c1_39 = arith.constant 1 : index
    %c0_40 = arith.constant 0 : index
    %c0_41 = arith.constant 0 : index
    %c0_42 = arith.constant 0 : index
    %120 = vector.load %arg1[%c1_39, %c0_40, %c0_41, %c0_42] : memref<2x2x32x128xf32, #tpu.memory_space<vmem>>, vector<1x2x32x128xf32>
    %121 = vector.shape_cast %120 : vector<1x2x32x128xf32> to vector<2x32x128xf32>
    %122 = vector.extract_strided_slice %116 {offsets = [0, 0, 0], sizes = [1, 32, 128], strides = [1, 1, 1]} : vector<2x32x128xf32> to vector<1x32x128xf32>
    %123 = vector.shape_cast %122 : vector<1x32x128xf32> to vector<32x128xf32>
    %124 = vector.extract_strided_slice %121 {offsets = [0, 0, 0], sizes = [1, 32, 128], strides = [1, 1, 1]} : vector<2x32x128xf32> to vector<1x32x128xf32>
    %125 = vector.shape_cast %124 : vector<1x32x128xf32> to vector<32x128xf32>
    %126 = tpu.concatenate %123, %125 in 0 : vector<32x128xf32>, vector<32x128xf32> -> vector<64x128xf32>
    %127 = vector.extract_strided_slice %116 {offsets = [1, 0, 0], sizes = [1, 32, 128], strides = [1, 1, 1]} : vector<2x32x128xf32> to vector<1x32x128xf32>
    %128 = vector.shape_cast %127 : vector<1x32x128xf32> to vector<32x128xf32>
    %129 = vector.extract_strided_slice %121 {offsets = [1, 0, 0], sizes = [1, 32, 128], strides = [1, 1, 1]} : vector<2x32x128xf32> to vector<1x32x128xf32>
    %130 = vector.shape_cast %129 : vector<1x32x128xf32> to vector<32x128xf32>
    %131 = tpu.concatenate %128, %130 in 0 : vector<32x128xf32>, vector<32x128xf32> -> vector<64x128xf32>
    %132 = tpu.concatenate %126, %131 in 0 : vector<64x128xf32>, vector<64x128xf32> -> vector<128x128xf32>
    %133 = arith.truncf %132 : vector<128x128xf32> to vector<128x128xbf16>
    %cst_43 = arith.constant dense<0.000000e+00> : vector<128x128xf32>
    %134 = tpu.matmul %133, %1, %cst_43 {dimension_numbers = #tpu.dot_dimension_numbers<[1], [0], [0], [1], [0, 0, 1, 1], [], []>} : vector<128x128xbf16>, vector<128x128xbf16>, vector<128x128xf32> -> vector<128x128xf32>
    %135 = arith.truncf %134 : vector<128x128xf32> to vector<128x128xbf16>
    %cst_44 = arith.constant dense<0.000000e+00> : vector<128x128xf32>
    %136 = tpu.matmul %135, %1, %cst_44 {dimension_numbers = #tpu.dot_dimension_numbers<[1], [0], [0], [1], [0, 0, 1, 1], [], []>} : vector<128x128xbf16>, vector<128x128xbf16>, vector<128x128xf32> -> vector<128x128xf32>
    %cst_45 = arith.constant 2.000000e+00 : f32
    %137 = vector.broadcast %cst_45 : f32 to vector<128x128xf32>
    %138 = arith.mulf %137, %136 : vector<128x128xf32>
    %139 = arith.subf %138, %132 : vector<128x128xf32>
    %140 = arith.truncf %134 : vector<128x128xf32> to vector<128x128xbf16>
    %cst_46 = arith.constant dense<0.000000e+00> : vector<128x128xf32>
    %141 = tpu.matmul %140, %3, %cst_46 {dimension_numbers = #tpu.dot_dimension_numbers<[1], [0], [0], [1], [0, 0, 1, 1], [], []>} : vector<128x128xbf16>, vector<128x128xbf16>, vector<128x128xf32> -> vector<128x128xf32>
    %142 = arith.truncf %141 : vector<128x128xf32> to vector<128x128xbf16>
    %cst_47 = arith.constant dense<0.000000e+00> : vector<128x128xf32>
    %143 = tpu.matmul %142, %3, %cst_47 {dimension_numbers = #tpu.dot_dimension_numbers<[1], [0], [0], [1], [0, 0, 1, 1], [], []>} : vector<128x128xbf16>, vector<128x128xbf16>, vector<128x128xf32> -> vector<128x128xf32>
    %cst_48 = arith.constant 2.000000e+00 : f32
    %144 = vector.broadcast %cst_48 : f32 to vector<128x128xf32>
    %145 = arith.mulf %144, %143 : vector<128x128xf32>
    %146 = arith.subf %145, %134 : vector<128x128xf32>
    %c0_49 = arith.constant 0 : index
    %c0_50 = arith.constant 0 : index
    %147 = vector.load %arg6[%c0_49, %c0_50] : memref<96x320xbf16, #tpu.memory_space<vmem>>, vector<96x320xbf16>
    %c0_51 = arith.constant 0 : index
    %c0_52 = arith.constant 0 : index
    %148 = vector.load %arg7[%c0_51, %c0_52] : memref<96x1xf32, #tpu.memory_space<vmem>>, vector<96x1xf32>
    %c0_53 = arith.constant 0 : index
    %c0_54 = arith.constant 0 : index
    %149 = vector.load %arg8[%c0_53, %c0_54] : memref<32x160xbf16, #tpu.memory_space<vmem>>, vector<32x160xbf16>
    %150 = vector.extract_strided_slice %132 {offsets = [0, 0], sizes = [64, 128], strides = [1, 1]} : vector<128x128xf32> to vector<64x128xf32>
    %151 = vector.extract_strided_slice %134 {offsets = [0, 0], sizes = [64, 128], strides = [1, 1]} : vector<128x128xf32> to vector<64x128xf32>
    %152 = vector.extract_strided_slice %139 {offsets = [0, 0], sizes = [64, 128], strides = [1, 1]} : vector<128x128xf32> to vector<64x128xf32>
    %153 = vector.extract_strided_slice %141 {offsets = [0, 0], sizes = [64, 128], strides = [1, 1]} : vector<128x128xf32> to vector<64x128xf32>
    %154 = vector.extract_strided_slice %146 {offsets = [0, 0], sizes = [64, 128], strides = [1, 1]} : vector<128x128xf32> to vector<64x128xf32>
    %155 = tpu.concatenate %150, %151, %152, %153, %154 in 0 : vector<64x128xf32>, vector<64x128xf32>, vector<64x128xf32>, vector<64x128xf32>, vector<64x128xf32> -> vector<320x128xf32>
    %156 = arith.truncf %155 : vector<320x128xf32> to vector<320x128xbf16>
    %cst_55 = arith.constant dense<0.000000e+00> : vector<96x128xf32>
    %157 = tpu.matmul %147, %156, %cst_55 {dimension_numbers = #tpu.dot_dimension_numbers<[1], [0], [0], [1], [0, 0, 1, 1], [], []>} : vector<96x320xbf16>, vector<320x128xbf16>, vector<96x128xf32> -> vector<96x128xf32>
    %158 = vector.broadcast %148 : vector<96x1xf32> to vector<96x128xf32>
    %159 = arith.addf %157, %158 : vector<96x128xf32>
    %160 = vector.extract_strided_slice %159 {offsets = [0, 0], sizes = [64, 128], strides = [1, 1]} : vector<96x128xf32> to vector<64x128xf32>
    %161 = arith.negf %160 : vector<64x128xf32>
    %162 = math.exp %161 : vector<64x128xf32>
    %cst_56 = arith.constant 1.000000e+00 : f32
    %163 = vector.broadcast %cst_56 : f32 to vector<64x128xf32>
    %164 = arith.addf %163, %162 : vector<64x128xf32>
    %165 = arith.divf %163, %164 : vector<64x128xf32>
    %166 = vector.extract_strided_slice %165 {offsets = [0, 0], sizes = [32, 128], strides = [1, 1]} : vector<64x128xf32> to vector<32x128xf32>
    %167 = vector.extract_strided_slice %165 {offsets = [32, 0], sizes = [32, 128], strides = [1, 1]} : vector<64x128xf32> to vector<32x128xf32>
    %168 = vector.extract_strided_slice %159 {offsets = [64, 0], sizes = [32, 128], strides = [1, 1]} : vector<96x128xf32> to vector<32x128xf32>
    %169 = vector.extract_strided_slice %132 {offsets = [64, 0], sizes = [64, 128], strides = [1, 1]} : vector<128x128xf32> to vector<64x128xf32>
    %170 = vector.extract_strided_slice %134 {offsets = [64, 0], sizes = [64, 128], strides = [1, 1]} : vector<128x128xf32> to vector<64x128xf32>
    %171 = vector.extract_strided_slice %139 {offsets = [64, 0], sizes = [64, 128], strides = [1, 1]} : vector<128x128xf32> to vector<64x128xf32>
    %172 = vector.extract_strided_slice %141 {offsets = [64, 0], sizes = [64, 128], strides = [1, 1]} : vector<128x128xf32> to vector<64x128xf32>
    %173 = vector.extract_strided_slice %146 {offsets = [64, 0], sizes = [64, 128], strides = [1, 1]} : vector<128x128xf32> to vector<64x128xf32>
    %174 = tpu.concatenate %169, %170, %171, %172, %173 in 0 : vector<64x128xf32>, vector<64x128xf32>, vector<64x128xf32>, vector<64x128xf32>, vector<64x128xf32> -> vector<320x128xf32>
    %175 = arith.truncf %174 : vector<320x128xf32> to vector<320x128xbf16>
    %cst_57 = arith.constant dense<0.000000e+00> : vector<96x128xf32>
    %176 = tpu.matmul %147, %175, %cst_57 {dimension_numbers = #tpu.dot_dimension_numbers<[1], [0], [0], [1], [0, 0, 1, 1], [], []>} : vector<96x320xbf16>, vector<320x128xbf16>, vector<96x128xf32> -> vector<96x128xf32>
    %177 = vector.broadcast %148 : vector<96x1xf32> to vector<96x128xf32>
    %178 = arith.addf %176, %177 : vector<96x128xf32>
    %179 = vector.extract_strided_slice %178 {offsets = [0, 0], sizes = [64, 128], strides = [1, 1]} : vector<96x128xf32> to vector<64x128xf32>
    %180 = arith.negf %179 : vector<64x128xf32>
    %181 = math.exp %180 : vector<64x128xf32>
    %cst_58 = arith.constant 1.000000e+00 : f32
    %182 = vector.broadcast %cst_58 : f32 to vector<64x128xf32>
    %183 = arith.addf %182, %181 : vector<64x128xf32>
    %184 = arith.divf %182, %183 : vector<64x128xf32>
    %185 = vector.extract_strided_slice %184 {offsets = [0, 0], sizes = [32, 128], strides = [1, 1]} : vector<64x128xf32> to vector<32x128xf32>
    %186 = vector.extract_strided_slice %184 {offsets = [32, 0], sizes = [32, 128], strides = [1, 1]} : vector<64x128xf32> to vector<32x128xf32>
    %187 = vector.extract_strided_slice %178 {offsets = [64, 0], sizes = [32, 128], strides = [1, 1]} : vector<96x128xf32> to vector<32x128xf32>
    %188 = tpu.concatenate %166, %185 in 0 : vector<32x128xf32>, vector<32x128xf32> -> vector<64x128xf32>
    %189 = tpu.concatenate %167, %186 in 0 : vector<32x128xf32>, vector<32x128xf32> -> vector<64x128xf32>
    %190 = tpu.concatenate %168, %187 in 0 : vector<32x128xf32>, vector<32x128xf32> -> vector<64x128xf32>
    %191 = vector.shape_cast %121 : vector<2x32x128xf32> to vector<64x128xf32>
    %192 = arith.mulf %188, %191 : vector<64x128xf32>
    %193 = arith.truncf %192 : vector<64x128xf32> to vector<64x128xbf16>
    %cst_59 = arith.constant dense<0.000000e+00> : vector<64x128xf32>
    %194 = tpu.matmul %193, %1, %cst_59 {dimension_numbers = #tpu.dot_dimension_numbers<[1], [0], [0], [1], [0, 0, 1, 1], [], []>} : vector<64x128xbf16>, vector<128x128xbf16>, vector<64x128xf32> -> vector<64x128xf32>
    %195 = arith.truncf %194 : vector<64x128xf32> to vector<64x128xbf16>
    %cst_60 = arith.constant dense<0.000000e+00> : vector<64x128xf32>
    %196 = tpu.matmul %195, %1, %cst_60 {dimension_numbers = #tpu.dot_dimension_numbers<[1], [0], [0], [1], [0, 0, 1, 1], [], []>} : vector<64x128xbf16>, vector<128x128xbf16>, vector<64x128xf32> -> vector<64x128xf32>
    %cst_61 = arith.constant 2.000000e+00 : f32
    %197 = vector.broadcast %cst_61 : f32 to vector<64x128xf32>
    %198 = arith.mulf %197, %196 : vector<64x128xf32>
    %199 = arith.subf %198, %192 : vector<64x128xf32>
    %200 = arith.truncf %194 : vector<64x128xf32> to vector<64x128xbf16>
    %cst_62 = arith.constant dense<0.000000e+00> : vector<64x128xf32>
    %201 = tpu.matmul %200, %3, %cst_62 {dimension_numbers = #tpu.dot_dimension_numbers<[1], [0], [0], [1], [0, 0, 1, 1], [], []>} : vector<64x128xbf16>, vector<128x128xbf16>, vector<64x128xf32> -> vector<64x128xf32>
    %202 = arith.truncf %201 : vector<64x128xf32> to vector<64x128xbf16>
    %cst_63 = arith.constant dense<0.000000e+00> : vector<64x128xf32>
    %203 = tpu.matmul %202, %3, %cst_63 {dimension_numbers = #tpu.dot_dimension_numbers<[1], [0], [0], [1], [0, 0, 1, 1], [], []>} : vector<64x128xbf16>, vector<128x128xbf16>, vector<64x128xf32> -> vector<64x128xf32>
    %cst_64 = arith.constant 2.000000e+00 : f32
    %204 = vector.broadcast %cst_64 : f32 to vector<64x128xf32>
    %205 = arith.mulf %204, %203 : vector<64x128xf32>
    %206 = arith.subf %205, %194 : vector<64x128xf32>
    %207 = vector.extract_strided_slice %192 {offsets = [0, 0], sizes = [32, 128], strides = [1, 1]} : vector<64x128xf32> to vector<32x128xf32>
    %208 = vector.extract_strided_slice %194 {offsets = [0, 0], sizes = [32, 128], strides = [1, 1]} : vector<64x128xf32> to vector<32x128xf32>
    %209 = vector.extract_strided_slice %199 {offsets = [0, 0], sizes = [32, 128], strides = [1, 1]} : vector<64x128xf32> to vector<32x128xf32>
    %210 = vector.extract_strided_slice %201 {offsets = [0, 0], sizes = [32, 128], strides = [1, 1]} : vector<64x128xf32> to vector<32x128xf32>
    %211 = vector.extract_strided_slice %206 {offsets = [0, 0], sizes = [32, 128], strides = [1, 1]} : vector<64x128xf32> to vector<32x128xf32>
    %212 = tpu.concatenate %207, %208, %209, %210, %211 in 0 : vector<32x128xf32>, vector<32x128xf32>, vector<32x128xf32>, vector<32x128xf32>, vector<32x128xf32> -> vector<160x128xf32>
    %213 = arith.truncf %212 : vector<160x128xf32> to vector<160x128xbf16>
    %cst_65 = arith.constant dense<0.000000e+00> : vector<32x128xf32>
    %214 = tpu.matmul %149, %213, %cst_65 {dimension_numbers = #tpu.dot_dimension_numbers<[1], [0], [0], [1], [0, 0, 1, 1], [], []>} : vector<32x160xbf16>, vector<160x128xbf16>, vector<32x128xf32> -> vector<32x128xf32>
    %215 = vector.extract_strided_slice %192 {offsets = [32, 0], sizes = [32, 128], strides = [1, 1]} : vector<64x128xf32> to vector<32x128xf32>
    %216 = vector.extract_strided_slice %194 {offsets = [32, 0], sizes = [32, 128], strides = [1, 1]} : vector<64x128xf32> to vector<32x128xf32>
    %217 = vector.extract_strided_slice %199 {offsets = [32, 0], sizes = [32, 128], strides = [1, 1]} : vector<64x128xf32> to vector<32x128xf32>
    %218 = vector.extract_strided_slice %201 {offsets = [32, 0], sizes = [32, 128], strides = [1, 1]} : vector<64x128xf32> to vector<32x128xf32>
    %219 = vector.extract_strided_slice %206 {offsets = [32, 0], sizes = [32, 128], strides = [1, 1]} : vector<64x128xf32> to vector<32x128xf32>
    %220 = tpu.concatenate %215, %216, %217, %218, %219 in 0 : vector<32x128xf32>, vector<32x128xf32>, vector<32x128xf32>, vector<32x128xf32>, vector<32x128xf32> -> vector<160x128xf32>
    %221 = arith.truncf %220 : vector<160x128xf32> to vector<160x128xbf16>
    %cst_66 = arith.constant dense<0.000000e+00> : vector<32x128xf32>
    %222 = tpu.matmul %149, %221, %cst_66 {dimension_numbers = #tpu.dot_dimension_numbers<[1], [0], [0], [1], [0, 0, 1, 1], [], []>} : vector<32x160xbf16>, vector<160x128xbf16>, vector<32x128xf32> -> vector<32x128xf32>
    %223 = tpu.concatenate %214, %222 in 0 : vector<32x128xf32>, vector<32x128xf32> -> vector<64x128xf32>
    %224 = arith.addf %190, %223 : vector<64x128xf32>
    %225 = math.tanh %224 : vector<64x128xf32>
    %226 = arith.mulf %189, %191 : vector<64x128xf32>
    %cst_67 = arith.constant 1.000000e+00 : f32
    %227 = vector.broadcast %cst_67 : f32 to vector<64x128xf32>
    %228 = arith.subf %227, %189 : vector<64x128xf32>
    %229 = arith.mulf %228, %225 : vector<64x128xf32>
    %230 = arith.addf %226, %229 : vector<64x128xf32>
    %231 = vector.shape_cast %230 : vector<64x128xf32> to vector<2x32x128xf32>
    %c1_68 = arith.constant 1 : index
    %c0_69 = arith.constant 0 : index
    %c0_70 = arith.constant 0 : index
    %c0_71 = arith.constant 0 : index
    %232 = vector.load %arg9[%c1_68, %c0_69, %c0_70, %c0_71] : memref<2x2x32x128xf32, #tpu.memory_space<vmem>>, vector<1x2x32x128xf32>
    %233 = vector.shape_cast %232 : vector<1x2x32x128xf32> to vector<2x32x128xf32>
    %234 = vector.shape_cast %231 : vector<2x32x128xf32> to vector<1x2x32x128xf32>
    tpu.vector_store %arg9[%c1_68, %c0_69, %c0_70, %c0_71], %234 {strides = array<i32>} : memref<2x2x32x128xf32, #tpu.memory_space<vmem>>, vector<1x2x32x128xf32>,
    return
  }
}

</mosaic_0001>

<llo_original>
// kernel: dcgru_model_forward.1
$region0: #{dcgru_model_forward.1}
  #allocation0 [shape = 'u32[]', space=smem, size = 0x4, offset = 0x4, fixed_abs, tag = 'smem constant byte address 0x4 - core index']
  #allocation1 [shape = 'u32[144,128]{1,0:T(1,128)}', space=vmem, size = 0x12000, scoped, tag = 'internal scratch']
  %s0 = inlined_call_operand.vmem [shape: f32[2,8,128], index: 0, kind: input, shape index: {}]
  %s1 = inlined_call_operand.vmem [shape: f32[2,2,32,128], index: 1, kind: input, shape index: {}]
  %s2 = inlined_call_operand.vmem [shape: bf16[2,128,128], index: 2, kind: input, shape index: {}]
  %s3 = inlined_call_operand.vmem [shape: bf16[96,200], index: 3, kind: input, shape index: {}]
  %s4 = inlined_call_operand.vmem [shape: f32[96,1], index: 4, kind: input, shape index: {}]
  %s5 = inlined_call_operand.vmem [shape: bf16[32,160], index: 5, kind: input, shape index: {}]
  %s6 = inlined_call_operand.vmem [shape: bf16[96,320], index: 6, kind: input, shape index: {}]
  %s7 = inlined_call_operand.vmem [shape: f32[96,1], index: 7, kind: input, shape index: {}]
  %s8 = inlined_call_operand.vmem [shape: bf16[32,160], index: 8, kind: input, shape index: {}]
  %s9 = inlined_call_operand.vmem [shape: f32[2,2,32,128], index: 9, kind: output, shape index: {}]
  %s10 = sld [smem:[#allocation0]]
  $region46: #{dcgru_model_forward.1} parent=0
    _
  %s12 = ssub.s32 1, %s10
  %s13 = scalar_select 0, %s12, %s10
  // Predicated region
  $region2: #{dcgru_model_forward.1} parent=0 // pred_check
    _
  $region3: #{dcgru_model_forward.1} parent=0 // pred_check_branch
    %15 = sbr.rel (0) target = $region5
  $region4: #{dcgru_model_forward.1} parent=0 // pred_region
    _
  $region5: #{dcgru_model_forward.1} parent=0 // pred_fallthru
    _
  // Predicated region
  $region6: #{dcgru_model_forward.1} parent=0 // pred_check
    _
  $region7: #{dcgru_model_forward.1} parent=0 // pred_check_branch
    %17 = sbr.rel (0) target = $region9
  $region8: #{dcgru_model_forward.1} parent=0 // pred_region
    _
  $region9: #{dcgru_model_forward.1} parent=0 // pred_fallthru
    _
  // Predicated region
  $region10: #{dcgru_model_forward.1} parent=0 // pred_check
    _
  $region11: #{dcgru_model_forward.1} parent=0 // pred_check_branch
    %19 = sbr.rel (0) target = $region13
  $region12: #{dcgru_model_forward.1} parent=0 // pred_region
    _
  $region13: #{dcgru_model_forward.1} parent=0 // pred_fallthru
    _
  // Predicated region
  $region14: #{dcgru_model_forward.1} parent=0 // pred_check
    _
  $region15: #{dcgru_model_forward.1} parent=0 // pred_check_branch
    %21 = sbr.rel (0) target = $region17
  $region16: #{dcgru_model_forward.1} parent=0 // pred_region
    _
  $region17: #{dcgru_model_forward.1} parent=0 // pred_fallthru
    _
  // Predicated region
  $region18: #{dcgru_model_forward.1} parent=0 // pred_check
    _
  $region19: #{dcgru_model_forward.1} parent=0 // pred_check_branch
    %23 = sbr.rel (0) target = $region21
  $region20: #{dcgru_model_forward.1} parent=0 // pred_region
    _
  $region21: #{dcgru_model_forward.1} parent=0 // pred_fallthru
    _
  // Predicated region
  $region22: #{dcgru_model_forward.1} parent=0 // pred_check
    _
  $region23: #{dcgru_model_forward.1} parent=0 // pred_check_branch
    %25 = sbr.rel (0) target = $region25
  $region24: #{dcgru_model_forward.1} parent=0 // pred_region
    _
  $region25: #{dcgru_model_forward.1} parent=0 // pred_fallthru
    _
  // Predicated region
  $region26: #{dcgru_model_forward.1} parent=0 // pred_check
    _
  $region27: #{dcgru_model_forward.1} parent=0 // pred_check_branch
    %27 = sbr.rel (0) target = $region29
  $region28: #{dcgru_model_forward.1} parent=0 // pred_region
    _
  $region29: #{dcgru_model_forward.1} parent=0 // pred_fallthru
    _
  // Predicated region
  $region30: #{dcgru_model_forward.1} parent=0 // pred_check
    _
  $region31: #{dcgru_model_forward.1} parent=0 // pred_check_branch
    %29 = sbr.rel (0) target = $region33
  $region32: #{dcgru_model_forward.1} parent=0 // pred_region
    _
  $region33: #{dcgru_model_forward.1} parent=0 // pred_fallthru
    _
  // Predicated region
  $region34: #{dcgru_model_forward.1} parent=0 // pred_check
    _
  $region35: #{dcgru_model_forward.1} parent=0 // pred_check_branch
    %31 = sbr.rel (0) target = $region37
  $region36: #{dcgru_model_forward.1} parent=0 // pred_region
    _
  $region37: #{dcgru_model_forward.1} parent=0 // pred_fallthru
    _
  %v33 = vld [vmem:[%s2] sm:$0xf]
  %v34 = vld [vmem:[%s2 + $0x4] sm:$0xf]
  %v35 = vld [vmem:[%s2 + $0x8] sm:$0xf]
  %v36 = vld [vmem:[%s2 + $0xc] sm:$0xf]
  %v37 = vld [vmem:[%s2 + $0x10] sm:$0xf]
  %v38 = vld [vmem:[%s2 + $0x14] sm:$0xf]
  %v39 = vld [vmem:[%s2 + $0x18] sm:$0xf]
  %v40 = vld [vmem:[%s2 + $0x1c] sm:$0xf]
  %v41 = vld [vmem:[%s2 + $0x20] sm:$0xf]
  %v42 = vld [vmem:[%s2 + $0x24] sm:$0xf]
  %v43 = vld [vmem:[%s2 + $0x28] sm:$0xf]
  %v44 = vld [vmem:[%s2 + $0x2c] sm:$0xf]
  %v45 = vld [vmem:[%s2 + $0x30] sm:$0xf]
  %v46 = vld [vmem:[%s2 + $0x34] sm:$0xf]
  %v47 = vld [vmem:[%s2 + $0x38] sm:$0xf]
  %v48 = vld [vmem:[%s2 + $0x3c] sm:$0xf]
  %s49 = scalar_lea.vmem %s2, 64
  %v50 = vld [vmem:[%s49] sm:$0xf]
  %v51 = vld [vmem:[%s49 + $0x4] sm:$0xf]
  %v52 = vld [vmem:[%s49 + $0x8] sm:$0xf]
  %v53 = vld [vmem:[%s49 + $0xc] sm:$0xf]
  %v54 = vld [vmem:[%s49 + $0x10] sm:$0xf]
  %v55 = vld [vmem:[%s49 + $0x14] sm:$0xf]
  %v56 = vld [vmem:[%s49 + $0x18] sm:$0xf]
  %v57 = vld [vmem:[%s49 + $0x1c] sm:$0xf]
  %v58 = vld [vmem:[%s49 + $0x20] sm:$0xf]
  %v59 = vld [vmem:[%s49 + $0x24] sm:$0xf]
  %v60 = vld [vmem:[%s49 + $0x28] sm:$0xf]
  %v61 = vld [vmem:[%s49 + $0x2c] sm:$0xf]
  %v62 = vld [vmem:[%s49 + $0x30] sm:$0xf]
  %v63 = vld [vmem:[%s49 + $0x34] sm:$0xf]
  %v64 = vld [vmem:[%s49 + $0x38] sm:$0xf]
  %v65 = vld [vmem:[%s49 + $0x3c] sm:$0xf]
  %v66 = vld [vmem:[%s0] sm:$0xff]
  %v67 = vld [vmem:[%s0 + $0x8] sm:$0xff]
  %v68 = vld [vmem:[%s1] sm:$0xff]
  %v69 = vld [vmem:[%s1 + $0x8] sm:$0xff]
  %v70 = vld [vmem:[%s1 + $0x10] sm:$0xff]
  %v71 = vld [vmem:[%s1 + $0x18] sm:$0xff]
  %v72 = vld [vmem:[%s1 + $0x20] sm:$0xff]
  %v73 = vld [vmem:[%s1 + $0x28] sm:$0xff]
  %v74 = vld [vmem:[%s1 + $0x30] sm:$0xff]
  %v75 = vld [vmem:[%s1 + $0x38] sm:$0xff]
  %v76 = vpack.c.bf16 %v68, %v66
  %v77 = vpack.c.bf16 %v70, %v69
  %v78 = vpack.c.bf16 %v67, %v71
  %v79 = vpack.c.bf16 %v73, %v72
  %v80 = vpack.c.bf16 %v75, %v74
  %v97 = vunpack.c.l.b16 %v33
  %v98 = vunpack.c.l.b16 %v34
  %v99 = vunpack.c.l.b16 %v35
  %v100 = vunpack.c.l.b16 %v36
  %v101 = vunpack.c.l.b16 %v37
  %v102 = vunpack.c.l.b16 %v38
  %v103 = vunpack.c.l.b16 %v39
  %v104 = vunpack.c.l.b16 %v40
  %v105 = vunpack.c.l.b16 %v41
  %v106 = vunpack.c.l.b16 %v42
  %v107 = vunpack.c.l.b16 %v43
  %v108 = vunpack.c.l.b16 %v44
  %v109 = vunpack.c.l.b16 %v45
  %v110 = vunpack.c.l.b16 %v46
  %v111 = vunpack.c.l.b16 %v47
  %v112 = vunpack.c.l.b16 %v48
  %v113 = vpack.c.b16 %v98, %v97
  %v114 = vpack.c.b16 %v100, %v99
  %v115 = vpack.c.b16 %v102, %v101
  %v116 = vpack.c.b16 %v104, %v103
  %v117 = vpack.c.b16 %v106, %v105
  %v118 = vpack.c.b16 %v108, %v107
  %v119 = vpack.c.b16 %v110, %v109
  %v120 = vpack.c.b16 %v112, %v111
  %129 = vmatprep.subr.bf16.mxu0 0
  %130 = vmatpush1.bf16.msra.mxu0 %v113
  %131 = vmatprep.subr.bf16.mxu0 0
  %132 = vmatpush1.bf16.msra.mxu0 %v114
  %133 = vmatprep.subr.bf16.mxu0 0
  %134 = vmatpush1.bf16.msra.mxu0 %v115
  %135 = vmatprep.subr.bf16.mxu0 0
  %136 = vmatpush1.bf16.msra.mxu0 %v116
  %137 = vmatprep.subr.bf16.mxu0 0
  %138 = vmatpush1.bf16.msra.mxu0 %v117
  %139 = vmatprep.subr.bf16.mxu0 0
  %140 = vmatpush1.bf16.msra.mxu0 %v118
  %141 = vmatprep.subr.bf16.mxu0 0
  %142 = vmatpush1.bf16.msra.mxu0 %v119
  %143 = vmatprep.subr.bf16.mxu0 0
  %144 = vmatpush1.bf16.msra.mxu0 %v120
  %145 = vmatprep.subr.bf16.mxu0 0
  %146 = vmatpush1.bf16.msra.mxu0 0
  %147 = vmatprep.subr.bf16.mxu0 0
  %148 = vmatpush1.bf16.msra.mxu0 0
  %149 = vmatprep.subr.bf16.mxu0 0
  %150 = vmatpush1.bf16.msra.mxu0 0
  %151 = vmatprep.subr.bf16.mxu0 0
  %152 = vmatpush1.bf16.msra.mxu0 0
  %153 = vmatprep.subr.bf16.mxu0 0
  %154 = vmatpush1.bf16.msra.mxu0 0
  %155 = vmatprep.subr.bf16.mxu0 0
  %156 = vmatpush1.bf16.msra.mxu0 0
  %157 = vmatprep.subr.bf16.mxu0 0
  %158 = vmatpush1.bf16.msra.mxu0 0
  %159 = vmatprep.subr.bf16.mxu0 0
  %160 = vmatpush1.bf16.msra.mxu0 0
  %161 = vmatprep.mubr.bf16.mxu0 0
  %162 = vmatmul.mubr.bf16.gmra.mrb[0].mxu0 %v76
  %v163 = vpop.f32.mrb[0].mxu0
  %v164 = vadd.f32 0.0, %v163
  %v165 = vpop.f32.mrb[0].mxu0
  %v166 = vpop.f32.mrb[0].mxu0
  %v167 = vadd.f32 0.0, %v166
  %v168 = vpop.f32.mrb[0].mxu0
  %169 = vmatprep.mubr.bf16.mxu0 0
  %170 = vmatmul.mubr.bf16.gmra.mrb[0].mxu0 %v77
  %v171 = vpop.f32.mrb[0].mxu0
  %v172 = vadd.f32 0.0, %v171
  %v173 = vpop.f32.mrb[0].mxu0
  %v174 = vpop.f32.mrb[0].mxu0
  %v175 = vadd.f32 0.0, %v174
  %v176 = vpop.f32.mrb[0].mxu0
  %177 = vmatprep.mubr.bf16.mxu0 0
  %178 = vmatmul.mubr.bf16.gmra.mrb[0].mxu0 %v78
  %v179 = vpop.f32.mrb[0].mxu0
  %v180 = vadd.f32 0.0, %v179
  %v181 = vpop.f32.mrb[0].mxu0
  %v182 = vpop.f32.mrb[0].mxu0
  %v183 = vadd.f32 0.0, %v182
  %v184 = vpop.f32.mrb[0].mxu0
  %185 = vmatprep.mubr.bf16.mxu0 0
  %186 = vmatmul.mubr.bf16.gmra.mrb[0].mxu0 %v79
  %v187 = vpop.f32.mrb[0].mxu0
  %v188 = vadd.f32 0.0, %v187
  %v189 = vpop.f32.mrb[0].mxu0
  %v190 = vpop.f32.mrb[0].mxu0
  %v191 = vadd.f32 0.0, %v190
  %v192 = vpop.f32.mrb[0].mxu0
  %193 = vmatprep.mubr.bf16.mxu0 0
  %194 = vmatmul.mubr.bf16.gmra.mrb[0].mxu0 %v80
  %v195 = vpop.f32.mrb[0].mxu0
  %v196 = vadd.f32 0.0, %v195
  %v197 = vpop.f32.mrb[0].mxu0
  %v198 = vpop.f32.mrb[0].mxu0
  %v199 = vadd.f32 0.0, %v198
  %v200 = vpop.f32.mrb[0].mxu0
  %201 = vdwg.mxu0
  %v202 = vpack.c.bf16 %v167, %v164
  %v203 = vpack.c.bf16 %v175, %v172
  %v204 = vpack.c.bf16 %v183, %v180
  %v205 = vpack.c.bf16 %v191, %v188
  %v206 = vpack.c.bf16 %v199, %v196
  %207 = vmatprep.subr.bf16.mxu0 0
  %208 = vmatpush1.bf16.msra.mxu0 %v113
  %209 = vmatprep.subr.bf16.mxu0 0
  %210 = vmatpush1.bf16.msra.mxu0 %v114
  %211 = vmatprep.subr.bf16.mxu0 0
  %212 = vmatpush1.bf16.msra.mxu0 %v115
  %213 = vmatprep.subr.bf16.mxu0 0
  %214 = vmatpush1.bf16.msra.mxu0 %v116
  %215 = vmatprep.subr.bf16.mxu0 0
  %216 = vmatpush1.bf16.msra.mxu0 %v117
  %217 = vmatprep.subr.bf16.mxu0 0
  %218 = vmatpush1.bf16.msra.mxu0 %v118
  %219 = vmatprep.subr.bf16.mxu0 0
  %220 = vmatpush1.bf16.msra.mxu0 %v119
  %221 = vmatprep.subr.bf16.mxu0 0
  %222 = vmatpush1.bf16.msra.mxu0 %v120
  %223 = vmatprep.subr.bf16.mxu0 0
  %224 = vmatpush1.bf16.msra.mxu0 0
  %225 = vmatprep.subr.bf16.mxu0 0
  %226 = vmatpush1.bf16.msra.mxu0 0
  %227 = vmatprep.subr.bf16.mxu0 0
  %228 = vmatpush1.bf16.msra.mxu0 0
  %229 = vmatprep.subr.bf16.mxu0 0
  %230 = vmatpush1.bf16.msra.mxu0 0
  %231 = vmatprep.subr.bf16.mxu0 0
  %232 = vmatpush1.bf16.msra.mxu0 0
  %233 = vmatprep.subr.bf16.mxu0 0
  %234 = vmatpush1.bf16.msra.mxu0 0
  %235 = vmatprep.subr.bf16.mxu0 0
  %236 = vmatpush1.bf16.msra.mxu0 0
  %237 = vmatprep.subr.bf16.mxu0 0
  %238 = vmatpush1.bf16.msra.mxu0 0
  %239 = vmatprep.mubr.bf16.mxu0 0
  %240 = vmatmul.mubr.bf16.gmra.mrb[0].mxu0 %v202
  %v241 = vpop.f32.mrb[0].mxu0
  %v242 = vadd.f32 0.0, %v241
  %v243 = vpop.f32.mrb[0].mxu0
  %v244 = vpop.f32.mrb[0].mxu0
  %v245 = vadd.f32 0.0, %v244
  %v246 = vpop.f32.mrb[0].mxu0
  %247 = vmatprep.mubr.bf16.mxu0 0
  %248 = vmatmul.mubr.bf16.gmra.mrb[0].mxu0 %v203
  %v249 = vpop.f32.mrb[0].mxu0
  %v250 = vadd.f32 0.0, %v249
  %v251 = vpop.f32.mrb[0].mxu0
  %v252 = vpop.f32.mrb[0].mxu0
  %v253 = vadd.f32 0.0, %v252
  %v254 = vpop.f32.mrb[0].mxu0
  %255 = vmatprep.mubr.bf16.mxu0 0
  %256 = vmatmul.mubr.bf16.gmra.mrb[0].mxu0 %v204
  %v257 = vpop.f32.mrb[0].mxu0
  %v258 = vadd.f32 0.0, %v257
  %v259 = vpop.f32.mrb[0].mxu0
  %v260 = vpop.f32.mrb[0].mxu0
  %v261 = vadd.f32 0.0, %v260
  %v262 = vpop.f32.mrb[0].mxu0
  %263 = vmatprep.mubr.bf16.mxu0 0
  %264 = vmatmul.mubr.bf16.gmra.mrb[0].mxu0 %v205
  %v265 = vpop.f32.mrb[0].mxu0
  %v266 = vadd.f32 0.0, %v265
  %v267 = vpop.f32.mrb[0].mxu0
  %v268 = vpop.f32.mrb[0].mxu0
  %v269 = vadd.f32 0.0, %v268
  %v270 = vpop.f32.mrb[0].mxu0
  %271 = vmatprep.mubr.bf16.mxu0 0
  %272 = vmatmul.mubr.bf16.gmra.mrb[0].mxu0 %v206
  %v273 = vpop.f32.mrb[0].mxu0
  %v274 = vadd.f32 0.0, %v273
  %v275 = vpop.f32.mrb[0].mxu0
  %v276 = vpop.f32.mrb[0].mxu0
  %v277 = vadd.f32 0.0, %v276
  %v278 = vpop.f32.mrb[0].mxu0
  %279 = vdwg.mxu0
  %v280 = vmul.f32 %v242, 2.0
  %v281 = vmul.f32 %v245, 2.0
  %v282 = vmul.f32 %v250, 2.0
  %v283 = vmul.f32 %v253, 2.0
  %v284 = vmul.f32 %v258, 2.0
  %v285 = vmul.f32 %v261, 2.0
  %v286 = vmul.f32 %v266, 2.0
  %v287 = vmul.f32 %v269, 2.0
  %v288 = vmul.f32 %v274, 2.0
  %v289 = vmul.f32 %v277, 2.0
  %v290 = vsub.f32 %v280, %v66
  %v291 = vsub.f32 %v281, %v68
  %v292 = vsub.f32 %v282, %v69
  %v293 = vsub.f32 %v283, %v70
  %v294 = vsub.f32 %v284, %v71
  %v295 = vsub.f32 %v285, %v67
  %v296 = vsub.f32 %v286, %v72
  %v297 = vsub.f32 %v287, %v73
  %v298 = vsub.f32 %v288, %v74
  %v299 = vsub.f32 %v289, %v75
  %v316 = vunpack.c.l.b16 %v50
  %v317 = vunpack.c.l.b16 %v51
  %v318 = vunpack.c.l.b16 %v52
  %v319 = vunpack.c.l.b16 %v53
  %v320 = vunpack.c.l.b16 %v54
  %v321 = vunpack.c.l.b16 %v55
  %v322 = vunpack.c.l.b16 %v56
  %v323 = vunpack.c.l.b16 %v57
  %v324 = vunpack.c.l.b16 %v58
  %v325 = vunpack.c.l.b16 %v59
  %v326 = vunpack.c.l.b16 %v60
  %v327 = vunpack.c.l.b16 %v61
  %v328 = vunpack.c.l.b16 %v62
  %v329 = vunpack.c.l.b16 %v63
  %v330 = vunpack.c.l.b16 %v64
  %v331 = vunpack.c.l.b16 %v65
  %v332 = vpack.c.b16 %v317, %v316
  %v333 = vpack.c.b16 %v319, %v318
  %v334 = vpack.c.b16 %v321, %v320
  %v335 = vpack.c.b16 %v323, %v322
  %v336 = vpack.c.b16 %v325, %v324
  %v337 = vpack.c.b16 %v327, %v326
  %v338 = vpack.c.b16 %v329, %v328
  %v339 = vpack.c.b16 %v331, %v330
  %348 = vmatprep.subr.bf16.mxu0 0
  %349 = vmatpush1.bf16.msra.mxu0 %v332
  %350 = vmatprep.subr.bf16.mxu0 0
  %351 = vmatpush1.bf16.msra.mxu0 %v333
  %352 = vmatprep.subr.bf16.mxu0 0
  %353 = vmatpush1.bf16.msra.mxu0 %v334
  %354 = vmatprep.subr.bf16.mxu0 0
  %355 = vmatpush1.bf16.msra.mxu0 %v335
  %356 = vmatprep.subr.bf16.mxu0 0
  %357 = vmatpush1.bf16.msra.mxu0 %v336
  %358 = vmatprep.subr.bf16.mxu0 0
  %359 = vmatpush1.bf16.msra.mxu0 %v337
  %360 = vmatprep.subr.bf16.mxu0 0
  %361 = vmatpush1.bf16.msra.mxu0 %v338
  %362 = vmatprep.subr.bf16.mxu0 0
  %363 = vmatpush1.bf16.msra.mxu0 %v339
  %364 = vmatprep.subr.bf16.mxu0 0
  %365 = vmatpush1.bf16.msra.mxu0 0
  %366 = vmatprep.subr.bf16.mxu0 0
  %367 = vmatpush1.bf16.msra.mxu0 0
  %368 = vmatprep.subr.bf16.mxu0 0
  %369 = vmatpush1.bf16.msra.mxu0 0
  %370 = vmatprep.subr.bf16.mxu0 0
  %371 = vmatpush1.bf16.msra.mxu0 0
  %372 = vmatprep.subr.bf16.mxu0 0
  %373 = vmatpush1.bf16.msra.mxu0 0
  %374 = vmatprep.subr.bf16.mxu0 0
  %375 = vmatpush1.bf16.msra.mxu0 0
  %376 = vmatprep.subr.bf16.mxu0 0
  %377 = vmatpush1.bf16.msra.mxu0 0
  %378 = vmatprep.subr.bf16.mxu0 0
  %379 = vmatpush1.bf16.msra.mxu0 0
  %380 = vmatprep.mubr.bf16.mxu0 0
  %381 = vmatmul.mubr.bf16.gmra.mrb[0].mxu0 %v202
  %v382 = vpop.f32.mrb[0].mxu0
  %v383 = vadd.f32 0.0, %v382
  %v384 = vpop.f32.mrb[0].mxu0
  %v385 = vpop.f32.mrb[0].mxu0
  %v386 = vadd.f32 0.0, %v385
  %v387 = vpop.f32.mrb[0].mxu0
  %388 = vmatprep.mubr.bf16.mxu0 0
  %389 = vmatmul.mubr.bf16.gmra.mrb[0].mxu0 %v203
  %v390 = vpop.f32.mrb[0].mxu0
  %v391 = vadd.f32 0.0, %v390
  %v392 = vpop.f32.mrb[0].mxu0
  %v393 = vpop.f32.mrb[0].mxu0
  %v394 = vadd.f32 0.0, %v393
  %v395 = vpop.f32.mrb[0].mxu0
  %396 = vmatprep.mubr.bf16.mxu0 0
  %397 = vmatmul.mubr.bf16.gmra.mrb[0].mxu0 %v204
  %v398 = vpop.f32.mrb[0].mxu0
  %v399 = vadd.f32 0.0, %v398
  %v400 = vpop.f32.mrb[0].mxu0
  %v401 = vpop.f32.mrb[0].mxu0
  %v402 = vadd.f32 0.0, %v401
  %v403 = vpop.f32.mrb[0].mxu0
  %404 = vmatprep.mubr.bf16.mxu0 0
  %405 = vmatmul.mubr.bf16.gmra.mrb[0].mxu0 %v205
  %v406 = vpop.f32.mrb[0].mxu0
  %v407 = vadd.f32 0.0, %v406
  %v408 = vpop.f32.mrb[0].mxu0
  %v409 = vpop.f32.mrb[0].mxu0
  %v410 = vadd.f32 0.0, %v409
  %v411 = vpop.f32.mrb[0].mxu0
  %412 = vmatprep.mubr.bf16.mxu0 0
  %413 = vmatmul.mubr.bf16.gmra.mrb[0].mxu0 %v206
  %v414 = vpop.f32.mrb[0].mxu0
  %v415 = vadd.f32 0.0, %v414
  %v416 = vpop.f32.mrb[0].mxu0
  %v417 = vpop.f32.mrb[0].mxu0
  %v418 = vadd.f32 0.0, %v417
  %v419 = vpop.f32.mrb[0].mxu0
  %420 = vdwg.mxu0
  %v421 = vpack.c.bf16 %v386, %v383
  %v422 = vpack.c.bf16 %v394, %v391
  %v423 = vpack.c.bf16 %v402, %v399
  %v424 = vpack.c.bf16 %v410, %v407
  %v425 = vpack.c.bf16 %v418, %v415
  %426 = vmatprep.subr.bf16.mxu0 0
  %427 = vmatpush1.bf16.msra.mxu0 %v332
  %428 = vmatprep.subr.bf16.mxu0 0
  %429 = vmatpush1.bf16.msra.mxu0 %v333
  %430 = vmatprep.subr.bf16.mxu0 0
  %431 = vmatpush1.bf16.msra.mxu0 %v334
  %432 = vmatprep.subr.bf16.mxu0 0
  %433 = vmatpush1.bf16.msra.mxu0 %v335
  %434 = vmatprep.subr.bf16.mxu0 0
  %435 = vmatpush1.bf16.msra.mxu0 %v336
  %436 = vmatprep.subr.bf16.mxu0 0
  %437 = vmatpush1.bf16.msra.mxu0 %v337
  %438 = vmatprep.subr.bf16.mxu0 0
  %439 = vmatpush1.bf16.msra.mxu0 %v338
  %440 = vmatprep.subr.bf16.mxu0 0
  %441 = vmatpush1.bf16.msra.mxu0 %v339
  %442 = vmatprep.subr.bf16.mxu0 0
  %443 = vmatpush1.bf16.msra.mxu0 0
  %444 = vmatprep.subr.bf16.mxu0 0
  %445 = vmatpush1.bf16.msra.mxu0 0
  %446 = vmatprep.subr.bf16.mxu0 0
  %447 = vmatpush1.bf16.msra.mxu0 0
  %448 = vmatprep.subr.bf16.mxu0 0
  %449 = vmatpush1.bf16.msra.mxu0 0
  %450 = vmatprep.subr.bf16.mxu0 0
  %451 = vmatpush1.bf16.msra.mxu0 0
  %452 = vmatprep.subr.bf16.mxu0 0
  %453 = vmatpush1.bf16.msra.mxu0 0
  %454 = vmatprep.subr.bf16.mxu0 0
  %455 = vmatpush1.bf16.msra.mxu0 0
  %456 = vmatprep.subr.bf16.mxu0 0
  %457 = vmatpush1.bf16.msra.mxu0 0
  %458 = vmatprep.mubr.bf16.mxu0 0
  %459 = vmatmul.mubr.bf16.gmra.mrb[0].mxu0 %v421
  %v460 = vpop.f32.mrb[0].mxu0
  %v461 = vadd.f32 0.0, %v460
  %v462 = vpop.f32.mrb[0].mxu0
  %v463 = vpop.f32.mrb[0].mxu0
  %v464 = vadd.f32 0.0, %v463
  %v465 = vpop.f32.mrb[0].mxu0
  %466 = vmatprep.mubr.bf16.mxu0 0
  %467 = vmatmul.mubr.bf16.gmra.mrb[0].mxu0 %v422
  %v468 = vpop.f32.mrb[0].mxu0
  %v469 = vadd.f32 0.0, %v468
  %v470 = vpop.f32.mrb[0].mxu0
  %v471 = vpop.f32.mrb[0].mxu0
  %v472 = vadd.f32 0.0, %v471
  %v473 = vpop.f32.mrb[0].mxu0
  %474 = vmatprep.mubr.bf16.mxu0 0
  %475 = vmatmul.mubr.bf16.gmra.mrb[0].mxu0 %v423
  %v476 = vpop.f32.mrb[0].mxu0
  %v477 = vadd.f32 0.0, %v476
  %v478 = vpop.f32.mrb[0].mxu0
  %v479 = vpop.f32.mrb[0].mxu0
  %v480 = vadd.f32 0.0, %v479
  %v481 = vpop.f32.mrb[0].mxu0
  %482 = vmatprep.mubr.bf16.mxu0 0
  %483 = vmatmul.mubr.bf16.gmra.mrb[0].mxu0 %v424
  %v484 = vpop.f32.mrb[0].mxu0
  %v485 = vadd.f32 0.0, %v484
  %v486 = vpop.f32.mrb[0].mxu0
  %v487 = vpop.f32.mrb[0].mxu0
  %v488 = vadd.f32 0.0, %v487
  %v489 = vpop.f32.mrb[0].mxu0
  %490 = vmatprep.mubr.bf16.mxu0 0
  %491 = vmatmul.mubr.bf16.gmra.mrb[0].mxu0 %v425
  %v492 = vpop.f32.mrb[0].mxu0
  %v493 = vadd.f32 0.0, %v492
  %v494 = vpop.f32.mrb[0].mxu0
  %v495 = vpop.f32.mrb[0].mxu0
  %v496 = vadd.f32 0.0, %v495
  %v497 = vpop.f32.mrb[0].mxu0
  %498 = vdwg.mxu0
  %v499 = vmul.f32 %v461, 2.0
  %v500 = vmul.f32 %v464, 2.0
  %v501 = vmul.f32 %v469, 2.0
  %v502 = vmul.f32 %v472, 2.0
  %v503 = vmul.f32 %v477, 2.0
  %v504 = vmul.f32 %v480, 2.0
  %v505 = vmul.f32 %v485, 2.0
  %v506 = vmul.f32 %v488, 2.0
  %v507 = vmul.f32 %v493, 2.0
  %v508 = vmul.f32 %v496, 2.0
  %v509 = vsub.f32 %v499, %v164
  %v510 = vsub.f32 %v500, %v167
  %v511 = vsub.f32 %v501, %v172
  %v512 = vsub.f32 %v502, %v175
  %v513 = vsub.f32 %v503, %v180
  %v514 = vsub.f32 %v504, %v183
  %v515 = vsub.f32 %v505, %v188
  %v516 = vsub.f32 %v506, %v191
  %v517 = vsub.f32 %v507, %v196
  %v518 = vsub.f32 %v508, %v199
  %v519 = vld [vmem:[%s3] sm:$0xff]
  %v520 = vld [vmem:[%s3 + $0x8] sm:$0xff]
  %v521 = vld [vmem:[%s3 + $0x10] sm:$0xff]
  %v522 = vld [vmem:[%s3 + $0x18] sm:$0xff]
  %v523 = vld [vmem:[%s3 + $0x20] sm:$0xff]
  %v524 = vld [vmem:[%s3 + $0x28] sm:$0xff]
  %v525 = vld [vmem:[%s3 + $0x30] sm:$0xff]
  %v526 = vld [vmem:[%s3 + $0x38] sm:$0xff]
  %v527 = vld [vmem:[%s3 + $0x40] sm:$0xff]
  %v528 = vld [vmem:[%s3 + $0x48] sm:$0xff]
  %v529 = vld [vmem:[%s3 + $0x50] sm:$0xff]
  %v530 = vld [vmem:[%s3 + $0x58] sm:$0xff]
  %v531 = vld [vmem:[%s4] sm:$0xff]
  %v532 = vld [vmem:[%s4 + $0x8] sm:$0xff]
  %v533 = vld [vmem:[%s4 + $0x10] sm:$0xff]
  %v534 = vld [vmem:[%s4 + $0x18] sm:$0xff]
  %v535 = vld [vmem:[%s4 + $0x20] sm:$0xff]
  %v536 = vld [vmem:[%s4 + $0x28] sm:$0xff]
  %v537 = vld [vmem:[%s4 + $0x30] sm:$0xff]
  %v538 = vld [vmem:[%s4 + $0x38] sm:$0xff]
  %v539 = vld [vmem:[%s4 + $0x40] sm:$0xff]
  %v540 = vld [vmem:[%s4 + $0x48] sm:$0xff]
  %v541 = vld [vmem:[%s4 + $0x50] sm:$0xff]
  %v542 = vld [vmem:[%s4 + $0x58] sm:$0xff]
  %v543 = vld [vmem:[%s5] sm:$0xff]
  %v544 = vld [vmem:[%s5 + $0x8] sm:$0xff]
  %v545 = vld [vmem:[%s5 + $0x10] sm:$0xff]
  %v546 = vld [vmem:[%s5 + $0x18] sm:$0xff]
  %v547 = vpack.c.bf16 %v164, %v71
  %v548 = vpack.c.bf16 %v172, %v167
  %v549 = vpack.c.bf16 %v180, %v175
  %v550 = vpack.c.bf16 %v291, %v290
  %v551 = vpack.c.bf16 %v293, %v292
  %v552 = vpack.c.bf16 %v383, %v294
  %v553 = vpack.c.bf16 %v391, %v386
  %v554 = vpack.c.bf16 %v399, %v394
  %v555 = vpack.c.bf16 %v510, %v509
  %v556 = vpack.c.bf16 %v512, %v511
  %v557 = vpack.c.bf16 %v513, %v513
  %559 = vset.pattern.permute.xlu0 0
  %560 = vperm.xlu0 %559, %v531
  %v561 = vpop.permute.xlu0 %560
  %564 = vset.pattern.permute.xlu0 0
  %565 = vperm.xlu0 %564, %v532
  %v566 = vpop.permute.xlu0 %565
  %569 = vset.pattern.permute.xlu0 0
  %570 = vperm.xlu0 %569, %v533
  %v571 = vpop.permute.xlu0 %570
  %574 = vset.pattern.permute.xlu0 0
  %575 = vperm.xlu0 %574, %v534
  %v576 = vpop.permute.xlu0 %575
  %579 = vset.pattern.permute.xlu0 0
  %580 = vperm.xlu0 %579, %v535
  %v581 = vpop.permute.xlu0 %580
  %584 = vset.pattern.permute.xlu0 0
  %585 = vperm.xlu0 %584, %v536
  %v586 = vpop.permute.xlu0 %585
  %589 = vset.pattern.permute.xlu0 0
  %590 = vperm.xlu0 %589, %v537
  %v591 = vpop.permute.xlu0 %590
  %594 = vset.pattern.permute.xlu0 0
  %595 = vperm.xlu0 %594, %v538
  %v596 = vpop.permute.xlu0 %595
  %599 = vset.pattern.permute.xlu0 0
  %600 = vperm.xlu0 %599, %v539
  %v601 = vpop.permute.xlu0 %600
  %604 = vset.pattern.permute.xlu0 0
  %605 = vperm.xlu0 %604, %v540
  %v606 = vpop.permute.xlu0 %605
  %609 = vset.pattern.permute.xlu0 0
  %610 = vperm.xlu0 %609, %v541
  %v611 = vpop.permute.xlu0 %610
  %614 = vset.pattern.permute.xlu0 0
  %615 = vperm.xlu0 %614, %v542
  %v616 = vpop.permute.xlu0 %615
  %v630 = vunpack.c.l.b16 %v519
  %v631 = vunpack.c.h.b16 %v519
  %v632 = vunpack.c.l.b16 %v520
  %v633 = vunpack.c.h.b16 %v520
  %v634 = vunpack.c.l.b16 %v521
  %v635 = vunpack.c.h.b16 %v521
  %v636 = vunpack.c.l.b16 %v522
  %v637 = vunpack.c.h.b16 %v522
  %v638 = vunpack.c.l.b16 %v523
  %v639 = vunpack.c.h.b16 %v523
  %v640 = vunpack.c.l.b16 %v524
  %v641 = vunpack.c.h.b16 %v524
  %v642 = vunpack.c.l.b16 %v525
  %v643 = vunpack.c.h.b16 %v525
  %v644 = vunpack.c.l.b16 %v526
  %v645 = vunpack.c.h.b16 %v526
  %v646 = vunpack.c.l.b16 %v527
  %v647 = vunpack.c.h.b16 %v527
  %v648 = vunpack.c.l.b16 %v528
  %v649 = vunpack.c.h.b16 %v528
  %v650 = vunpack.c.l.b16 %v529
  %v651 = vunpack.c.h.b16 %v529
  %v652 = vunpack.c.l.b16 %v530
  %v653 = vunpack.c.h.b16 %v530
  %v654 = vpack.c.b16 %v632, %v630
  %v655 = vpack.c.b16 %v633, %v631
  %v656 = vpack.c.b16 %v636, %v634
  %v657 = vpack.c.b16 %v637, %v635
  %v658 = vpack.c.b16 %v640, %v638
  %v659 = vpack.c.b16 %v641, %v639
  %v660 = vpack.c.b16 %v644, %v642
  %v661 = vpack.c.b16 %v645, %v643
  %v662 = vpack.c.b16 %v648, %v646
  %v663 = vpack.c.b16 %v649, %v647
  %v664 = vpack.c.b16 %v652, %v650
  %v665 = vpack.c.b16 %v653, %v651
  %vm672 = vcmask 588800
  %v674 = vsel %vm672, %v655, 0
  %v677 = vsel %vm672, %v657, 0
  %v680 = vsel %vm672, %v659, 0
  %v683 = vsel %vm672, %v661, 0
  %v686 = vsel %vm672, %v663, 0
  %v689 = vsel %vm672, %v665, 0
  %vm691 = vcmask 1043456
  %v693 = vsel %vm691, %v557, 0
  %695 = vmatprep.subr.bf16.mxu0 0
  %696 = vmatpush1.bf16.msra.mxu0 %v76
  %697 = vmatprep.subr.bf16.mxu0 0
  %698 = vmatpush1.bf16.msra.mxu0 %v77
  %699 = vmatprep.subr.bf16.mxu0 0
  %700 = vmatpush1.bf16.msra.mxu0 %v547
  %701 = vmatprep.subr.bf16.mxu0 0
  %702 = vmatpush1.bf16.msra.mxu0 %v548
  %703 = vmatprep.subr.bf16.mxu0 0
  %704 = vmatpush1.bf16.msra.mxu0 %v549
  %705 = vmatprep.subr.bf16.mxu0 0
  %706 = vmatpush1.bf16.msra.mxu0 %v550
  %707 = vmatprep.subr.bf16.mxu0 0
  %708 = vmatpush1.bf16.msra.mxu0 %v551
  %709 = vmatprep.subr.bf16.mxu0 0
  %710 = vmatpush1.bf16.msra.mxu0 %v552
  %711 = vmatprep.subr.bf16.mxu0 0
  %712 = vmatpush1.bf16.msra.mxu0 %v553
  %713 = vmatprep.subr.bf16.mxu0 0
  %714 = vmatpush1.bf16.msra.mxu0 %v554
  %715 = vmatprep.subr.bf16.mxu0 0
  %716 = vmatpush1.bf16.msra.mxu0 %v555
  %717 = vmatprep.subr.bf16.mxu0 0
  %718 = vmatpush1.bf16.msra.mxu0 %v556
  %719 = vmatprep.subr.bf16.mxu0 0
  %720 = vmatpush1.bf16.msra.mxu0 %v693
  %721 = vmatprep.subr.bf16.mxu0 0
  %722 = vmatpush1.bf16.msra.mxu0 0
  %723 = vmatprep.subr.bf16.mxu0 0
  %724 = vmatpush1.bf16.msra.mxu0 0
  %725 = vmatprep.subr.bf16.mxu0 0
  %726 = vmatpush1.bf16.msra.mxu0 0
  %727 = vmatprep.mubr.bf16.mxu0 %v674
  %728 = vmatmul.mubr.bf16.gmra.mrb[0].mxu0 %v654
  %v729 = vpop.f32.mrb[0].mxu0
  %v730 = vadd.f32 %v561, %v729
  %v731 = vpop.f32.mrb[0].mxu0
  %v732 = vpop.f32.mrb[0].mxu0
  %v733 = vadd.f32 %v566, %v732
  %v734 = vpop.f32.mrb[0].mxu0
  %735 = vmatprep.mubr.bf16.mxu0 %v677
  %736 = vmatmul.mubr.bf16.gmra.mrb[0].mxu0 %v656
  %v737 = vpop.f32.mrb[0].mxu0
  %v738 = vadd.f32 %v571, %v737
  %v739 = vpop.f32.mrb[0].mxu0
  %v740 = vpop.f32.mrb[0].mxu0
  %v741 = vadd.f32 %v576, %v740
  %v742 = vpop.f32.mrb[0].mxu0
  %743 = vmatprep.mubr.bf16.mxu0 %v680
  %744 = vmatmul.mubr.bf16.gmra.mrb[0].mxu0 %v658
  %v745 = vpop.f32.mrb[0].mxu0
  %v746 = vadd.f32 %v581, %v745
  %v747 = vpop.f32.mrb[0].mxu0
  %v748 = vpop.f32.mrb[0].mxu0
  %v749 = vadd.f32 %v586, %v748
  %v750 = vpop.f32.mrb[0].mxu0
  %751 = vmatprep.mubr.bf16.mxu0 %v683
  %752 = vmatmul.mubr.bf16.gmra.mrb[0].mxu0 %v660
  %v753 = vpop.f32.mrb[0].mxu0
  %v754 = vadd.f32 %v591, %v753
  %v755 = vpop.f32.mrb[0].mxu0
  %v756 = vpop.f32.mrb[0].mxu0
  %v757 = vadd.f32 %v596, %v756
  %v758 = vpop.f32.mrb[0].mxu0
  %759 = vmatprep.mubr.bf16.mxu0 %v686
  %760 = vmatmul.mubr.bf16.gmra.mrb[0].mxu0 %v662
  %v761 = vpop.f32.mrb[0].mxu0
  %v762 = vadd.f32 %v601, %v761
  %v763 = vpop.f32.mrb[0].mxu0
  %v764 = vpop.f32.mrb[0].mxu0
  %v765 = vadd.f32 %v606, %v764
  %v766 = vpop.f32.mrb[0].mxu0
  %767 = vmatprep.mubr.bf16.mxu0 %v689
  %768 = vmatmul.mubr.bf16.gmra.mrb[0].mxu0 %v664
  %v769 = vpop.f32.mrb[0].mxu0
  %v770 = vadd.f32 %v611, %v769
  %v771 = vpop.f32.mrb[0].mxu0
  %v772 = vpop.f32.mrb[0].mxu0
  %v773 = vadd.f32 %v616, %v772
  %v774 = vpop.f32.mrb[0].mxu0
  %775 = vdwg.mxu0
  %v776 = vxor.u32 %v730, 2147483648
  %v777 = vxor.u32 %v733, 2147483648
  %v778 = vxor.u32 %v738, 2147483648
  %v779 = vxor.u32 %v741, 2147483648
  %v780 = vxor.u32 %v746, 2147483648
  %v781 = vxor.u32 %v749, 2147483648
  %v782 = vxor.u32 %v754, 2147483648
  %v783 = vxor.u32 %v757, 2147483648
  %v784 = vmul.f32 %v776, 1.442695
  %v785 = vpow.pop %v784
  %v786 = vmul.f32 %v777, 1.442695
  %v787 = vpow.pop %v786
  %v788 = vmul.f32 %v778, 1.442695
  %v789 = vpow.pop %v788
  %v790 = vmul.f32 %v779, 1.442695
  %v791 = vpow.pop %v790
  %v792 = vmul.f32 %v780, 1.442695
  %v793 = vpow.pop %v792
  %v794 = vmul.f32 %v781, 1.442695
  %v795 = vpow.pop %v794
  %v796 = vmul.f32 %v782, 1.442695
  %v797 = vpow.pop %v796
  %v798 = vmul.f32 %v783, 1.442695
  %v799 = vpow.pop %v798
  %v800 = vadd.f32 %v785, 1.0
  %v801 = vadd.f32 %v787, 1.0
  %v802 = vadd.f32 %v789, 1.0
  %v803 = vadd.f32 %v791, 1.0
  %v804 = vadd.f32 %v793, 1.0
  %v805 = vadd.f32 %v795, 1.0
  %v806 = vadd.f32 %v797, 1.0
  %v807 = vadd.f32 %v799, 1.0
  %v808 = vrcp.pop %v800
  %v809 = vmul.f32 1.0, %v808
  %v810 = vrcp.pop %v801
  %v811 = vmul.f32 1.0, %v810
  %v812 = vrcp.pop %v802
  %v813 = vmul.f32 1.0, %v812
  %v814 = vrcp.pop %v803
  %v815 = vmul.f32 1.0, %v814
  %v816 = vrcp.pop %v804
  %v817 = vmul.f32 1.0, %v816
  %v818 = vrcp.pop %v805
  %v819 = vmul.f32 1.0, %v818
  %v820 = vrcp.pop %v806
  %v821 = vmul.f32 1.0, %v820
  %v822 = vrcp.pop %v807
  %v823 = vmul.f32 1.0, %v822
  %v824 = vpack.c.bf16 %v72, %v67
  %v825 = vpack.c.bf16 %v74, %v73
  %v826 = vpack.c.bf16 %v183, %v75
  %v827 = vpack.c.bf16 %v296, %v295
  %v828 = vpack.c.bf16 %v298, %v297
  %v829 = vpack.c.bf16 %v402, %v299
  %v830 = vpack.c.bf16 %v515, %v514
  %v831 = vpack.c.bf16 %v517, %v516
  %v832 = vpack.c.bf16 %v518, %v518
  %v834 = vsel %vm691, %v832, 0
  %836 = vmatprep.subr.bf16.mxu0 0
  %837 = vmatpush1.bf16.msra.mxu0 %v824
  %838 = vmatprep.subr.bf16.mxu0 0
  %839 = vmatpush1.bf16.msra.mxu0 %v825
  %840 = vmatprep.subr.bf16.mxu0 0
  %841 = vmatpush1.bf16.msra.mxu0 %v826
  %842 = vmatprep.subr.bf16.mxu0 0
  %843 = vmatpush1.bf16.msra.mxu0 %v205
  %844 = vmatprep.subr.bf16.mxu0 0
  %845 = vmatpush1.bf16.msra.mxu0 %v206
  %846 = vmatprep.subr.bf16.mxu0 0
  %847 = vmatpush1.bf16.msra.mxu0 %v827
  %848 = vmatprep.subr.bf16.mxu0 0
  %849 = vmatpush1.bf16.msra.mxu0 %v828
  %850 = vmatprep.subr.bf16.mxu0 0
  %851 = vmatpush1.bf16.msra.mxu0 %v829
  %852 = vmatprep.subr.bf16.mxu0 0
  %853 = vmatpush1.bf16.msra.mxu0 %v424
  %854 = vmatprep.subr.bf16.mxu0 0
  %855 = vmatpush1.bf16.msra.mxu0 %v425
  %856 = vmatprep.subr.bf16.mxu0 0
  %857 = vmatpush1.bf16.msra.mxu0 %v830
  %858 = vmatprep.subr.bf16.mxu0 0
  %859 = vmatpush1.bf16.msra.mxu0 %v831
  %860 = vmatprep.subr.bf16.mxu0 0
  %861 = vmatpush1.bf16.msra.mxu0 %v834
  %862 = vmatprep.subr.bf16.mxu0 0
  %863 = vmatpush1.bf16.msra.mxu0 0
  %864 = vmatprep.subr.bf16.mxu0 0
  %865 = vmatpush1.bf16.msra.mxu0 0
  %866 = vmatprep.subr.bf16.mxu0 0
  %867 = vmatpush1.bf16.msra.mxu0 0
  %868 = vmatprep.mubr.bf16.mxu0 %v674
  %869 = vmatmul.mubr.bf16.gmra.mrb[0].mxu0 %v654
  %v870 = vpop.f32.mrb[0].mxu0
  %v871 = vadd.f32 %v561, %v870
  %v872 = vpop.f32.mrb[0].mxu0
  %v873 = vpop.f32.mrb[0].mxu0
  %v874 = vadd.f32 %v566, %v873
  %v875 = vpop.f32.mrb[0].mxu0
  %876 = vmatprep.mubr.bf16.mxu0 %v677
  %877 = vmatmul.mubr.bf16.gmra.mrb[0].mxu0 %v656
  %v878 = vpop.f32.mrb[0].mxu0
  %v879 = vadd.f32 %v571, %v878
  %v880 = vpop.f32.mrb[0].mxu0
  %v881 = vpop.f32.mrb[0].mxu0
  %v882 = vadd.f32 %v576, %v881
  %v883 = vpop.f32.mrb[0].mxu0
  %884 = vmatprep.mubr.bf16.mxu0 %v680
  %885 = vmatmul.mubr.bf16.gmra.mrb[0].mxu0 %v658
  %v886 = vpop.f32.mrb[0].mxu0
  %v887 = vadd.f32 %v581, %v886
  %v888 = vpop.f32.mrb[0].mxu0
  %v889 = vpop.f32.mrb[0].mxu0
  %v890 = vadd.f32 %v586, %v889
  %v891 = vpop.f32.mrb[0].mxu0
  %892 = vmatprep.mubr.bf16.mxu0 %v683
  %893 = vmatmul.mubr.bf16.gmra.mrb[0].mxu0 %v660
  %v894 = vpop.f32.mrb[0].mxu0
  %v895 = vadd.f32 %v591, %v894
  %v896 = vpop.f32.mrb[0].mxu0
  %v897 = vpop.f32.mrb[0].mxu0
  %v898 = vadd.f32 %v596, %v897
  %v899 = vpop.f32.mrb[0].mxu0
  %900 = vmatprep.mubr.bf16.mxu0 %v686
  %901 = vmatmul.mubr.bf16.gmra.mrb[0].mxu0 %v662
  %v902 = vpop.f32.mrb[0].mxu0
  %v903 = vadd.f32 %v601, %v902
  %v904 = vpop.f32.mrb[0].mxu0
  %v905 = vpop.f32.mrb[0].mxu0
  %v906 = vadd.f32 %v606, %v905
  %v907 = vpop.f32.mrb[0].mxu0
  %908 = vmatprep.mubr.bf16.mxu0 %v689
  %909 = vmatmul.mubr.bf16.gmra.mrb[0].mxu0 %v664
  %v910 = vpop.f32.mrb[0].mxu0
  %v911 = vadd.f32 %v611, %v910
  %v912 = vpop.f32.mrb[0].mxu0
  %v913 = vpop.f32.mrb[0].mxu0
  %v914 = vadd.f32 %v616, %v913
  %v915 = vpop.f32.mrb[0].mxu0
  %916 = vdwg.mxu0
  %v917 = vxor.u32 %v871, 2147483648
  %v918 = vxor.u32 %v874, 2147483648
  %v919 = vxor.u32 %v879, 2147483648
  %v920 = vxor.u32 %v882, 2147483648
  %v921 = vxor.u32 %v887, 2147483648
  %v922 = vxor.u32 %v890, 2147483648
  %v923 = vxor.u32 %v895, 2147483648
  %v924 = vxor.u32 %v898, 2147483648
  %v925 = vmul.f32 %v917, 1.442695
  %v926 = vpow.pop %v925
  %v927 = vmul.f32 %v918, 1.442695
  %v928 = vpow.pop %v927
  %v929 = vmul.f32 %v919, 1.442695
  %v930 = vpow.pop %v929
  %v931 = vmul.f32 %v920, 1.442695
  %v932 = vpow.pop %v931
  %v933 = vmul.f32 %v921, 1.442695
  %v934 = vpow.pop %v933
  %v935 = vmul.f32 %v922, 1.442695
  %v936 = vpow.pop %v935
  %v937 = vmul.f32 %v923, 1.442695
  %v938 = vpow.pop %v937
  %v939 = vmul.f32 %v924, 1.442695
  %v940 = vpow.pop %v939
  %v941 = vadd.f32 %v926, 1.0
  %v942 = vadd.f32 %v928, 1.0
  %v943 = vadd.f32 %v930, 1.0
  %v944 = vadd.f32 %v932, 1.0
  %v945 = vadd.f32 %v934, 1.0
  %v946 = vadd.f32 %v936, 1.0
  %v947 = vadd.f32 %v938, 1.0
  %v948 = vadd.f32 %v940, 1.0
  %v949 = vrcp.pop %v941
  %v950 = vmul.f32 1.0, %v949
  %v951 = vrcp.pop %v942
  %v952 = vmul.f32 1.0, %v951
  %v953 = vrcp.pop %v943
  %v954 = vmul.f32 1.0, %v953
  %v955 = vrcp.pop %v944
  %v956 = vmul.f32 1.0, %v955
  %v957 = vrcp.pop %v945
  %v958 = vmul.f32 1.0, %v957
  %v959 = vrcp.pop %v946
  %v960 = vmul.f32 1.0, %v959
  %v961 = vrcp.pop %v947
  %v962 = vmul.f32 1.0, %v961
  %v963 = vrcp.pop %v948
  %v964 = vmul.f32 1.0, %v963
  %v965 = vmul.f32 %v809, %v68
  %v966 = vmul.f32 %v811, %v69
  %v967 = vmul.f32 %v813, %v70
  %v968 = vmul.f32 %v815, %v71
  %v969 = vmul.f32 %v950, %v72
  %v970 = vmul.f32 %v952, %v73
  %v971 = vmul.f32 %v954, %v74
  %v972 = vmul.f32 %v956, %v75
  %v973 = vpack.c.bf16 %v966, %v965
  %v974 = vpack.c.bf16 %v968, %v967
  %v975 = vpack.c.bf16 %v970, %v969
  %v976 = vpack.c.bf16 %v972, %v971
  %977 = vmatprep.subr.bf16.mxu0 0
  %978 = vmatpush1.bf16.msra.mxu0 %v113
  %979 = vmatprep.subr.bf16.mxu0 0
  %980 = vmatpush1.bf16.msra.mxu0 %v114
  %981 = vmatprep.subr.bf16.mxu0 0
  %982 = vmatpush1.bf16.msra.mxu0 %v115
  %983 = vmatprep.subr.bf16.mxu0 0
  %984 = vmatpush1.bf16.msra.mxu0 %v116
  %985 = vmatprep.subr.bf16.mxu0 0
  %986 = vmatpush1.bf16.msra.mxu0 %v117
  %987 = vmatprep.subr.bf16.mxu0 0
  %988 = vmatpush1.bf16.msra.mxu0 %v118
  %989 = vmatprep.subr.bf16.mxu0 0
  %990 = vmatpush1.bf16.msra.mxu0 %v119
  %991 = vmatprep.subr.bf16.mxu0 0
  %992 = vmatpush1.bf16.msra.mxu0 %v120
  %993 = vmatprep.subr.bf16.mxu0 0
  %994 = vmatpush1.bf16.msra.mxu0 0
  %995 = vmatprep.subr.bf16.mxu0 0
  %996 = vmatpush1.bf16.msra.mxu0 0
  %997 = vmatprep.subr.bf16.mxu0 0
  %998 = vmatpush1.bf16.msra.mxu0 0
  %999 = vmatprep.subr.bf16.mxu0 0
  %1000 = vmatpush1.bf16.msra.mxu0 0
  %1001 = vmatprep.subr.bf16.mxu0 0
  %1002 = vmatpush1.bf16.msra.mxu0 0
  %1003 = vmatprep.subr.bf16.mxu0 0
  %1004 = vmatpush1.bf16.msra.mxu0 0
  %1005 = vmatprep.subr.bf16.mxu0 0
  %1006 = vmatpush1.bf16.msra.mxu0 0
  %1007 = vmatprep.subr.bf16.mxu0 0
  %1008 = vmatpush1.bf16.msra.mxu0 0
  %1009 = vmatprep.mubr.bf16.mxu0 0
  %1010 = vmatmul.mubr.bf16.gmra.mrb[0].mxu0 %v973
  %v1011 = vpop.f32.mrb[0].mxu0
  %v1012 = vadd.f32 0.0, %v1011
  %v1013 = vpop.f32.mrb[0].mxu0
  %v1014 = vpop.f32.mrb[0].mxu0
  %v1015 = vadd.f32 0.0, %v1014
  %v1016 = vpop.f32.mrb[0].mxu0
  %1017 = vmatprep.mubr.bf16.mxu0 0
  %1018 = vmatmul.mubr.bf16.gmra.mrb[0].mxu0 %v974
  %v1019 = vpop.f32.mrb[0].mxu0
  %v1020 = vadd.f32 0.0, %v1019
  %v1021 = vpop.f32.mrb[0].mxu0
  %v1022 = vpop.f32.mrb[0].mxu0
  %v1023 = vadd.f32 0.0, %v1022
  %v1024 = vpop.f32.mrb[0].mxu0
  %1025 = vmatprep.mubr.bf16.mxu0 0
  %1026 = vmatmul.mubr.bf16.gmra.mrb[0].mxu0 %v975
  %v1027 = vpop.f32.mrb[0].mxu0
  %v1028 = vadd.f32 0.0, %v1027
  %v1029 = vpop.f32.mrb[0].mxu0
  %v1030 = vpop.f32.mrb[0].mxu0
  %v1031 = vadd.f32 0.0, %v1030
  %v1032 = vpop.f32.mrb[0].mxu0
  %1033 = vmatprep.mubr.bf16.mxu0 0
  %1034 = vmatmul.mubr.bf16.gmra.mrb[0].mxu0 %v976
  %v1035 = vpop.f32.mrb[0].mxu0
  %v1036 = vadd.f32 0.0, %v1035
  %v1037 = vpop.f32.mrb[0].mxu0
  %v1038 = vpop.f32.mrb[0].mxu0
  %v1039 = vadd.f32 0.0, %v1038
  %v1040 = vpop.f32.mrb[0].mxu0
  %1041 = vdwg.mxu0
  %v1042 = vpack.c.bf16 %v1015, %v1012
  %v1043 = vpack.c.bf16 %v1023, %v1020
  %v1044 = vpack.c.bf16 %v1031, %v1028
  %v1045 = vpack.c.bf16 %v1039, %v1036
  %1046 = vmatprep.subr.bf16.mxu0 0
  %1047 = vmatpush1.bf16.msra.mxu0 %v113
  %1048 = vmatprep.subr.bf16.mxu0 0
  %1049 = vmatpush1.bf16.msra.mxu0 %v114
  %1050 = vmatprep.subr.bf16.mxu0 0
  %1051 = vmatpush1.bf16.msra.mxu0 %v115
  %1052 = vmatprep.subr.bf16.mxu0 0
  %1053 = vmatpush1.bf16.msra.mxu0 %v116
  %1054 = vmatprep.subr.bf16.mxu0 0
  %1055 = vmatpush1.bf16.msra.mxu0 %v117
  %1056 = vmatprep.subr.bf16.mxu0 0
  %1057 = vmatpush1.bf16.msra.mxu0 %v118
  %1058 = vmatprep.subr.bf16.mxu0 0
  %1059 = vmatpush1.bf16.msra.mxu0 %v119
  %1060 = vmatprep.subr.bf16.mxu0 0
  %1061 = vmatpush1.bf16.msra.mxu0 %v120
  %1062 = vmatprep.subr.bf16.mxu0 0
  %1063 = vmatpush1.bf16.msra.mxu0 0
  %1064 = vmatprep.subr.bf16.mxu0 0
  %1065 = vmatpush1.bf16.msra.mxu0 0
  %1066 = vmatprep.subr.bf16.mxu0 0
  %1067 = vmatpush1.bf16.msra.mxu0 0
  %1068 = vmatprep.subr.bf16.mxu0 0
  %1069 = vmatpush1.bf16.msra.mxu0 0
  %1070 = vmatprep.subr.bf16.mxu0 0
  %1071 = vmatpush1.bf16.msra.mxu0 0
  %1072 = vmatprep.subr.bf16.mxu0 0
  %1073 = vmatpush1.bf16.msra.mxu0 0
  %1074 = vmatprep.subr.bf16.mxu0 0
  %1075 = vmatpush1.bf16.msra.mxu0 0
  %1076 = vmatprep.subr.bf16.mxu0 0
  %1077 = vmatpush1.bf16.msra.mxu0 0
  %1078 = vmatprep.mubr.bf16.mxu0 0
  %1079 = vmatmul.mubr.bf16.gmra.mrb[0].mxu0 %v1042
  %v1080 = vpop.f32.mrb[0].mxu0
  %v1081 = vadd.f32 0.0, %v1080
  %v1082 = vpop.f32.mrb[0].mxu0
  %v1083 = vpop.f32.mrb[0].mxu0
  %v1084 = vadd.f32 0.0, %v1083
  %v1085 = vpop.f32.mrb[0].mxu0
  %1086 = vmatprep.mubr.bf16.mxu0 0
  %1087 = vmatmul.mubr.bf16.gmra.mrb[0].mxu0 %v1043
  %v1088 = vpop.f32.mrb[0].mxu0
  %v1089 = vadd.f32 0.0, %v1088
  %v1090 = vpop.f32.mrb[0].mxu0
  %v1091 = vpop.f32.mrb[0].mxu0
  %v1092 = vadd.f32 0.0, %v1091
  %v1093 = vpop.f32.mrb[0].mxu0
  %1094 = vmatprep.mubr.bf16.mxu0 0
  %1095 = vmatmul.mubr.bf16.gmra.mrb[0].mxu0 %v1044
  %v1096 = vpop.f32.mrb[0].mxu0
  %v1097 = vadd.f32 0.0, %v1096
  %v1098 = vpop.f32.mrb[0].mxu0
  %v1099 = vpop.f32.mrb[0].mxu0
  %v1100 = vadd.f32 0.0, %v1099
  %v1101 = vpop.f32.mrb[0].mxu0
  %1102 = vmatprep.mubr.bf16.mxu0 0
  %1103 = vmatmul.mubr.bf16.gmra.mrb[0].mxu0 %v1045
  %v1104 = vpop.f32.mrb[0].mxu0
  %v1105 = vadd.f32 0.0, %v1104
  %v1106 = vpop.f32.mrb[0].mxu0
  %v1107 = vpop.f32.mrb[0].mxu0
  %v1108 = vadd.f32 0.0, %v1107
  %v1109 = vpop.f32.mrb[0].mxu0
  %1110 = vdwg.mxu0
  %v1111 = vmul.f32 %v1081, 2.0
  %v1112 = vmul.f32 %v1084, 2.0
  %v1113 = vmul.f32 %v1089, 2.0
  %v1114 = vmul.f32 %v1092, 2.0
  %v1115 = vmul.f32 %v1097, 2.0
  %v1116 = vmul.f32 %v1100, 2.0
  %v1117 = vmul.f32 %v1105, 2.0
  %v1118 = vmul.f32 %v1108, 2.0
  %v1119 = vsub.f32 %v1111, %v965
  %v1120 = vsub.f32 %v1112, %v966
  %v1121 = vsub.f32 %v1113, %v967
  %v1122 = vsub.f32 %v1114, %v968
  %v1123 = vsub.f32 %v1115, %v969
  %v1124 = vsub.f32 %v1116, %v970
  %v1125 = vsub.f32 %v1117, %v971
  %v1126 = vsub.f32 %v1118, %v972
  %1127 = vmatprep.subr.bf16.mxu0 0
  %1128 = vmatpush1.bf16.msra.mxu0 %v332
  %1129 = vmatprep.subr.bf16.mxu0 0
  %1130 = vmatpush1.bf16.msra.mxu0 %v333
  %1131 = vmatprep.subr.bf16.mxu0 0
  %1132 = vmatpush1.bf16.msra.mxu0 %v334
  %1133 = vmatprep.subr.bf16.mxu0 0
  %1134 = vmatpush1.bf16.msra.mxu0 %v335
  %1135 = vmatprep.subr.bf16.mxu0 0
  %1136 = vmatpush1.bf16.msra.mxu0 %v336
  %1137 = vmatprep.subr.bf16.mxu0 0
  %1138 = vmatpush1.bf16.msra.mxu0 %v337
  %1139 = vmatprep.subr.bf16.mxu0 0
  %1140 = vmatpush1.bf16.msra.mxu0 %v338
  %1141 = vmatprep.subr.bf16.mxu0 0
  %1142 = vmatpush1.bf16.msra.mxu0 %v339
  %1143 = vmatprep.subr.bf16.mxu0 0
  %1144 = vmatpush1.bf16.msra.mxu0 0
  %1145 = vmatprep.subr.bf16.mxu0 0
  %1146 = vmatpush1.bf16.msra.mxu0 0
  %1147 = vmatprep.subr.bf16.mxu0 0
  %1148 = vmatpush1.bf16.msra.mxu0 0
  %1149 = vmatprep.subr.bf16.mxu0 0
  %1150 = vmatpush1.bf16.msra.mxu0 0
  %1151 = vmatprep.subr.bf16.mxu0 0
  %1152 = vmatpush1.bf16.msra.mxu0 0
  %1153 = vmatprep.subr.bf16.mxu0 0
  %1154 = vmatpush1.bf16.msra.mxu0 0
  %1155 = vmatprep.subr.bf16.mxu0 0
  %1156 = vmatpush1.bf16.msra.mxu0 0
  %1157 = vmatprep.subr.bf16.mxu0 0
  %1158 = vmatpush1.bf16.msra.mxu0 0
  %1159 = vmatprep.mubr.bf16.mxu0 0
  %1160 = vmatmul.mubr.bf16.gmra.mrb[0].mxu0 %v1042
  %v1161 = vpop.f32.mrb[0].mxu0
  %v1162 = vadd.f32 0.0, %v1161
  %v1163 = vpop.f32.mrb[0].mxu0
  %v1164 = vpop.f32.mrb[0].mxu0
  %v1165 = vadd.f32 0.0, %v1164
  %v1166 = vpop.f32.mrb[0].mxu0
  %1167 = vmatprep.mubr.bf16.mxu0 0
  %1168 = vmatmul.mubr.bf16.gmra.mrb[0].mxu0 %v1043
  %v1169 = vpop.f32.mrb[0].mxu0
  %v1170 = vadd.f32 0.0, %v1169
  %v1171 = vpop.f32.mrb[0].mxu0
  %v1172 = vpop.f32.mrb[0].mxu0
  %v1173 = vadd.f32 0.0, %v1172
  %v1174 = vpop.f32.mrb[0].mxu0
  %1175 = vmatprep.mubr.bf16.mxu0 0
  %1176 = vmatmul.mubr.bf16.gmra.mrb[0].mxu0 %v1044
  %v1177 = vpop.f32.mrb[0].mxu0
  %v1178 = vadd.f32 0.0, %v1177
  %v1179 = vpop.f32.mrb[0].mxu0
  %v1180 = vpop.f32.mrb[0].mxu0
  %v1181 = vadd.f32 0.0, %v1180
  %v1182 = vpop.f32.mrb[0].mxu0
  %1183 = vmatprep.mubr.bf16.mxu0 0
  %1184 = vmatmul.mubr.bf16.gmra.mrb[0].mxu0 %v1045
  %v1185 = vpop.f32.mrb[0].mxu0
  %v1186 = vadd.f32 0.0, %v1185
  %v1187 = vpop.f32.mrb[0].mxu0
  %v1188 = vpop.f32.mrb[0].mxu0
  %v1189 = vadd.f32 0.0, %v1188
  %v1190 = vpop.f32.mrb[0].mxu0
  %1191 = vdwg.mxu0
  %v1192 = vpack.c.bf16 %v1165, %v1162
  %v1193 = vpack.c.bf16 %v1173, %v1170
  %v1194 = vpack.c.bf16 %v1181, %v1178
  %v1195 = vpack.c.bf16 %v1189, %v1186
  %1196 = vmatprep.subr.bf16.mxu0 0
  %1197 = vmatpush1.bf16.msra.mxu0 %v332
  %1198 = vmatprep.subr.bf16.mxu0 0
  %1199 = vmatpush1.bf16.msra.mxu0 %v333
  %1200 = vmatprep.subr.bf16.mxu0 0
  %1201 = vmatpush1.bf16.msra.mxu0 %v334
  %1202 = vmatprep.subr.bf16.mxu0 0
  %1203 = vmatpush1.bf16.msra.mxu0 %v335
  %1204 = vmatprep.subr.bf16.mxu0 0
  %1205 = vmatpush1.bf16.msra.mxu0 %v336
  %1206 = vmatprep.subr.bf16.mxu0 0
  %1207 = vmatpush1.bf16.msra.mxu0 %v337
  %1208 = vmatprep.subr.bf16.mxu0 0
  %1209 = vmatpush1.bf16.msra.mxu0 %v338
  %1210 = vmatprep.subr.bf16.mxu0 0
  %1211 = vmatpush1.bf16.msra.mxu0 %v339
  %1212 = vmatprep.subr.bf16.mxu0 0
  %1213 = vmatpush1.bf16.msra.mxu0 0
  %1214 = vmatprep.subr.bf16.mxu0 0
  %1215 = vmatpush1.bf16.msra.mxu0 0
  %1216 = vmatprep.subr.bf16.mxu0 0
  %1217 = vmatpush1.bf16.msra.mxu0 0
  %1218 = vmatprep.subr.bf16.mxu0 0
  %1219 = vmatpush1.bf16.msra.mxu0 0
  %1220 = vmatprep.subr.bf16.mxu0 0
  %1221 = vmatpush1.bf16.msra.mxu0 0
  %1222 = vmatprep.subr.bf16.mxu0 0
  %1223 = vmatpush1.bf16.msra.mxu0 0
  %1224 = vmatprep.subr.bf16.mxu0 0
  %1225 = vmatpush1.bf16.msra.mxu0 0
  %1226 = vmatprep.subr.bf16.mxu0 0
  %1227 = vmatpush1.bf16.msra.mxu0 0
  %1228 = vmatprep.mubr.bf16.mxu0 0
  %1229 = vmatmul.mubr.bf16.gmra.mrb[0].mxu0 %v1192
  %v1230 = vpop.f32.mrb[0].mxu0
  %v1231 = vadd.f32 0.0, %v1230
  %v1232 = vpop.f32.mrb[0].mxu0
  %v1233 = vpop.f32.mrb[0].mxu0
  %v1234 = vadd.f32 0.0, %v1233
  %v1235 = vpop.f32.mrb[0].mxu0
  %1236 = vmatprep.mubr.bf16.mxu0 0
  %1237 = vmatmul.mubr.bf16.gmra.mrb[0].mxu0 %v1193
  %v1238 = vpop.f32.mrb[0].mxu0
  %v1239 = vadd.f32 0.0, %v1238
  %v1240 = vpop.f32.mrb[0].mxu0
  %v1241 = vpop.f32.mrb[0].mxu0
  %v1242 = vadd.f32 0.0, %v1241
  %v1243 = vpop.f32.mrb[0].mxu0
  %1244 = vmatprep.mubr.bf16.mxu0 0
  %1245 = vmatmul.mubr.bf16.gmra.mrb[0].mxu0 %v1194
  %v1246 = vpop.f32.mrb[0].mxu0
  %v1247 = vadd.f32 0.0, %v1246
  %v1248 = vpop.f32.mrb[0].mxu0
  %v1249 = vpop.f32.mrb[0].mxu0
  %v1250 = vadd.f32 0.0, %v1249
  %v1251 = vpop.f32.mrb[0].mxu0
  %1252 = vmatprep.mubr.bf16.mxu0 0
  %1253 = vmatmul.mubr.bf16.gmra.mrb[0].mxu0 %v1195
  %v1254 = vpop.f32.mrb[0].mxu0
  %v1255 = vadd.f32 0.0, %v1254
  %v1256 = vpop.f32.mrb[0].mxu0
  %v1257 = vpop.f32.mrb[0].mxu0
  %v1258 = vadd.f32 0.0, %v1257
  %v1259 = vpop.f32.mrb[0].mxu0
  %1260 = vdwg.mxu0
  %v1261 = vmul.f32 %v1231, 2.0
  %v1262 = vmul.f32 %v1234, 2.0
  %v1263 = vmul.f32 %v1239, 2.0
  %v1264 = vmul.f32 %v1242, 2.0
  %v1265 = vmul.f32 %v1247, 2.0
  %v1266 = vmul.f32 %v1250, 2.0
  %v1267 = vmul.f32 %v1255, 2.0
  %v1268 = vmul.f32 %v1258, 2.0
  %v1269 = vsub.f32 %v1261, %v1012
  %v1270 = vsub.f32 %v1262, %v1015
  %v1271 = vsub.f32 %v1263, %v1020
  %v1272 = vsub.f32 %v1264, %v1023
  %v1273 = vsub.f32 %v1265, %v1028
  %v1274 = vsub.f32 %v1266, %v1031
  %v1275 = vsub.f32 %v1267, %v1036
  %v1276 = vsub.f32 %v1268, %v1039
  %v1277 = vpack.c.bf16 %v1120, %v1119
  %v1278 = vpack.c.bf16 %v1122, %v1121
  %v1279 = vpack.c.bf16 %v1270, %v1269
  %v1280 = vpack.c.bf16 %v1272, %v1271
  %v1285 = vunpack.c.l.b16 %v543
  %v1286 = vunpack.c.h.b16 %v543
  %v1287 = vunpack.c.l.b16 %v544
  %v1288 = vunpack.c.h.b16 %v544
  %v1289 = vunpack.c.l.b16 %v545
  %v1290 = vunpack.c.h.b16 %v545
  %v1291 = vunpack.c.l.b16 %v546
  %v1292 = vunpack.c.h.b16 %v546
  %v1293 = vpack.c.b16 %v1287, %v1285
  %v1294 = vpack.c.b16 %v1288, %v1286
  %v1295 = vpack.c.b16 %v1291, %v1289
  %v1296 = vpack.c.b16 %v1292, %v1290
  %vm1299 = vcmask 261120
  %v1301 = vsel %vm1299, %v1294, 0
  %v1304 = vsel %vm1299, %v1296, 0
  %1306 = vmatprep.subr.bf16.mxu0 0
  %1307 = vmatpush1.bf16.msra.mxu0 %v973
  %1308 = vmatprep.subr.bf16.mxu0 0
  %1309 = vmatpush1.bf16.msra.mxu0 %v974
  %1310 = vmatprep.subr.bf16.mxu0 0
  %1311 = vmatpush1.bf16.msra.mxu0 %v1042
  %1312 = vmatprep.subr.bf16.mxu0 0
  %1313 = vmatpush1.bf16.msra.mxu0 %v1043
  %1314 = vmatprep.subr.bf16.mxu0 0
  %1315 = vmatpush1.bf16.msra.mxu0 %v1277
  %1316 = vmatprep.subr.bf16.mxu0 0
  %1317 = vmatpush1.bf16.msra.mxu0 %v1278
  %1318 = vmatprep.subr.bf16.mxu0 0
  %1319 = vmatpush1.bf16.msra.mxu0 %v1192
  %1320 = vmatprep.subr.bf16.mxu0 0
  %1321 = vmatpush1.bf16.msra.mxu0 %v1193
  %1322 = vmatprep.subr.bf16.mxu0 0
  %1323 = vmatpush1.bf16.msra.mxu0 %v1279
  %1324 = vmatprep.subr.bf16.mxu0 0
  %1325 = vmatpush1.bf16.msra.mxu0 %v1280
  %1326 = vmatprep.subr.bf16.mxu0 0
  %1327 = vmatpush1.bf16.msra.mxu0 0
  %1328 = vmatprep.subr.bf16.mxu0 0
  %1329 = vmatpush1.bf16.msra.mxu0 0
  %1330 = vmatprep.subr.bf16.mxu0 0
  %1331 = vmatpush1.bf16.msra.mxu0 0
  %1332 = vmatprep.subr.bf16.mxu0 0
  %1333 = vmatpush1.bf16.msra.mxu0 0
  %1334 = vmatprep.subr.bf16.mxu0 0
  %1335 = vmatpush1.bf16.msra.mxu0 0
  %1336 = vmatprep.subr.bf16.mxu0 0
  %1337 = vmatpush1.bf16.msra.mxu0 0
  %1338 = vmatprep.mubr.bf16.mxu0 %v1301
  %1339 = vmatmul.mubr.bf16.gmra.mrb[0].mxu0 %v1293
  %v1340 = vpop.f32.mrb[0].mxu0
  %v1341 = vadd.f32 0.0, %v1340
  %v1342 = vpop.f32.mrb[0].mxu0
  %v1343 = vpop.f32.mrb[0].mxu0
  %v1344 = vadd.f32 0.0, %v1343
  %v1345 = vpop.f32.mrb[0].mxu0
  %1346 = vmatprep.mubr.bf16.mxu0 %v1304
  %1347 = vmatmul.mubr.bf16.gmra.mrb[0].mxu0 %v1295
  %v1348 = vpop.f32.mrb[0].mxu0
  %v1349 = vadd.f32 0.0, %v1348
  %v1350 = vpop.f32.mrb[0].mxu0
  %v1351 = vpop.f32.mrb[0].mxu0
  %v1352 = vadd.f32 0.0, %v1351
  %v1353 = vpop.f32.mrb[0].mxu0
  %1354 = vdwg.mxu0
  %v1355 = vpack.c.bf16 %v1124, %v1123
  %v1356 = vpack.c.bf16 %v1126, %v1125
  %v1357 = vpack.c.bf16 %v1274, %v1273
  %v1358 = vpack.c.bf16 %v1276, %v1275
  %1359 = vmatprep.subr.bf16.mxu0 0
  %1360 = vmatpush1.bf16.msra.mxu0 %v975
  %1361 = vmatprep.subr.bf16.mxu0 0
  %1362 = vmatpush1.bf16.msra.mxu0 %v976
  %1363 = vmatprep.subr.bf16.mxu0 0
  %1364 = vmatpush1.bf16.msra.mxu0 %v1044
  %1365 = vmatprep.subr.bf16.mxu0 0
  %1366 = vmatpush1.bf16.msra.mxu0 %v1045
  %1367 = vmatprep.subr.bf16.mxu0 0
  %1368 = vmatpush1.bf16.msra.mxu0 %v1355
  %1369 = vmatprep.subr.bf16.mxu0 0
  %1370 = vmatpush1.bf16.msra.mxu0 %v1356
  %1371 = vmatprep.subr.bf16.mxu0 0
  %1372 = vmatpush1.bf16.msra.mxu0 %v1194
  %1373 = vmatprep.subr.bf16.mxu0 0
  %1374 = vmatpush1.bf16.msra.mxu0 %v1195
  %1375 = vmatprep.subr.bf16.mxu0 0
  %1376 = vmatpush1.bf16.msra.mxu0 %v1357
  %1377 = vmatprep.subr.bf16.mxu0 0
  %1378 = vmatpush1.bf16.msra.mxu0 %v1358
  %1379 = vmatprep.subr.bf16.mxu0 0
  %1380 = vmatpush1.bf16.msra.mxu0 0
  %1381 = vmatprep.subr.bf16.mxu0 0
  %1382 = vmatpush1.bf16.msra.mxu0 0
  %1383 = vmatprep.subr.bf16.mxu0 0
  %1384 = vmatpush1.bf16.msra.mxu0 0
  %1385 = vmatprep.subr.bf16.mxu0 0
  %1386 = vmatpush1.bf16.msra.mxu0 0
  %1387 = vmatprep.subr.bf16.mxu0 0
  %1388 = vmatpush1.bf16.msra.mxu0 0
  %1389 = vmatprep.subr.bf16.mxu0 0
  %1390 = vmatpush1.bf16.msra.mxu0 0
  %1391 = vmatprep.mubr.bf16.mxu0 %v1301
  %1392 = vmatmul.mubr.bf16.gmra.mrb[0].mxu0 %v1293
  %v1393 = vpop.f32.mrb[0].mxu0
  %v1394 = vadd.f32 0.0, %v1393
  %v1395 = vpop.f32.mrb[0].mxu0
  %v1396 = vpop.f32.mrb[0].mxu0
  %v1397 = vadd.f32 0.0, %v1396
  %v1398 = vpop.f32.mrb[0].mxu0
  %1399 = vmatprep.mubr.bf16.mxu0 %v1304
  %1400 = vmatmul.mubr.bf16.gmra.mrb[0].mxu0 %v1295
  %v1401 = vpop.f32.mrb[0].mxu0
  %v1402 = vadd.f32 0.0, %v1401
  %v1403 = vpop.f32.mrb[0].mxu0
  %v1404 = vpop.f32.mrb[0].mxu0
  %v1405 = vadd.f32 0.0, %v1404
  %v1406 = vpop.f32.mrb[0].mxu0
  %1407 = vdwg.mxu0
  %v1408 = vadd.f32 %v762, %v1341
  %v1409 = vadd.f32 %v765, %v1344
  %v1410 = vadd.f32 %v770, %v1349
  %v1411 = vadd.f32 %v773, %v1352
  %v1412 = vadd.f32 %v903, %v1394
  %v1413 = vadd.f32 %v906, %v1397
  %v1414 = vadd.f32 %v911, %v1402
  %v1415 = vadd.f32 %v914, %v1405
  %v1416 = vtanh.pop %v1408
  %v1417 = vtanh.pop %v1409
  %v1418 = vtanh.pop %v1410
  %v1419 = vtanh.pop %v1411
  %v1420 = vtanh.pop %v1412
  %v1421 = vtanh.pop %v1413
  %v1422 = vtanh.pop %v1414
  %v1423 = vtanh.pop %v1415
  %v1424 = vmul.f32 %v817, %v68
  %v1425 = vmul.f32 %v819, %v69
  %v1426 = vmul.f32 %v821, %v70
  %v1427 = vmul.f32 %v823, %v71
  %v1428 = vmul.f32 %v958, %v72
  %v1429 = vmul.f32 %v960, %v73
  %v1430 = vmul.f32 %v962, %v74
  %v1431 = vmul.f32 %v964, %v75
  %v1432 = vsub.f32 1.0, %v817
  %v1433 = vsub.f32 1.0, %v819
  %v1434 = vsub.f32 1.0, %v821
  %v1435 = vsub.f32 1.0, %v823
  %v1436 = vsub.f32 1.0, %v958
  %v1437 = vsub.f32 1.0, %v960
  %v1438 = vsub.f32 1.0, %v962
  %v1439 = vsub.f32 1.0, %v964
  %v1440 = vmul.f32 %v1432, %v1416
  %v1441 = vmul.f32 %v1433, %v1417
  %v1442 = vmul.f32 %v1434, %v1418
  %v1443 = vmul.f32 %v1435, %v1419
  %v1444 = vmul.f32 %v1436, %v1420
  %v1445 = vmul.f32 %v1437, %v1421
  %v1446 = vmul.f32 %v1438, %v1422
  %v1447 = vmul.f32 %v1439, %v1423
  %v1448 = vadd.f32 %v1424, %v1440
  %v1449 = vadd.f32 %v1425, %v1441
  %v1450 = vadd.f32 %v1426, %v1442
  %v1451 = vadd.f32 %v1427, %v1443
  %v1452 = vadd.f32 %v1428, %v1444
  %v1453 = vadd.f32 %v1429, %v1445
  %v1454 = vadd.f32 %v1430, %v1446
  %v1455 = vadd.f32 %v1431, %v1447
  %1456 = vst [vmem:[%s9] sm:$0xff] %v1448
  %1457 = vst [vmem:[%s9 + $0x8] sm:$0xff] %v1449
  %1458 = vst [vmem:[%s9 + $0x10] sm:$0xff] %v1450
  %1459 = vst [vmem:[%s9 + $0x18] sm:$0xff] %v1451
  %1460 = vst [vmem:[%s9 + $0x20] sm:$0xff] %v1452
  %1461 = vst [vmem:[%s9 + $0x28] sm:$0xff] %v1453
  %1462 = vst [vmem:[%s9 + $0x30] sm:$0xff] %v1454
  %1463 = vst [vmem:[%s9 + $0x38] sm:$0xff] %v1455
  %s1464 = scalar_lea.vmem %s1, 64
  %v1465 = vld [vmem:[%s1464] sm:$0xff]
  %v1466 = vld [vmem:[%s1464 + $0x8] sm:$0xff]
  %v1467 = vld [vmem:[%s1464 + $0x10] sm:$0xff]
  %v1468 = vld [vmem:[%s1464 + $0x18] sm:$0xff]
  %v1469 = vld [vmem:[%s1464 + $0x20] sm:$0xff]
  %v1470 = vld [vmem:[%s1464 + $0x28] sm:$0xff]
  %v1471 = vld [vmem:[%s1464 + $0x30] sm:$0xff]
  %v1472 = vld [vmem:[%s1464 + $0x38] sm:$0xff]
  %v1473 = vpack.c.bf16 %v1449, %v1448
  %v1474 = vpack.c.bf16 %v1451, %v1450
  %v1475 = vpack.c.bf16 %v1466, %v1465
  %v1476 = vpack.c.bf16 %v1468, %v1467
  %v1477 = vpack.c.bf16 %v1453, %v1452
  %v1478 = vpack.c.bf16 %v1455, %v1454
  %v1479 = vpack.c.bf16 %v1470, %v1469
  %v1480 = vpack.c.bf16 %v1472, %v1471
  %1481 = vmatprep.subr.bf16.mxu0 0
  %1482 = vmatpush1.bf16.msra.mxu0 %v113
  %1483 = vmatprep.subr.bf16.mxu0 0
  %1484 = vmatpush1.bf16.msra.mxu0 %v114
  %1485 = vmatprep.subr.bf16.mxu0 0
  %1486 = vmatpush1.bf16.msra.mxu0 %v115
  %1487 = vmatprep.subr.bf16.mxu0 0
  %1488 = vmatpush1.bf16.msra.mxu0 %v116
  %1489 = vmatprep.subr.bf16.mxu0 0
  %1490 = vmatpush1.bf16.msra.mxu0 %v117
  %1491 = vmatprep.subr.bf16.mxu0 0
  %1492 = vmatpush1.bf16.msra.mxu0 %v118
  %1493 = vmatprep.subr.bf16.mxu0 0
  %1494 = vmatpush1.bf16.msra.mxu0 %v119
  %1495 = vmatprep.subr.bf16.mxu0 0
  %1496 = vmatpush1.bf16.msra.mxu0 %v120
  %1497 = vmatprep.subr.bf16.mxu0 0
  %1498 = vmatpush1.bf16.msra.mxu0 0
  %1499 = vmatprep.subr.bf16.mxu0 0
  %1500 = vmatpush1.bf16.msra.mxu0 0
  %1501 = vmatprep.subr.bf16.mxu0 0
  %1502 = vmatpush1.bf16.msra.mxu0 0
  %1503 = vmatprep.subr.bf16.mxu0 0
  %1504 = vmatpush1.bf16.msra.mxu0 0
  %1505 = vmatprep.subr.bf16.mxu0 0
  %1506 = vmatpush1.bf16.msra.mxu0 0
  %1507 = vmatprep.subr.bf16.mxu0 0
  %1508 = vmatpush1.bf16.msra.mxu0 0
  %1509 = vmatprep.subr.bf16.mxu0 0
  %1510 = vmatpush1.bf16.msra.mxu0 0
  %1511 = vmatprep.subr.bf16.mxu0 0
  %1512 = vmatpush1.bf16.msra.mxu0 0
  %1513 = vmatprep.mubr.bf16.mxu0 0
  %1514 = vmatmul.mubr.bf16.gmra.mrb[0].mxu0 %v1473
  %v1515 = vpop.f32.mrb[0].mxu0
  %v1516 = vadd.f32 0.0, %v1515
  %v1517 = vpop.f32.mrb[0].mxu0
  %v1518 = vpop.f32.mrb[0].mxu0
  %v1519 = vadd.f32 0.0, %v1518
  %v1520 = vpop.f32.mrb[0].mxu0
  %1521 = vmatprep.mubr.bf16.mxu0 0
  %1522 = vmatmul.mubr.bf16.gmra.mrb[0].mxu0 %v1474
  %v1523 = vpop.f32.mrb[0].mxu0
  %v1524 = vadd.f32 0.0, %v1523
  %v1525 = vpop.f32.mrb[0].mxu0
  %v1526 = vpop.f32.mrb[0].mxu0
  %v1527 = vadd.f32 0.0, %v1526
  %v1528 = vpop.f32.mrb[0].mxu0
  %1529 = vmatprep.mubr.bf16.mxu0 0
  %1530 = vmatmul.mubr.bf16.gmra.mrb[0].mxu0 %v1475
  %v1531 = vpop.f32.mrb[0].mxu0
  %v1532 = vadd.f32 0.0, %v1531
  %v1533 = vpop.f32.mrb[0].mxu0
  %v1534 = vpop.f32.mrb[0].mxu0
  %v1535 = vadd.f32 0.0, %v1534
  %v1536 = vpop.f32.mrb[0].mxu0
  %1537 = vmatprep.mubr.bf16.mxu0 0
  %1538 = vmatmul.mubr.bf16.gmra.mrb[0].mxu0 %v1476
  %v1539 = vpop.f32.mrb[0].mxu0
  %v1540 = vadd.f32 0.0, %v1539
  %v1541 = vpop.f32.mrb[0].mxu0
  %v1542 = vpop.f32.mrb[0].mxu0
  %v1543 = vadd.f32 0.0, %v1542
  %v1544 = vpop.f32.mrb[0].mxu0
  %1545 = vmatprep.mubr.bf16.mxu0 0
  %1546 = vmatmul.mubr.bf16.gmra.mrb[0].mxu0 %v1477
  %v1547 = vpop.f32.mrb[0].mxu0
  %v1548 = vadd.f32 0.0, %v1547
  %v1549 = vpop.f32.mrb[0].mxu0
  %v1550 = vpop.f32.mrb[0].mxu0
  %v1551 = vadd.f32 0.0, %v1550
  %v1552 = vpop.f32.mrb[0].mxu0
  %1553 = vmatprep.mubr.bf16.mxu0 0
  %1554 = vmatmul.mubr.bf16.gmra.mrb[0].mxu0 %v1478
  %v1555 = vpop.f32.mrb[0].mxu0
  %v1556 = vadd.f32 0.0, %v1555
  %v1557 = vpop.f32.mrb[0].mxu0
  %v1558 = vpop.f32.mrb[0].mxu0
  %v1559 = vadd.f32 0.0, %v1558
  %v1560 = vpop.f32.mrb[0].mxu0
  %1561 = vmatprep.mubr.bf16.mxu0 0
  %1562 = vmatmul.mubr.bf16.gmra.mrb[0].mxu0 %v1479
  %v1563 = vpop.f32.mrb[0].mxu0
  %v1564 = vadd.f32 0.0, %v1563
  %v1565 = vpop.f32.mrb[0].mxu0
  %v1566 = vpop.f32.mrb[0].mxu0
  %v1567 = vadd.f32 0.0, %v1566
  %v1568 = vpop.f32.mrb[0].mxu0
  %1569 = vmatprep.mubr.bf16.mxu0 0
  %1570 = vmatmul.mubr.bf16.gmra.mrb[0].mxu0 %v1480
  %v1571 = vpop.f32.mrb[0].mxu0
  %v1572 = vadd.f32 0.0, %v1571
  %v1573 = vpop.f32.mrb[0].mxu0
  %v1574 = vpop.f32.mrb[0].mxu0
  %v1575 = vadd.f32 0.0, %v1574
  %v1576 = vpop.f32.mrb[0].mxu0
  %1577 = vdwg.mxu0
  %v1578 = vpack.c.bf16 %v1519, %v1516
  %v1579 = vpack.c.bf16 %v1527, %v1524
  %v1580 = vpack.c.bf16 %v1535, %v1532
  %v1581 = vpack.c.bf16 %v1543, %v1540
  %v1582 = vpack.c.bf16 %v1551, %v1548
  %v1583 = vpack.c.bf16 %v1559, %v1556
  %v1584 = vpack.c.bf16 %v1567, %v1564
  %v1585 = vpack.c.bf16 %v1575, %v1572
  %1586 = vmatprep.subr.bf16.mxu0 0
  %1587 = vmatpush1.bf16.msra.mxu0 %v113
  %1588 = vmatprep.subr.bf16.mxu0 0
  %1589 = vmatpush1.bf16.msra.mxu0 %v114
  %1590 = vmatprep.subr.bf16.mxu0 0
  %1591 = vmatpush1.bf16.msra.mxu0 %v115
  %1592 = vmatprep.subr.bf16.mxu0 0
  %1593 = vmatpush1.bf16.msra.mxu0 %v116
  %1594 = vmatprep.subr.bf16.mxu0 0
  %1595 = vmatpush1.bf16.msra.mxu0 %v117
  %1596 = vmatprep.subr.bf16.mxu0 0
  %1597 = vmatpush1.bf16.msra.mxu0 %v118
  %1598 = vmatprep.subr.bf16.mxu0 0
  %1599 = vmatpush1.bf16.msra.mxu0 %v119
  %1600 = vmatprep.subr.bf16.mxu0 0
  %1601 = vmatpush1.bf16.msra.mxu0 %v120
  %1602 = vmatprep.subr.bf16.mxu0 0
  %1603 = vmatpush1.bf16.msra.mxu0 0
  %1604 = vmatprep.subr.bf16.mxu0 0
  %1605 = vmatpush1.bf16.msra.mxu0 0
  %1606 = vmatprep.subr.bf16.mxu0 0
  %1607 = vmatpush1.bf16.msra.mxu0 0
  %1608 = vmatprep.subr.bf16.mxu0 0
  %1609 = vmatpush1.bf16.msra.mxu0 0
  %1610 = vmatprep.subr.bf16.mxu0 0
  %1611 = vmatpush1.bf16.msra.mxu0 0
  %1612 = vmatprep.subr.bf16.mxu0 0
  %1613 = vmatpush1.bf16.msra.mxu0 0
  %1614 = vmatprep.subr.bf16.mxu0 0
  %1615 = vmatpush1.bf16.msra.mxu0 0
  %1616 = vmatprep.subr.bf16.mxu0 0
  %1617 = vmatpush1.bf16.msra.mxu0 0
  %1618 = vmatprep.mubr.bf16.mxu0 0
  %1619 = vmatmul.mubr.bf16.gmra.mrb[0].mxu0 %v1578
  %v1620 = vpop.f32.mrb[0].mxu0
  %v1621 = vadd.f32 0.0, %v1620
  %v1622 = vpop.f32.mrb[0].mxu0
  %v1623 = vpop.f32.mrb[0].mxu0
  %v1624 = vadd.f32 0.0, %v1623
  %v1625 = vpop.f32.mrb[0].mxu0
  %1626 = vmatprep.mubr.bf16.mxu0 0
  %1627 = vmatmul.mubr.bf16.gmra.mrb[0].mxu0 %v1579
  %v1628 = vpop.f32.mrb[0].mxu0
  %v1629 = vadd.f32 0.0, %v1628
  %v1630 = vpop.f32.mrb[0].mxu0
  %v1631 = vpop.f32.mrb[0].mxu0
  %v1632 = vadd.f32 0.0, %v1631
  %v1633 = vpop.f32.mrb[0].mxu0
  %1634 = vmatprep.mubr.bf16.mxu0 0
  %1635 = vmatmul.mubr.bf16.gmra.mrb[0].mxu0 %v1580
  %v1636 = vpop.f32.mrb[0].mxu0
  %v1637 = vadd.f32 0.0, %v1636
  %v1638 = vpop.f32.mrb[0].mxu0
  %v1639 = vpop.f32.mrb[0].mxu0
  %v1640 = vadd.f32 0.0, %v1639
  %v1641 = vpop.f32.mrb[0].mxu0
  %1642 = vmatprep.mubr.bf16.mxu0 0
  %1643 = vmatmul.mubr.bf16.gmra.mrb[0].mxu0 %v1581
  %v1644 = vpop.f32.mrb[0].mxu0
  %v1645 = vadd.f32 0.0, %v1644
  %v1646 = vpop.f32.mrb[0].mxu0
  %v1647 = vpop.f32.mrb[0].mxu0
  %v1648 = vadd.f32 0.0, %v1647
  %v1649 = vpop.f32.mrb[0].mxu0
  %1650 = vmatprep.mubr.bf16.mxu0 0
  %1651 = vmatmul.mubr.bf16.gmra.mrb[0].mxu0 %v1582
  %v1652 = vpop.f32.mrb[0].mxu0
  %v1653 = vadd.f32 0.0, %v1652
  %v1654 = vpop.f32.mrb[0].mxu0
  %v1655 = vpop.f32.mrb[0].mxu0
  %v1656 = vadd.f32 0.0, %v1655
  %v1657 = vpop.f32.mrb[0].mxu0
  %1658 = vmatprep.mubr.bf16.mxu0 0
  %1659 = vmatmul.mubr.bf16.gmra.mrb[0].mxu0 %v1583
  %v1660 = vpop.f32.mrb[0].mxu0
  %v1661 = vadd.f32 0.0, %v1660
  %v1662 = vpop.f32.mrb[0].mxu0
  %v1663 = vpop.f32.mrb[0].mxu0
  %v1664 = vadd.f32 0.0, %v1663
  %v1665 = vpop.f32.mrb[0].mxu0
  %1666 = vmatprep.mubr.bf16.mxu0 0
  %1667 = vmatmul.mubr.bf16.gmra.mrb[0].mxu0 %v1584
  %v1668 = vpop.f32.mrb[0].mxu0
  %v1669 = vadd.f32 0.0, %v1668
  %v1670 = vpop.f32.mrb[0].mxu0
  %v1671 = vpop.f32.mrb[0].mxu0
  %v1672 = vadd.f32 0.0, %v1671
  %v1673 = vpop.f32.mrb[0].mxu0
  %1674 = vmatprep.mubr.bf16.mxu0 0
  %1675 = vmatmul.mubr.bf16.gmra.mrb[0].mxu0 %v1585
  %v1676 = vpop.f32.mrb[0].mxu0
  %v1677 = vadd.f32 0.0, %v1676
  %v1678 = vpop.f32.mrb[0].mxu0
  %v1679 = vpop.f32.mrb[0].mxu0
  %v1680 = vadd.f32 0.0, %v1679
  %v1681 = vpop.f32.mrb[0].mxu0
  %1682 = vdwg.mxu0
  %v1683 = vmul.f32 %v1621, 2.0
  %v1684 = vmul.f32 %v1624, 2.0
  %v1685 = vmul.f32 %v1629, 2.0
  %v1686 = vmul.f32 %v1632, 2.0
  %v1687 = vmul.f32 %v1637, 2.0
  %v1688 = vmul.f32 %v1640, 2.0
  %v1689 = vmul.f32 %v1645, 2.0
  %v1690 = vmul.f32 %v1648, 2.0
  %v1691 = vmul.f32 %v1653, 2.0
  %v1692 = vmul.f32 %v1656, 2.0
  %v1693 = vmul.f32 %v1661, 2.0
  %v1694 = vmul.f32 %v1664, 2.0
  %v1695 = vmul.f32 %v1669, 2.0
  %v1696 = vmul.f32 %v1672, 2.0
  %v1697 = vmul.f32 %v1677, 2.0
  %v1698 = vmul.f32 %v1680, 2.0
  %v1699 = vsub.f32 %v1683, %v1448
  %v1700 = vsub.f32 %v1684, %v1449
  %v1701 = vsub.f32 %v1685, %v1450
  %v1702 = vsub.f32 %v1686, %v1451
  %v1703 = vsub.f32 %v1687, %v1465
  %v1704 = vsub.f32 %v1688, %v1466
  %v1705 = vsub.f32 %v1689, %v1467
  %v1706 = vsub.f32 %v1690, %v1468
  %v1707 = vsub.f32 %v1691, %v1452
  %v1708 = vsub.f32 %v1692, %v1453
  %v1709 = vsub.f32 %v1693, %v1454
  %v1710 = vsub.f32 %v1694, %v1455
  %v1711 = vsub.f32 %v1695, %v1469
  %v1712 = vsub.f32 %v1696, %v1470
  %v1713 = vsub.f32 %v1697, %v1471
  %v1714 = vsub.f32 %v1698, %v1472
  %1715 = vmatprep.subr.bf16.mxu0 0
  %1716 = vmatpush1.bf16.msra.mxu0 %v332
  %1717 = vmatprep.subr.bf16.mxu0 0
  %1718 = vmatpush1.bf16.msra.mxu0 %v333
  %1719 = vmatprep.subr.bf16.mxu0 0
  %1720 = vmatpush1.bf16.msra.mxu0 %v334
  %1721 = vmatprep.subr.bf16.mxu0 0
  %1722 = vmatpush1.bf16.msra.mxu0 %v335
  %1723 = vmatprep.subr.bf16.mxu0 0
  %1724 = vmatpush1.bf16.msra.mxu0 %v336
  %1725 = vmatprep.subr.bf16.mxu0 0
  %1726 = vmatpush1.bf16.msra.mxu0 %v337
  %1727 = vmatprep.subr.bf16.mxu0 0
  %1728 = vmatpush1.bf16.msra.mxu0 %v338
  %1729 = vmatprep.subr.bf16.mxu0 0
  %1730 = vmatpush1.bf16.msra.mxu0 %v339
  %1731 = vmatprep.subr.bf16.mxu0 0
  %1732 = vmatpush1.bf16.msra.mxu0 0
  %1733 = vmatprep.subr.bf16.mxu0 0
  %1734 = vmatpush1.bf16.msra.mxu0 0
  %1735 = vmatprep.subr.bf16.mxu0 0
  %1736 = vmatpush1.bf16.msra.mxu0 0
  %1737 = vmatprep.subr.bf16.mxu0 0
  %1738 = vmatpush1.bf16.msra.mxu0 0
  %1739 = vmatprep.subr.bf16.mxu0 0
  %1740 = vmatpush1.bf16.msra.mxu0 0
  %1741 = vmatprep.subr.bf16.mxu0 0
  %1742 = vmatpush1.bf16.msra.mxu0 0
  %1743 = vmatprep.subr.bf16.mxu0 0
  %1744 = vmatpush1.bf16.msra.mxu0 0
  %1745 = vmatprep.subr.bf16.mxu0 0
  %1746 = vmatpush1.bf16.msra.mxu0 0
  %1747 = vmatprep.mubr.bf16.mxu0 0
  %1748 = vmatmul.mubr.bf16.gmra.mrb[0].mxu0 %v1578
  %v1749 = vpop.f32.mrb[0].mxu0
  %v1750 = vadd.f32 0.0, %v1749
  %v1751 = vpop.f32.mrb[0].mxu0
  %v1752 = vpop.f32.mrb[0].mxu0
  %v1753 = vadd.f32 0.0, %v1752
  %v1754 = vpop.f32.mrb[0].mxu0
  %1755 = vmatprep.mubr.bf16.mxu0 0
  %1756 = vmatmul.mubr.bf16.gmra.mrb[0].mxu0 %v1579
  %v1757 = vpop.f32.mrb[0].mxu0
  %v1758 = vadd.f32 0.0, %v1757
  %v1759 = vpop.f32.mrb[0].mxu0
  %v1760 = vpop.f32.mrb[0].mxu0
  %v1761 = vadd.f32 0.0, %v1760
  %v1762 = vpop.f32.mrb[0].mxu0
  %1763 = vmatprep.mubr.bf16.mxu0 0
  %1764 = vmatmul.mubr.bf16.gmra.mrb[0].mxu0 %v1580
  %v1765 = vpop.f32.mrb[0].mxu0
  %v1766 = vadd.f32 0.0, %v1765
  %v1767 = vpop.f32.mrb[0].mxu0
  %v1768 = vpop.f32.mrb[0].mxu0
  %v1769 = vadd.f32 0.0, %v1768
  %v1770 = vpop.f32.mrb[0].mxu0
  %1771 = vmatprep.mubr.bf16.mxu0 0
  %1772 = vmatmul.mubr.bf16.gmra.mrb[0].mxu0 %v1581
  %v1773 = vpop.f32.mrb[0].mxu0
  %v1774 = vadd.f32 0.0, %v1773
  %v1775 = vpop.f32.mrb[0].mxu0
  %v1776 = vpop.f32.mrb[0].mxu0
  %v1777 = vadd.f32 0.0, %v1776
  %v1778 = vpop.f32.mrb[0].mxu0
  %1779 = vmatprep.mubr.bf16.mxu0 0
  %1780 = vmatmul.mubr.bf16.gmra.mrb[0].mxu0 %v1582
  %v1781 = vpop.f32.mrb[0].mxu0
  %v1782 = vadd.f32 0.0, %v1781
  %v1783 = vpop.f32.mrb[0].mxu0
  %v1784 = vpop.f32.mrb[0].mxu0
  %v1785 = vadd.f32 0.0, %v1784
  %v1786 = vpop.f32.mrb[0].mxu0
  %1787 = vmatprep.mubr.bf16.mxu0 0
  %1788 = vmatmul.mubr.bf16.gmra.mrb[0].mxu0 %v1583
  %v1789 = vpop.f32.mrb[0].mxu0
  %v1790 = vadd.f32 0.0, %v1789
  %v1791 = vpop.f32.mrb[0].mxu0
  %v1792 = vpop.f32.mrb[0].mxu0
  %v1793 = vadd.f32 0.0, %v1792
  %v1794 = vpop.f32.mrb[0].mxu0
  %1795 = vmatprep.mubr.bf16.mxu0 0
  %1796 = vmatmul.mubr.bf16.gmra.mrb[0].mxu0 %v1584
  %v1797 = vpop.f32.mrb[0].mxu0
  %v1798 = vadd.f32 0.0, %v1797
  %v1799 = vpop.f32.mrb[0].mxu0
  %v1800 = vpop.f32.mrb[0].mxu0
  %v1801 = vadd.f32 0.0, %v1800
  %v1802 = vpop.f32.mrb[0].mxu0
  %1803 = vmatprep.mubr.bf16.mxu0 0
  %1804 = vmatmul.mubr.bf16.gmra.mrb[0].mxu0 %v1585
  %v1805 = vpop.f32.mrb[0].mxu0
  %v1806 = vadd.f32 0.0, %v1805
  %v1807 = vpop.f32.mrb[0].mxu0
  %v1808 = vpop.f32.mrb[0].mxu0
  %v1809 = vadd.f32 0.0, %v1808
  %v1810 = vpop.f32.mrb[0].mxu0
  %1811 = vdwg.mxu0
  %v1812 = vpack.c.bf16 %v1753, %v1750
  %v1813 = vpack.c.bf16 %v1761, %v1758
  %v1814 = vpack.c.bf16 %v1769, %v1766
  %v1815 = vpack.c.bf16 %v1777, %v1774
  %v1816 = vpack.c.bf16 %v1785, %v1782
  %v1817 = vpack.c.bf16 %v1793, %v1790
  %v1818 = vpack.c.bf16 %v1801, %v1798
  %v1819 = vpack.c.bf16 %v1809, %v1806
  %1820 = vmatprep.subr.bf16.mxu0 0
  %1821 = vmatpush1.bf16.msra.mxu0 %v332
  %1822 = vmatprep.subr.bf16.mxu0 0
  %1823 = vmatpush1.bf16.msra.mxu0 %v333
  %1824 = vmatprep.subr.bf16.mxu0 0
  %1825 = vmatpush1.bf16.msra.mxu0 %v334
  %1826 = vmatprep.subr.bf16.mxu0 0
  %1827 = vmatpush1.bf16.msra.mxu0 %v335
  %1828 = vmatprep.subr.bf16.mxu0 0
  %1829 = vmatpush1.bf16.msra.mxu0 %v336
  %1830 = vmatprep.subr.bf16.mxu0 0
  %1831 = vmatpush1.bf16.msra.mxu0 %v337
  %1832 = vmatprep.subr.bf16.mxu0 0
  %1833 = vmatpush1.bf16.msra.mxu0 %v338
  %1834 = vmatprep.subr.bf16.mxu0 0
  %1835 = vmatpush1.bf16.msra.mxu0 %v339
  %1836 = vmatprep.subr.bf16.mxu0 0
  %1837 = vmatpush1.bf16.msra.mxu0 0
  %1838 = vmatprep.subr.bf16.mxu0 0
  %1839 = vmatpush1.bf16.msra.mxu0 0
  %1840 = vmatprep.subr.bf16.mxu0 0
  %1841 = vmatpush1.bf16.msra.mxu0 0
  %1842 = vmatprep.subr.bf16.mxu0 0
  %1843 = vmatpush1.bf16.msra.mxu0 0
  %1844 = vmatprep.subr.bf16.mxu0 0
  %1845 = vmatpush1.bf16.msra.mxu0 0
  %1846 = vmatprep.subr.bf16.mxu0 0
  %1847 = vmatpush1.bf16.msra.mxu0 0
  %1848 = vmatprep.subr.bf16.mxu0 0
  %1849 = vmatpush1.bf16.msra.mxu0 0
  %1850 = vmatprep.subr.bf16.mxu0 0
  %1851 = vmatpush1.bf16.msra.mxu0 0
  %1852 = vmatprep.mubr.bf16.mxu0 0
  %1853 = vmatmul.mubr.bf16.gmra.mrb[0].mxu0 %v1812
  %v1854 = vpop.f32.mrb[0].mxu0
  %v1855 = vadd.f32 0.0, %v1854
  %v1856 = vpop.f32.mrb[0].mxu0
  %v1857 = vpop.f32.mrb[0].mxu0
  %v1858 = vadd.f32 0.0, %v1857
  %v1859 = vpop.f32.mrb[0].mxu0
  %1860 = vmatprep.mubr.bf16.mxu0 0
  %1861 = vmatmul.mubr.bf16.gmra.mrb[0].mxu0 %v1813
  %v1862 = vpop.f32.mrb[0].mxu0
  %v1863 = vadd.f32 0.0, %v1862
  %v1864 = vpop.f32.mrb[0].mxu0
  %v1865 = vpop.f32.mrb[0].mxu0
  %v1866 = vadd.f32 0.0, %v1865
  %v1867 = vpop.f32.mrb[0].mxu0
  %1868 = vmatprep.mubr.bf16.mxu0 0
  %1869 = vmatmul.mubr.bf16.gmra.mrb[0].mxu0 %v1814
  %v1870 = vpop.f32.mrb[0].mxu0
  %v1871 = vadd.f32 0.0, %v1870
  %v1872 = vpop.f32.mrb[0].mxu0
  %v1873 = vpop.f32.mrb[0].mxu0
  %v1874 = vadd.f32 0.0, %v1873
  %v1875 = vpop.f32.mrb[0].mxu0
  %1876 = vmatprep.mubr.bf16.mxu0 0
  %1877 = vmatmul.mubr.bf16.gmra.mrb[0].mxu0 %v1815
  %v1878 = vpop.f32.mrb[0].mxu0
  %v1879 = vadd.f32 0.0, %v1878
  %v1880 = vpop.f32.mrb[0].mxu0
  %v1881 = vpop.f32.mrb[0].mxu0
  %v1882 = vadd.f32 0.0, %v1881
  %v1883 = vpop.f32.mrb[0].mxu0
  %1884 = vmatprep.mubr.bf16.mxu0 0
  %1885 = vmatmul.mubr.bf16.gmra.mrb[0].mxu0 %v1816
  %v1886 = vpop.f32.mrb[0].mxu0
  %v1887 = vadd.f32 0.0, %v1886
  %v1888 = vpop.f32.mrb[0].mxu0
  %v1889 = vpop.f32.mrb[0].mxu0
  %v1890 = vadd.f32 0.0, %v1889
  %v1891 = vpop.f32.mrb[0].mxu0
  %1892 = vmatprep.mubr.bf16.mxu0 0
  %1893 = vmatmul.mubr.bf16.gmra.mrb[0].mxu0 %v1817
  %v1894 = vpop.f32.mrb[0].mxu0
  %v1895 = vadd.f32 0.0, %v1894
  %v1896 = vpop.f32.mrb[0].mxu0
  %v1897 = vpop.f32.mrb[0].mxu0
  %v1898 = vadd.f32 0.0, %v1897
  %v1899 = vpop.f32.mrb[0].mxu0
  %1900 = vmatprep.mubr.bf16.mxu0 0
  %1901 = vmatmul.mubr.bf16.gmra.mrb[0].mxu0 %v1818
  %v1902 = vpop.f32.mrb[0].mxu0
  %v1903 = vadd.f32 0.0, %v1902
  %v1904 = vpop.f32.mrb[0].mxu0
  %v1905 = vpop.f32.mrb[0].mxu0
  %v1906 = vadd.f32 0.0, %v1905
  %v1907 = vpop.f32.mrb[0].mxu0
  %1908 = vmatprep.mubr.bf16.mxu0 0
  %1909 = vmatmul.mubr.bf16.gmra.mrb[0].mxu0 %v1819
  %v1910 = vpop.f32.mrb[0].mxu0
  %v1911 = vadd.f32 0.0, %v1910
  %v1912 = vpop.f32.mrb[0].mxu0
  %v1913 = vpop.f32.mrb[0].mxu0
  %v1914 = vadd.f32 0.0, %v1913
  %v1915 = vpop.f32.mrb[0].mxu0
  %1916 = vdwg.mxu0
  %v1917 = vmul.f32 %v1855, 2.0
  %v1918 = vmul.f32 %v1858, 2.0
  %v1919 = vmul.f32 %v1863, 2.0
  %v1920 = vmul.f32 %v1866, 2.0
  %v1921 = vmul.f32 %v1871, 2.0
  %v1922 = vmul.f32 %v1874, 2.0
  %v1923 = vmul.f32 %v1879, 2.0
  %v1924 = vmul.f32 %v1882, 2.0
  %v1925 = vmul.f32 %v1887, 2.0
  %v1926 = vmul.f32 %v1890, 2.0
  %v1927 = vmul.f32 %v1895, 2.0
  %v1928 = vmul.f32 %v1898, 2.0
  %v1929 = vmul.f32 %v1903, 2.0
  %v1930 = vmul.f32 %v1906, 2.0
  %v1931 = vmul.f32 %v1911, 2.0
  %v1932 = vmul.f32 %v1914, 2.0
  %v1933 = vsub.f32 %v1917, %v1516
  %v1934 = vsub.f32 %v1918, %v1519
  %v1935 = vsub.f32 %v1919, %v1524
  %v1936 = vsub.f32 %v1920, %v1527
  %v1937 = vsub.f32 %v1921, %v1532
  %v1938 = vsub.f32 %v1922, %v1535
  %v1939 = vsub.f32 %v1923, %v1540
  %v1940 = vsub.f32 %v1924, %v1543
  %v1941 = vsub.f32 %v1925, %v1548
  %v1942 = vsub.f32 %v1926, %v1551
  %v1943 = vsub.f32 %v1927, %v1556
  %v1944 = vsub.f32 %v1928, %v1559
  %v1945 = vsub.f32 %v1929, %v1564
  %v1946 = vsub.f32 %v1930, %v1567
  %v1947 = vsub.f32 %v1931, %v1572
  %v1948 = vsub.f32 %v1932, %v1575
  %v1949 = vld [vmem:[%s6] sm:$0xff]
  %v1950 = vld [vmem:[%s6 + $0x8] sm:$0xf]
  %v1951 = vld [vmem:[%s6 + $0xc] sm:$0xff]
  %v1952 = vld [vmem:[%s6 + $0x14] sm:$0xf]
  %v1953 = vld [vmem:[%s6 + $0x18] sm:$0xff]
  %v1954 = vld [vmem:[%s6 + $0x20] sm:$0xf]
  %v1955 = vld [vmem:[%s6 + $0x24] sm:$0xff]
  %v1956 = vld [vmem:[%s6 + $0x2c] sm:$0xf]
  %v1957 = vld [vmem:[%s6 + $0x30] sm:$0xff]
  %v1958 = vld [vmem:[%s6 + $0x38] sm:$0xf]
  %v1959 = vld [vmem:[%s6 + $0x3c] sm:$0xff]
  %v1960 = vld [vmem:[%s6 + $0x44] sm:$0xf]
  %v1961 = vld [vmem:[%s6 + $0x48] sm:$0xff]
  %v1962 = vld [vmem:[%s6 + $0x50] sm:$0xf]
  %v1963 = vld [vmem:[%s6 + $0x54] sm:$0xff]
  %v1964 = vld [vmem:[%s6 + $0x5c] sm:$0xf]
  %v1965 = vld [vmem:[%s6 + $0x60] sm:$0xff]
  %v1966 = vld [vmem:[%s6 + $0x68] sm:$0xf]
  %v1967 = vld [vmem:[%s6 + $0x6c] sm:$0xff]
  %v1968 = vld [vmem:[%s6 + $0x74] sm:$0xf]
  %v1969 = vld [vmem:[%s6 + $0x78] sm:$0xff]
  %v1970 = vld [vmem:[%s6 + $0x80] sm:$0xf]
  %v1971 = vld [vmem:[%s6 + $0x84] sm:$0xff]
  %v1972 = vld [vmem:[%s6 + $0x8c] sm:$0xf]
  %v1973 = vld [vmem:[%s7] sm:$0xff]
  %v1974 = vld [vmem:[%s7 + $0x8] sm:$0xff]
  %v1975 = vld [vmem:[%s7 + $0x10] sm:$0xff]
  %v1976 = vld [vmem:[%s7 + $0x18] sm:$0xff]
  %v1977 = vld [vmem:[%s7 + $0x20] sm:$0xff]
  %v1978 = vld [vmem:[%s7 + $0x28] sm:$0xff]
  %v1979 = vld [vmem:[%s7 + $0x30] sm:$0xff]
  %v1980 = vld [vmem:[%s7 + $0x38] sm:$0xff]
  %v1981 = vld [vmem:[%s7 + $0x40] sm:$0xff]
  %v1982 = vld [vmem:[%s7 + $0x48] sm:$0xff]
  %v1983 = vld [vmem:[%s7 + $0x50] sm:$0xff]
  %v1984 = vld [vmem:[%s7 + $0x58] sm:$0xff]
  %v1985 = vld [vmem:[%s8] sm:$0xff]
  %v1986 = vld [vmem:[%s8 + $0x8] sm:$0xff]
  %v1987 = vld [vmem:[%s8 + $0x10] sm:$0xff]
  %v1988 = vld [vmem:[%s8 + $0x18] sm:$0xff]
  %v1989 = vpack.c.bf16 %v1700, %v1699
  %v1990 = vpack.c.bf16 %v1702, %v1701
  %v1991 = vpack.c.bf16 %v1704, %v1703
  %v1992 = vpack.c.bf16 %v1706, %v1705
  %v1993 = vpack.c.bf16 %v1934, %v1933
  %v1994 = vpack.c.bf16 %v1936, %v1935
  %v1995 = vpack.c.bf16 %v1938, %v1937
  %v1996 = vpack.c.bf16 %v1940, %v1939
  %1998 = vset.pattern.permute.xlu0 0
  %1999 = vperm.xlu0 %1998, %v1973
  %v2000 = vpop.permute.xlu0 %1999
  %2003 = vset.pattern.permute.xlu0 0
  %2004 = vperm.xlu0 %2003, %v1974
  %v2005 = vpop.permute.xlu0 %2004
  %2008 = vset.pattern.permute.xlu0 0
  %2009 = vperm.xlu0 %2008, %v1975
  %v2010 = vpop.permute.xlu0 %2009
  %2013 = vset.pattern.permute.xlu0 0
  %2014 = vperm.xlu0 %2013, %v1976
  %v2015 = vpop.permute.xlu0 %2014
  %2018 = vset.pattern.permute.xlu0 0
  %2019 = vperm.xlu0 %2018, %v1977
  %v2020 = vpop.permute.xlu0 %2019
  %2023 = vset.pattern.permute.xlu0 0
  %2024 = vperm.xlu0 %2023, %v1978
  %v2025 = vpop.permute.xlu0 %2024
  %2028 = vset.pattern.permute.xlu0 0
  %2029 = vperm.xlu0 %2028, %v1979
  %v2030 = vpop.permute.xlu0 %2029
  %2033 = vset.pattern.permute.xlu0 0
  %2034 = vperm.xlu0 %2033, %v1980
  %v2035 = vpop.permute.xlu0 %2034
  %2038 = vset.pattern.permute.xlu0 0
  %2039 = vperm.xlu0 %2038, %v1981
  %v2040 = vpop.permute.xlu0 %2039
  %2043 = vset.pattern.permute.xlu0 0
  %2044 = vperm.xlu0 %2043, %v1982
  %v2045 = vpop.permute.xlu0 %2044
  %2048 = vset.pattern.permute.xlu0 0
  %2049 = vperm.xlu0 %2048, %v1983
  %v2050 = vpop.permute.xlu0 %2049
  %2053 = vset.pattern.permute.xlu0 0
  %2054 = vperm.xlu0 %2053, %v1984
  %v2055 = vpop.permute.xlu0 %2054
  %v2081 = vunpack.c.l.b16 %v1949
  %v2082 = vunpack.c.h.b16 %v1949
  %v2083 = vunpack.c.l.b16 %v1950
  %v2084 = vunpack.c.l.b16 %v1951
  %v2085 = vunpack.c.h.b16 %v1951
  %v2086 = vunpack.c.l.b16 %v1952
  %v2087 = vunpack.c.l.b16 %v1953
  %v2088 = vunpack.c.h.b16 %v1953
  %v2089 = vunpack.c.l.b16 %v1954
  %v2090 = vunpack.c.l.b16 %v1955
  %v2091 = vunpack.c.h.b16 %v1955
  %v2092 = vunpack.c.l.b16 %v1956
  %v2093 = vunpack.c.l.b16 %v1957
  %v2094 = vunpack.c.h.b16 %v1957
  %v2095 = vunpack.c.l.b16 %v1958
  %v2096 = vunpack.c.l.b16 %v1959
  %v2097 = vunpack.c.h.b16 %v1959
  %v2098 = vunpack.c.l.b16 %v1960
  %v2099 = vunpack.c.l.b16 %v1961
  %v2100 = vunpack.c.h.b16 %v1961
  %v2101 = vunpack.c.l.b16 %v1962
  %v2102 = vunpack.c.l.b16 %v1963
  %v2103 = vunpack.c.h.b16 %v1963
  %v2104 = vunpack.c.l.b16 %v1964
  %v2105 = vunpack.c.l.b16 %v1965
  %v2106 = vunpack.c.h.b16 %v1965
  %v2107 = vunpack.c.l.b16 %v1966
  %v2108 = vunpack.c.l.b16 %v1967
  %v2109 = vunpack.c.h.b16 %v1967
  %v2110 = vunpack.c.l.b16 %v1968
  %v2111 = vunpack.c.l.b16 %v1969
  %v2112 = vunpack.c.h.b16 %v1969
  %v2113 = vunpack.c.l.b16 %v1970
  %v2114 = vunpack.c.l.b16 %v1971
  %v2115 = vunpack.c.h.b16 %v1971
  %v2116 = vunpack.c.l.b16 %v1972
  %v2117 = vpack.c.b16 %v2084, %v2081
  %v2118 = vpack.c.b16 %v2085, %v2082
  %v2119 = vpack.c.b16 %v2086, %v2083
  %v2120 = vpack.c.b16 %v2090, %v2087
  %v2121 = vpack.c.b16 %v2091, %v2088
  %v2122 = vpack.c.b16 %v2092, %v2089
  %v2123 = vpack.c.b16 %v2096, %v2093
  %v2124 = vpack.c.b16 %v2097, %v2094
  %v2125 = vpack.c.b16 %v2098, %v2095
  %v2126 = vpack.c.b16 %v2102, %v2099
  %v2127 = vpack.c.b16 %v2103, %v2100
  %v2128 = vpack.c.b16 %v2104, %v2101
  %v2129 = vpack.c.b16 %v2108, %v2105
  %v2130 = vpack.c.b16 %v2109, %v2106
  %v2131 = vpack.c.b16 %v2110, %v2107
  %v2132 = vpack.c.b16 %v2114, %v2111
  %v2133 = vpack.c.b16 %v2115, %v2112
  %v2134 = vpack.c.b16 %v2116, %v2113
  %vm2147 = vcmask 523264
  %v2149 = vsel %vm2147, %v2119, 0
  %v2152 = vsel %vm2147, %v2122, 0
  %v2155 = vsel %vm2147, %v2125, 0
  %v2158 = vsel %vm2147, %v2128, 0
  %v2161 = vsel %vm2147, %v2131, 0
  %v2164 = vsel %vm2147, %v2134, 0
  %2166 = vmatprep.subr.bf16.mxu0 0
  %2167 = vmatpush1.bf16.msra.mxu0 %v1473
  %2168 = vmatprep.subr.bf16.mxu0 0
  %2169 = vmatpush1.bf16.msra.mxu0 %v1474
  %2170 = vmatprep.subr.bf16.mxu0 0
  %2171 = vmatpush1.bf16.msra.mxu0 %v1475
  %2172 = vmatprep.subr.bf16.mxu0 0
  %2173 = vmatpush1.bf16.msra.mxu0 %v1476
  %2174 = vmatprep.subr.bf16.mxu0 0
  %2175 = vmatpush1.bf16.msra.mxu0 %v1578
  %2176 = vmatprep.subr.bf16.mxu0 0
  %2177 = vmatpush1.bf16.msra.mxu0 %v1579
  %2178 = vmatprep.subr.bf16.mxu0 0
  %2179 = vmatpush1.bf16.msra.mxu0 %v1580
  %2180 = vmatprep.subr.bf16.mxu0 0
  %2181 = vmatpush1.bf16.msra.mxu0 %v1581
  %2182 = vmatprep.subr.bf16.mxu0 0
  %2183 = vmatpush1.bf16.msra.mxu0 %v1989
  %2184 = vmatprep.subr.bf16.mxu0 0
  %2185 = vmatpush1.bf16.msra.mxu0 %v1990
  %2186 = vmatprep.subr.bf16.mxu0 0
  %2187 = vmatpush1.bf16.msra.mxu0 %v1991
  %2188 = vmatprep.subr.bf16.mxu0 0
  %2189 = vmatpush1.bf16.msra.mxu0 %v1992
  %2190 = vmatprep.subr.bf16.mxu0 0
  %2191 = vmatpush1.bf16.msra.mxu0 %v1812
  %2192 = vmatprep.subr.bf16.mxu0 0
  %2193 = vmatpush1.bf16.msra.mxu0 %v1813
  %2194 = vmatprep.subr.bf16.mxu0 0
  %2195 = vmatpush1.bf16.msra.mxu0 %v1814
  %2196 = vmatprep.subr.bf16.mxu0 0
  %2197 = vmatpush1.bf16.msra.mxu0 %v1815
  %2198 = vmatprep.mubr.bf16.mxu0 %v2118
  %2199 = vmatmul.mubr.bf16.gmra.mrb[0].mxu0 %v2117
  %v2200 = vpop.f32.mrb[0].mxu0
  %v2201 = vadd.f32 %v2000, %v2200
  %v2202 = vpop.f32.mrb[0].mxu0
  %v2203 = vpop.f32.mrb[0].mxu0
  %v2204 = vadd.f32 %v2005, %v2203
  %v2205 = vpop.f32.mrb[0].mxu0
  %2206 = vmatprep.mubr.bf16.mxu0 %v2121
  %2207 = vmatmul.mubr.bf16.gmra.mrb[0].mxu0 %v2120
  %v2208 = vpop.f32.mrb[0].mxu0
  %v2209 = vadd.f32 %v2010, %v2208
  %v2210 = vpop.f32.mrb[0].mxu0
  %v2211 = vpop.f32.mrb[0].mxu0
  %v2212 = vadd.f32 %v2015, %v2211
  %v2213 = vpop.f32.mrb[0].mxu0
  %2214 = vmatprep.mubr.bf16.mxu0 %v2124
  %2215 = vmatmul.mubr.bf16.gmra.mrb[0].mxu0 %v2123
  %v2216 = vpop.f32.mrb[0].mxu0
  %v2217 = vadd.f32 %v2020, %v2216
  %v2218 = vpop.f32.mrb[0].mxu0
  %v2219 = vpop.f32.mrb[0].mxu0
  %v2220 = vadd.f32 %v2025, %v2219
  %v2221 = vpop.f32.mrb[0].mxu0
  %2222 = vmatprep.mubr.bf16.mxu0 %v2127
  %2223 = vmatmul.mubr.bf16.gmra.mrb[0].mxu0 %v2126
  %v2224 = vpop.f32.mrb[0].mxu0
  %v2225 = vadd.f32 %v2030, %v2224
  %v2226 = vpop.f32.mrb[0].mxu0
  %v2227 = vpop.f32.mrb[0].mxu0
  %v2228 = vadd.f32 %v2035, %v2227
  %v2229 = vpop.f32.mrb[0].mxu0
  %2230 = vmatprep.mubr.bf16.mxu0 %v2130
  %2231 = vmatmul.mubr.bf16.gmra.mrb[0].mxu0 %v2129
  %v2232 = vpop.f32.mrb[0].mxu0
  %v2233 = vadd.f32 %v2040, %v2232
  %v2234 = vpop.f32.mrb[0].mxu0
  %v2235 = vpop.f32.mrb[0].mxu0
  %v2236 = vadd.f32 %v2045, %v2235
  %v2237 = vpop.f32.mrb[0].mxu0
  %2238 = vmatprep.mubr.bf16.mxu0 %v2133
  %2239 = vmatmul.mubr.bf16.gmra.mrb[0].mxu0 %v2132
  %v2240 = vpop.f32.mrb[0].mxu0
  %v2241 = vadd.f32 %v2050, %v2240
  %v2242 = vpop.f32.mrb[0].mxu0
  %v2243 = vpop.f32.mrb[0].mxu0
  %v2244 = vadd.f32 %v2055, %v2243
  %v2245 = vpop.f32.mrb[0].mxu0
  %2246 = vdwg.mxu0
  %2247 = vmatprep.subr.bf16.mxu0 0
  %2248 = vmatpush1.bf16.msra.mxu0 %v1993
  %2249 = vmatprep.subr.bf16.mxu0 0
  %2250 = vmatpush1.bf16.msra.mxu0 %v1994
  %2251 = vmatprep.subr.bf16.mxu0 0
  %2252 = vmatpush1.bf16.msra.mxu0 %v1995
  %2253 = vmatprep.subr.bf16.mxu0 0
  %2254 = vmatpush1.bf16.msra.mxu0 %v1996
  %2255 = vmatprep.subr.bf16.mxu0 0
  %2256 = vmatpush1.bf16.msra.mxu0 0
  %2257 = vmatprep.subr.bf16.mxu0 0
  %2258 = vmatpush1.bf16.msra.mxu0 0
  %2259 = vmatprep.subr.bf16.mxu0 0
  %2260 = vmatpush1.bf16.msra.mxu0 0
  %2261 = vmatprep.subr.bf16.mxu0 0
  %2262 = vmatpush1.bf16.msra.mxu0 0
  %2263 = vmatprep.subr.bf16.mxu0 0
  %2264 = vmatpush1.bf16.msra.mxu0 0
  %2265 = vmatprep.subr.bf16.mxu0 0
  %2266 = vmatpush1.bf16.msra.mxu0 0
  %2267 = vmatprep.subr.bf16.mxu0 0
  %2268 = vmatpush1.bf16.msra.mxu0 0
  %2269 = vmatprep.subr.bf16.mxu0 0
  %2270 = vmatpush1.bf16.msra.mxu0 0
  %2271 = vmatprep.subr.bf16.mxu0 0
  %2272 = vmatpush1.bf16.msra.mxu0 0
  %2273 = vmatprep.subr.bf16.mxu0 0
  %2274 = vmatpush1.bf16.msra.mxu0 0
  %2275 = vmatprep.subr.bf16.mxu0 0
  %2276 = vmatpush1.bf16.msra.mxu0 0
  %2277 = vmatprep.subr.bf16.mxu0 0
  %2278 = vmatpush1.bf16.msra.mxu0 0
  %2279 = vmatprep.mubr.bf16.mxu0 0
  %2280 = vmatmul.mubr.bf16.gmra.mrb[0].mxu0 %v2149
  %v2281 = vpop.f32.mrb[0].mxu0
  %v2282 = vadd.f32 %v2201, %v2281
  %v2283 = vpop.f32.mrb[0].mxu0
  %v2284 = vpop.f32.mrb[0].mxu0
  %v2285 = vadd.f32 %v2204, %v2284
  %v2286 = vpop.f32.mrb[0].mxu0
  %2287 = vmatprep.mubr.bf16.mxu0 0
  %2288 = vmatmul.mubr.bf16.gmra.mrb[0].mxu0 %v2152
  %v2289 = vpop.f32.mrb[0].mxu0
  %v2290 = vadd.f32 %v2209, %v2289
  %v2291 = vpop.f32.mrb[0].mxu0
  %v2292 = vpop.f32.mrb[0].mxu0
  %v2293 = vadd.f32 %v2212, %v2292
  %v2294 = vpop.f32.mrb[0].mxu0
  %2295 = vmatprep.mubr.bf16.mxu0 0
  %2296 = vmatmul.mubr.bf16.gmra.mrb[0].mxu0 %v2155
  %v2297 = vpop.f32.mrb[0].mxu0
  %v2298 = vadd.f32 %v2217, %v2297
  %v2299 = vpop.f32.mrb[0].mxu0
  %v2300 = vpop.f32.mrb[0].mxu0
  %v2301 = vadd.f32 %v2220, %v2300
  %v2302 = vpop.f32.mrb[0].mxu0
  %2303 = vmatprep.mubr.bf16.mxu0 0
  %2304 = vmatmul.mubr.bf16.gmra.mrb[0].mxu0 %v2158
  %v2305 = vpop.f32.mrb[0].mxu0
  %v2306 = vadd.f32 %v2225, %v2305
  %v2307 = vpop.f32.mrb[0].mxu0
  %v2308 = vpop.f32.mrb[0].mxu0
  %v2309 = vadd.f32 %v2228, %v2308
  %v2310 = vpop.f32.mrb[0].mxu0
  %2311 = vmatprep.mubr.bf16.mxu0 0
  %2312 = vmatmul.mubr.bf16.gmra.mrb[0].mxu0 %v2161
  %v2313 = vpop.f32.mrb[0].mxu0
  %v2314 = vadd.f32 %v2233, %v2313
  %v2315 = vpop.f32.mrb[0].mxu0
  %v2316 = vpop.f32.mrb[0].mxu0
  %v2317 = vadd.f32 %v2236, %v2316
  %v2318 = vpop.f32.mrb[0].mxu0
  %2319 = vmatprep.mubr.bf16.mxu0 0
  %2320 = vmatmul.mubr.bf16.gmra.mrb[0].mxu0 %v2164
  %v2321 = vpop.f32.mrb[0].mxu0
  %v2322 = vadd.f32 %v2241, %v2321
  %v2323 = vpop.f32.mrb[0].mxu0
  %v2324 = vpop.f32.mrb[0].mxu0
  %v2325 = vadd.f32 %v2244, %v2324
  %v2326 = vpop.f32.mrb[0].mxu0
  %2327 = vdwg.mxu0
  %v2328 = vxor.u32 %v2282, 2147483648
  %v2329 = vxor.u32 %v2285, 2147483648
  %v2330 = vxor.u32 %v2290, 2147483648
  %v2331 = vxor.u32 %v2293, 2147483648
  %v2332 = vxor.u32 %v2298, 2147483648
  %v2333 = vxor.u32 %v2301, 2147483648
  %v2334 = vxor.u32 %v2306, 2147483648
  %v2335 = vxor.u32 %v2309, 2147483648
  %v2336 = vmul.f32 %v2328, 1.442695
  %v2337 = vpow.pop %v2336
  %v2338 = vmul.f32 %v2329, 1.442695
  %v2339 = vpow.pop %v2338
  %v2340 = vmul.f32 %v2330, 1.442695
  %v2341 = vpow.pop %v2340
  %v2342 = vmul.f32 %v2331, 1.442695
  %v2343 = vpow.pop %v2342
  %v2344 = vmul.f32 %v2332, 1.442695
  %v2345 = vpow.pop %v2344
  %v2346 = vmul.f32 %v2333, 1.442695
  %v2347 = vpow.pop %v2346
  %v2348 = vmul.f32 %v2334, 1.442695
  %v2349 = vpow.pop %v2348
  %v2350 = vmul.f32 %v2335, 1.442695
  %v2351 = vpow.pop %v2350
  %v2352 = vadd.f32 %v2337, 1.0
  %v2353 = vadd.f32 %v2339, 1.0
  %v2354 = vadd.f32 %v2341, 1.0
  %v2355 = vadd.f32 %v2343, 1.0
  %v2356 = vadd.f32 %v2345, 1.0
  %v2357 = vadd.f32 %v2347, 1.0
  %v2358 = vadd.f32 %v2349, 1.0
  %v2359 = vadd.f32 %v2351, 1.0
  %v2360 = vrcp.pop %v2352
  %v2361 = vmul.f32 1.0, %v2360
  %v2362 = vrcp.pop %v2353
  %v2363 = vmul.f32 1.0, %v2362
  %v2364 = vrcp.pop %v2354
  %v2365 = vmul.f32 1.0, %v2364
  %v2366 = vrcp.pop %v2355
  %v2367 = vmul.f32 1.0, %v2366
  %v2368 = vrcp.pop %v2356
  %v2369 = vmul.f32 1.0, %v2368
  %v2370 = vrcp.pop %v2357
  %v2371 = vmul.f32 1.0, %v2370
  %v2372 = vrcp.pop %v2358
  %v2373 = vmul.f32 1.0, %v2372
  %v2374 = vrcp.pop %v2359
  %v2375 = vmul.f32 1.0, %v2374
  %v2376 = vpack.c.bf16 %v1708, %v1707
  %v2377 = vpack.c.bf16 %v1710, %v1709
  %v2378 = vpack.c.bf16 %v1712, %v1711
  %v2379 = vpack.c.bf16 %v1714, %v1713
  %v2380 = vpack.c.bf16 %v1942, %v1941
  %v2381 = vpack.c.bf16 %v1944, %v1943
  %v2382 = vpack.c.bf16 %v1946, %v1945
  %v2383 = vpack.c.bf16 %v1948, %v1947
  %2384 = vmatprep.subr.bf16.mxu0 0
  %2385 = vmatpush1.bf16.msra.mxu0 %v1477
  %2386 = vmatprep.subr.bf16.mxu0 0
  %2387 = vmatpush1.bf16.msra.mxu0 %v1478
  %2388 = vmatprep.subr.bf16.mxu0 0
  %2389 = vmatpush1.bf16.msra.mxu0 %v1479
  %2390 = vmatprep.subr.bf16.mxu0 0
  %2391 = vmatpush1.bf16.msra.mxu0 %v1480
  %2392 = vmatprep.subr.bf16.mxu0 0
  %2393 = vmatpush1.bf16.msra.mxu0 %v1582
  %2394 = vmatprep.subr.bf16.mxu0 0
  %2395 = vmatpush1.bf16.msra.mxu0 %v1583
  %2396 = vmatprep.subr.bf16.mxu0 0
  %2397 = vmatpush1.bf16.msra.mxu0 %v1584
  %2398 = vmatprep.subr.bf16.mxu0 0
  %2399 = vmatpush1.bf16.msra.mxu0 %v1585
  %2400 = vmatprep.subr.bf16.mxu0 0
  %2401 = vmatpush1.bf16.msra.mxu0 %v2376
  %2402 = vmatprep.subr.bf16.mxu0 0
  %2403 = vmatpush1.bf16.msra.mxu0 %v2377
  %2404 = vmatprep.subr.bf16.mxu0 0
  %2405 = vmatpush1.bf16.msra.mxu0 %v2378
  %2406 = vmatprep.subr.bf16.mxu0 0
  %2407 = vmatpush1.bf16.msra.mxu0 %v2379
  %2408 = vmatprep.subr.bf16.mxu0 0
  %2409 = vmatpush1.bf16.msra.mxu0 %v1816
  %2410 = vmatprep.subr.bf16.mxu0 0
  %2411 = vmatpush1.bf16.msra.mxu0 %v1817
  %2412 = vmatprep.subr.bf16.mxu0 0
  %2413 = vmatpush1.bf16.msra.mxu0 %v1818
  %2414 = vmatprep.subr.bf16.mxu0 0
  %2415 = vmatpush1.bf16.msra.mxu0 %v1819
  %2416 = vmatprep.mubr.bf16.mxu0 %v2118
  %2417 = vmatmul.mubr.bf16.gmra.mrb[0].mxu0 %v2117
  %v2418 = vpop.f32.mrb[0].mxu0
  %v2419 = vadd.f32 %v2000, %v2418
  %v2420 = vpop.f32.mrb[0].mxu0
  %v2421 = vpop.f32.mrb[0].mxu0
  %v2422 = vadd.f32 %v2005, %v2421
  %v2423 = vpop.f32.mrb[0].mxu0
  %2424 = vmatprep.mubr.bf16.mxu0 %v2121
  %2425 = vmatmul.mubr.bf16.gmra.mrb[0].mxu0 %v2120
  %v2426 = vpop.f32.mrb[0].mxu0
  %v2427 = vadd.f32 %v2010, %v2426
  %v2428 = vpop.f32.mrb[0].mxu0
  %v2429 = vpop.f32.mrb[0].mxu0
  %v2430 = vadd.f32 %v2015, %v2429
  %v2431 = vpop.f32.mrb[0].mxu0
  %2432 = vmatprep.mubr.bf16.mxu0 %v2124
  %2433 = vmatmul.mubr.bf16.gmra.mrb[0].mxu0 %v2123
  %v2434 = vpop.f32.mrb[0].mxu0
  %v2435 = vadd.f32 %v2020, %v2434
  %v2436 = vpop.f32.mrb[0].mxu0
  %v2437 = vpop.f32.mrb[0].mxu0
  %v2438 = vadd.f32 %v2025, %v2437
  %v2439 = vpop.f32.mrb[0].mxu0
  %2440 = vmatprep.mubr.bf16.mxu0 %v2127
  %2441 = vmatmul.mubr.bf16.gmra.mrb[0].mxu0 %v2126
  %v2442 = vpop.f32.mrb[0].mxu0
  %v2443 = vadd.f32 %v2030, %v2442
  %v2444 = vpop.f32.mrb[0].mxu0
  %v2445 = vpop.f32.mrb[0].mxu0
  %v2446 = vadd.f32 %v2035, %v2445
  %v2447 = vpop.f32.mrb[0].mxu0
  %2448 = vmatprep.mubr.bf16.mxu0 %v2130
  %2449 = vmatmul.mubr.bf16.gmra.mrb[0].mxu0 %v2129
  %v2450 = vpop.f32.mrb[0].mxu0
  %v2451 = vadd.f32 %v2040, %v2450
  %v2452 = vpop.f32.mrb[0].mxu0
  %v2453 = vpop.f32.mrb[0].mxu0
  %v2454 = vadd.f32 %v2045, %v2453
  %v2455 = vpop.f32.mrb[0].mxu0
  %2456 = vmatprep.mubr.bf16.mxu0 %v2133
  %2457 = vmatmul.mubr.bf16.gmra.mrb[0].mxu0 %v2132
  %v2458 = vpop.f32.mrb[0].mxu0
  %v2459 = vadd.f32 %v2050, %v2458
  %v2460 = vpop.f32.mrb[0].mxu0
  %v2461 = vpop.f32.mrb[0].mxu0
  %v2462 = vadd.f32 %v2055, %v2461
  %v2463 = vpop.f32.mrb[0].mxu0
  %2464 = vdwg.mxu0
  %2465 = vmatprep.subr.bf16.mxu0 0
  %2466 = vmatpush1.bf16.msra.mxu0 %v2380
  %2467 = vmatprep.subr.bf16.mxu0 0
  %2468 = vmatpush1.bf16.msra.mxu0 %v2381
  %2469 = vmatprep.subr.bf16.mxu0 0
  %2470 = vmatpush1.bf16.msra.mxu0 %v2382
  %2471 = vmatprep.subr.bf16.mxu0 0
  %2472 = vmatpush1.bf16.msra.mxu0 %v2383
  %2473 = vmatprep.subr.bf16.mxu0 0
  %2474 = vmatpush1.bf16.msra.mxu0 0
  %2475 = vmatprep.subr.bf16.mxu0 0
  %2476 = vmatpush1.bf16.msra.mxu0 0
  %2477 = vmatprep.subr.bf16.mxu0 0
  %2478 = vmatpush1.bf16.msra.mxu0 0
  %2479 = vmatprep.subr.bf16.mxu0 0
  %2480 = vmatpush1.bf16.msra.mxu0 0
  %2481 = vmatprep.subr.bf16.mxu0 0
  %2482 = vmatpush1.bf16.msra.mxu0 0
  %2483 = vmatprep.subr.bf16.mxu0 0
  %2484 = vmatpush1.bf16.msra.mxu0 0
  %2485 = vmatprep.subr.bf16.mxu0 0
  %2486 = vmatpush1.bf16.msra.mxu0 0
  %2487 = vmatprep.subr.bf16.mxu0 0
  %2488 = vmatpush1.bf16.msra.mxu0 0
  %2489 = vmatprep.subr.bf16.mxu0 0
  %2490 = vmatpush1.bf16.msra.mxu0 0
  %2491 = vmatprep.subr.bf16.mxu0 0
  %2492 = vmatpush1.bf16.msra.mxu0 0
  %2493 = vmatprep.subr.bf16.mxu0 0
  %2494 = vmatpush1.bf16.msra.mxu0 0
  %2495 = vmatprep.subr.bf16.mxu0 0
  %2496 = vmatpush1.bf16.msra.mxu0 0
  %2497 = vmatprep.mubr.bf16.mxu0 0
  %2498 = vmatmul.mubr.bf16.gmra.mrb[0].mxu0 %v2149
  %v2499 = vpop.f32.mrb[0].mxu0
  %v2500 = vadd.f32 %v2419, %v2499
  %v2501 = vpop.f32.mrb[0].mxu0
  %v2502 = vpop.f32.mrb[0].mxu0
  %v2503 = vadd.f32 %v2422, %v2502
  %v2504 = vpop.f32.mrb[0].mxu0
  %2505 = vmatprep.mubr.bf16.mxu0 0
  %2506 = vmatmul.mubr.bf16.gmra.mrb[0].mxu0 %v2152
  %v2507 = vpop.f32.mrb[0].mxu0
  %v2508 = vadd.f32 %v2427, %v2507
  %v2509 = vpop.f32.mrb[0].mxu0
  %v2510 = vpop.f32.mrb[0].mxu0
  %v2511 = vadd.f32 %v2430, %v2510
  %v2512 = vpop.f32.mrb[0].mxu0
  %2513 = vmatprep.mubr.bf16.mxu0 0
  %2514 = vmatmul.mubr.bf16.gmra.mrb[0].mxu0 %v2155
  %v2515 = vpop.f32.mrb[0].mxu0
  %v2516 = vadd.f32 %v2435, %v2515
  %v2517 = vpop.f32.mrb[0].mxu0
  %v2518 = vpop.f32.mrb[0].mxu0
  %v2519 = vadd.f32 %v2438, %v2518
  %v2520 = vpop.f32.mrb[0].mxu0
  %2521 = vmatprep.mubr.bf16.mxu0 0
  %2522 = vmatmul.mubr.bf16.gmra.mrb[0].mxu0 %v2158
  %v2523 = vpop.f32.mrb[0].mxu0
  %v2524 = vadd.f32 %v2443, %v2523
  %v2525 = vpop.f32.mrb[0].mxu0
  %v2526 = vpop.f32.mrb[0].mxu0
  %v2527 = vadd.f32 %v2446, %v2526
  %v2528 = vpop.f32.mrb[0].mxu0
  %2529 = vmatprep.mubr.bf16.mxu0 0
  %2530 = vmatmul.mubr.bf16.gmra.mrb[0].mxu0 %v2161
  %v2531 = vpop.f32.mrb[0].mxu0
  %v2532 = vadd.f32 %v2451, %v2531
  %v2533 = vpop.f32.mrb[0].mxu0
  %v2534 = vpop.f32.mrb[0].mxu0
  %v2535 = vadd.f32 %v2454, %v2534
  %v2536 = vpop.f32.mrb[0].mxu0
  %2537 = vmatprep.mubr.bf16.mxu0 0
  %2538 = vmatmul.mubr.bf16.gmra.mrb[0].mxu0 %v2164
  %v2539 = vpop.f32.mrb[0].mxu0
  %v2540 = vadd.f32 %v2459, %v2539
  %v2541 = vpop.f32.mrb[0].mxu0
  %v2542 = vpop.f32.mrb[0].mxu0
  %v2543 = vadd.f32 %v2462, %v2542
  %v2544 = vpop.f32.mrb[0].mxu0
  %2545 = vdwg.mxu0
  %v2546 = vxor.u32 %v2500, 2147483648
  %v2547 = vxor.u32 %v2503, 2147483648
  %v2548 = vxor.u32 %v2508, 2147483648
  %v2549 = vxor.u32 %v2511, 2147483648
  %v2550 = vxor.u32 %v2516, 2147483648
  %v2551 = vxor.u32 %v2519, 2147483648
  %v2552 = vxor.u32 %v2524, 2147483648
  %v2553 = vxor.u32 %v2527, 2147483648
  %v2554 = vmul.f32 %v2546, 1.442695
  %v2555 = vpow.pop %v2554
  %v2556 = vmul.f32 %v2547, 1.442695
  %v2557 = vpow.pop %v2556
  %v2558 = vmul.f32 %v2548, 1.442695
  %v2559 = vpow.pop %v2558
  %v2560 = vmul.f32 %v2549, 1.442695
  %v2561 = vpow.pop %v2560
  %v2562 = vmul.f32 %v2550, 1.442695
  %v2563 = vpow.pop %v2562
  %v2564 = vmul.f32 %v2551, 1.442695
  %v2565 = vpow.pop %v2564
  %v2566 = vmul.f32 %v2552, 1.442695
  %v2567 = vpow.pop %v2566
  %v2568 = vmul.f32 %v2553, 1.442695
  %v2569 = vpow.pop %v2568
  %v2570 = vadd.f32 %v2555, 1.0
  %v2571 = vadd.f32 %v2557, 1.0
  %v2572 = vadd.f32 %v2559, 1.0
  %v2573 = vadd.f32 %v2561, 1.0
  %v2574 = vadd.f32 %v2563, 1.0
  %v2575 = vadd.f32 %v2565, 1.0
  %v2576 = vadd.f32 %v2567, 1.0
  %v2577 = vadd.f32 %v2569, 1.0
  %v2578 = vrcp.pop %v2570
  %v2579 = vmul.f32 1.0, %v2578
  %v2580 = vrcp.pop %v2571
  %v2581 = vmul.f32 1.0, %v2580
  %v2582 = vrcp.pop %v2572
  %v2583 = vmul.f32 1.0, %v2582
  %v2584 = vrcp.pop %v2573
  %v2585 = vmul.f32 1.0, %v2584
  %v2586 = vrcp.pop %v2574
  %v2587 = vmul.f32 1.0, %v2586
  %v2588 = vrcp.pop %v2575
  %v2589 = vmul.f32 1.0, %v2588
  %v2590 = vrcp.pop %v2576
  %v2591 = vmul.f32 1.0, %v2590
  %v2592 = vrcp.pop %v2577
  %v2593 = vmul.f32 1.0, %v2592
  %v2594 = vmul.f32 %v2361, %v1465
  %v2595 = vmul.f32 %v2363, %v1466
  %v2596 = vmul.f32 %v2365, %v1467
  %v2597 = vmul.f32 %v2367, %v1468
  %v2598 = vmul.f32 %v2579, %v1469
  %v2599 = vmul.f32 %v2581, %v1470
  %v2600 = vmul.f32 %v2583, %v1471
  %v2601 = vmul.f32 %v2585, %v1472
  %v2602 = vpack.c.bf16 %v2595, %v2594
  %v2603 = vpack.c.bf16 %v2597, %v2596
  %v2604 = vpack.c.bf16 %v2599, %v2598
  %v2605 = vpack.c.bf16 %v2601, %v2600
  %2606 = vmatprep.subr.bf16.mxu0 0
  %2607 = vmatpush1.bf16.msra.mxu0 %v113
  %2608 = vmatprep.subr.bf16.mxu0 0
  %2609 = vmatpush1.bf16.msra.mxu0 %v114
  %2610 = vmatprep.subr.bf16.mxu0 0
  %2611 = vmatpush1.bf16.msra.mxu0 %v115
  %2612 = vmatprep.subr.bf16.mxu0 0
  %2613 = vmatpush1.bf16.msra.mxu0 %v116
  %2614 = vmatprep.subr.bf16.mxu0 0
  %2615 = vmatpush1.bf16.msra.mxu0 %v117
  %2616 = vmatprep.subr.bf16.mxu0 0
  %2617 = vmatpush1.bf16.msra.mxu0 %v118
  %2618 = vmatprep.subr.bf16.mxu0 0
  %2619 = vmatpush1.bf16.msra.mxu0 %v119
  %2620 = vmatprep.subr.bf16.mxu0 0
  %2621 = vmatpush1.bf16.msra.mxu0 %v120
  %2622 = vmatprep.subr.bf16.mxu0 0
  %2623 = vmatpush1.bf16.msra.mxu0 0
  %2624 = vmatprep.subr.bf16.mxu0 0
  %2625 = vmatpush1.bf16.msra.mxu0 0
  %2626 = vmatprep.subr.bf16.mxu0 0
  %2627 = vmatpush1.bf16.msra.mxu0 0
  %2628 = vmatprep.subr.bf16.mxu0 0
  %2629 = vmatpush1.bf16.msra.mxu0 0
  %2630 = vmatprep.subr.bf16.mxu0 0
  %2631 = vmatpush1.bf16.msra.mxu0 0
  %2632 = vmatprep.subr.bf16.mxu0 0
  %2633 = vmatpush1.bf16.msra.mxu0 0
  %2634 = vmatprep.subr.bf16.mxu0 0
  %2635 = vmatpush1.bf16.msra.mxu0 0
  %2636 = vmatprep.subr.bf16.mxu0 0
  %2637 = vmatpush1.bf16.msra.mxu0 0
  %2638 = vmatprep.mubr.bf16.mxu0 0
  %2639 = vmatmul.mubr.bf16.gmra.mrb[0].mxu0 %v2602
  %v2640 = vpop.f32.mrb[0].mxu0
  %v2641 = vadd.f32 0.0, %v2640
  %v2642 = vpop.f32.mrb[0].mxu0
  %v2643 = vpop.f32.mrb[0].mxu0
  %v2644 = vadd.f32 0.0, %v2643
  %v2645 = vpop.f32.mrb[0].mxu0
  %2646 = vmatprep.mubr.bf16.mxu0 0
  %2647 = vmatmul.mubr.bf16.gmra.mrb[0].mxu0 %v2603
  %v2648 = vpop.f32.mrb[0].mxu0
  %v2649 = vadd.f32 0.0, %v2648
  %v2650 = vpop.f32.mrb[0].mxu0
  %v2651 = vpop.f32.mrb[0].mxu0
  %v2652 = vadd.f32 0.0, %v2651
  %v2653 = vpop.f32.mrb[0].mxu0
  %2654 = vmatprep.mubr.bf16.mxu0 0
  %2655 = vmatmul.mubr.bf16.gmra.mrb[0].mxu0 %v2604
  %v2656 = vpop.f32.mrb[0].mxu0
  %v2657 = vadd.f32 0.0, %v2656
  %v2658 = vpop.f32.mrb[0].mxu0
  %v2659 = vpop.f32.mrb[0].mxu0
  %v2660 = vadd.f32 0.0, %v2659
  %v2661 = vpop.f32.mrb[0].mxu0
  %2662 = vmatprep.mubr.bf16.mxu0 0
  %2663 = vmatmul.mubr.bf16.gmra.mrb[0].mxu0 %v2605
  %v2664 = vpop.f32.mrb[0].mxu0
  %v2665 = vadd.f32 0.0, %v2664
  %v2666 = vpop.f32.mrb[0].mxu0
  %v2667 = vpop.f32.mrb[0].mxu0
  %v2668 = vadd.f32 0.0, %v2667
  %v2669 = vpop.f32.mrb[0].mxu0
  %2670 = vdwg.mxu0
  %v2671 = vpack.c.bf16 %v2644, %v2641
  %v2672 = vpack.c.bf16 %v2652, %v2649
  %v2673 = vpack.c.bf16 %v2660, %v2657
  %v2674 = vpack.c.bf16 %v2668, %v2665
  %2675 = vmatprep.subr.bf16.mxu0 0
  %2676 = vmatpush1.bf16.msra.mxu0 %v113
  %2677 = vmatprep.subr.bf16.mxu0 0
  %2678 = vmatpush1.bf16.msra.mxu0 %v114
  %2679 = vmatprep.subr.bf16.mxu0 0
  %2680 = vmatpush1.bf16.msra.mxu0 %v115
  %2681 = vmatprep.subr.bf16.mxu0 0
  %2682 = vmatpush1.bf16.msra.mxu0 %v116
  %2683 = vmatprep.subr.bf16.mxu0 0
  %2684 = vmatpush1.bf16.msra.mxu0 %v117
  %2685 = vmatprep.subr.bf16.mxu0 0
  %2686 = vmatpush1.bf16.msra.mxu0 %v118
  %2687 = vmatprep.subr.bf16.mxu0 0
  %2688 = vmatpush1.bf16.msra.mxu0 %v119
  %2689 = vmatprep.subr.bf16.mxu0 0
  %2690 = vmatpush1.bf16.msra.mxu0 %v120
  %2691 = vmatprep.subr.bf16.mxu0 0
  %2692 = vmatpush1.bf16.msra.mxu0 0
  %2693 = vmatprep.subr.bf16.mxu0 0
  %2694 = vmatpush1.bf16.msra.mxu0 0
  %2695 = vmatprep.subr.bf16.mxu0 0
  %2696 = vmatpush1.bf16.msra.mxu0 0
  %2697 = vmatprep.subr.bf16.mxu0 0
  %2698 = vmatpush1.bf16.msra.mxu0 0
  %2699 = vmatprep.subr.bf16.mxu0 0
  %2700 = vmatpush1.bf16.msra.mxu0 0
  %2701 = vmatprep.subr.bf16.mxu0 0
  %2702 = vmatpush1.bf16.msra.mxu0 0
  %2703 = vmatprep.subr.bf16.mxu0 0
  %2704 = vmatpush1.bf16.msra.mxu0 0
  %2705 = vmatprep.subr.bf16.mxu0 0
  %2706 = vmatpush1.bf16.msra.mxu0 0
  %2707 = vmatprep.mubr.bf16.mxu0 0
  %2708 = vmatmul.mubr.bf16.gmra.mrb[0].mxu0 %v2671
  %v2709 = vpop.f32.mrb[0].mxu0
  %v2710 = vadd.f32 0.0, %v2709
  %v2711 = vpop.f32.mrb[0].mxu0
  %v2712 = vpop.f32.mrb[0].mxu0
  %v2713 = vadd.f32 0.0, %v2712
  %v2714 = vpop.f32.mrb[0].mxu0
  %2715 = vmatprep.mubr.bf16.mxu0 0
  %2716 = vmatmul.mubr.bf16.gmra.mrb[0].mxu0 %v2672
  %v2717 = vpop.f32.mrb[0].mxu0
  %v2718 = vadd.f32 0.0, %v2717
  %v2719 = vpop.f32.mrb[0].mxu0
  %v2720 = vpop.f32.mrb[0].mxu0
  %v2721 = vadd.f32 0.0, %v2720
  %v2722 = vpop.f32.mrb[0].mxu0
  %2723 = vmatprep.mubr.bf16.mxu0 0
  %2724 = vmatmul.mubr.bf16.gmra.mrb[0].mxu0 %v2673
  %v2725 = vpop.f32.mrb[0].mxu0
  %v2726 = vadd.f32 0.0, %v2725
  %v2727 = vpop.f32.mrb[0].mxu0
  %v2728 = vpop.f32.mrb[0].mxu0
  %v2729 = vadd.f32 0.0, %v2728
  %v2730 = vpop.f32.mrb[0].mxu0
  %2731 = vmatprep.mubr.bf16.mxu0 0
  %2732 = vmatmul.mubr.bf16.gmra.mrb[0].mxu0 %v2674
  %v2733 = vpop.f32.mrb[0].mxu0
  %v2734 = vadd.f32 0.0, %v2733
  %v2735 = vpop.f32.mrb[0].mxu0
  %v2736 = vpop.f32.mrb[0].mxu0
  %v2737 = vadd.f32 0.0, %v2736
  %v2738 = vpop.f32.mrb[0].mxu0
  %2739 = vdwg.mxu0
  %v2740 = vmul.f32 %v2710, 2.0
  %v2741 = vmul.f32 %v2713, 2.0
  %v2742 = vmul.f32 %v2718, 2.0
  %v2743 = vmul.f32 %v2721, 2.0
  %v2744 = vmul.f32 %v2726, 2.0
  %v2745 = vmul.f32 %v2729, 2.0
  %v2746 = vmul.f32 %v2734, 2.0
  %v2747 = vmul.f32 %v2737, 2.0
  %v2748 = vsub.f32 %v2740, %v2594
  %v2749 = vsub.f32 %v2741, %v2595
  %v2750 = vsub.f32 %v2742, %v2596
  %v2751 = vsub.f32 %v2743, %v2597
  %v2752 = vsub.f32 %v2744, %v2598
  %v2753 = vsub.f32 %v2745, %v2599
  %v2754 = vsub.f32 %v2746, %v2600
  %v2755 = vsub.f32 %v2747, %v2601
  %2756 = vmatprep.subr.bf16.mxu0 0
  %2757 = vmatpush1.bf16.msra.mxu0 %v332
  %2758 = vmatprep.subr.bf16.mxu0 0
  %2759 = vmatpush1.bf16.msra.mxu0 %v333
  %2760 = vmatprep.subr.bf16.mxu0 0
  %2761 = vmatpush1.bf16.msra.mxu0 %v334
  %2762 = vmatprep.subr.bf16.mxu0 0
  %2763 = vmatpush1.bf16.msra.mxu0 %v335
  %2764 = vmatprep.subr.bf16.mxu0 0
  %2765 = vmatpush1.bf16.msra.mxu0 %v336
  %2766 = vmatprep.subr.bf16.mxu0 0
  %2767 = vmatpush1.bf16.msra.mxu0 %v337
  %2768 = vmatprep.subr.bf16.mxu0 0
  %2769 = vmatpush1.bf16.msra.mxu0 %v338
  %2770 = vmatprep.subr.bf16.mxu0 0
  %2771 = vmatpush1.bf16.msra.mxu0 %v339
  %2772 = vmatprep.subr.bf16.mxu0 0
  %2773 = vmatpush1.bf16.msra.mxu0 0
  %2774 = vmatprep.subr.bf16.mxu0 0
  %2775 = vmatpush1.bf16.msra.mxu0 0
  %2776 = vmatprep.subr.bf16.mxu0 0
  %2777 = vmatpush1.bf16.msra.mxu0 0
  %2778 = vmatprep.subr.bf16.mxu0 0
  %2779 = vmatpush1.bf16.msra.mxu0 0
  %2780 = vmatprep.subr.bf16.mxu0 0
  %2781 = vmatpush1.bf16.msra.mxu0 0
  %2782 = vmatprep.subr.bf16.mxu0 0
  %2783 = vmatpush1.bf16.msra.mxu0 0
  %2784 = vmatprep.subr.bf16.mxu0 0
  %2785 = vmatpush1.bf16.msra.mxu0 0
  %2786 = vmatprep.subr.bf16.mxu0 0
  %2787 = vmatpush1.bf16.msra.mxu0 0
  %2788 = vmatprep.mubr.bf16.mxu0 0
  %2789 = vmatmul.mubr.bf16.gmra.mrb[0].mxu0 %v2671
  %v2790 = vpop.f32.mrb[0].mxu0
  %v2791 = vadd.f32 0.0, %v2790
  %v2792 = vpop.f32.mrb[0].mxu0
  %v2793 = vpop.f32.mrb[0].mxu0
  %v2794 = vadd.f32 0.0, %v2793
  %v2795 = vpop.f32.mrb[0].mxu0
  %2796 = vmatprep.mubr.bf16.mxu0 0
  %2797 = vmatmul.mubr.bf16.gmra.mrb[0].mxu0 %v2672
  %v2798 = vpop.f32.mrb[0].mxu0
  %v2799 = vadd.f32 0.0, %v2798
  %v2800 = vpop.f32.mrb[0].mxu0
  %v2801 = vpop.f32.mrb[0].mxu0
  %v2802 = vadd.f32 0.0, %v2801
  %v2803 = vpop.f32.mrb[0].mxu0
  %2804 = vmatprep.mubr.bf16.mxu0 0
  %2805 = vmatmul.mubr.bf16.gmra.mrb[0].mxu0 %v2673
  %v2806 = vpop.f32.mrb[0].mxu0
  %v2807 = vadd.f32 0.0, %v2806
  %v2808 = vpop.f32.mrb[0].mxu0
  %v2809 = vpop.f32.mrb[0].mxu0
  %v2810 = vadd.f32 0.0, %v2809
  %v2811 = vpop.f32.mrb[0].mxu0
  %2812 = vmatprep.mubr.bf16.mxu0 0
  %2813 = vmatmul.mubr.bf16.gmra.mrb[0].mxu0 %v2674
  %v2814 = vpop.f32.mrb[0].mxu0
  %v2815 = vadd.f32 0.0, %v2814
  %v2816 = vpop.f32.mrb[0].mxu0
  %v2817 = vpop.f32.mrb[0].mxu0
  %v2818 = vadd.f32 0.0, %v2817
  %v2819 = vpop.f32.mrb[0].mxu0
  %2820 = vdwg.mxu0
  %v2821 = vpack.c.bf16 %v2794, %v2791
  %v2822 = vpack.c.bf16 %v2802, %v2799
  %v2823 = vpack.c.bf16 %v2810, %v2807
  %v2824 = vpack.c.bf16 %v2818, %v2815
  %2825 = vmatprep.subr.bf16.mxu0 0
  %2826 = vmatpush1.bf16.msra.mxu0 %v332
  %2827 = vmatprep.subr.bf16.mxu0 0
  %2828 = vmatpush1.bf16.msra.mxu0 %v333
  %2829 = vmatprep.subr.bf16.mxu0 0
  %2830 = vmatpush1.bf16.msra.mxu0 %v334
  %2831 = vmatprep.subr.bf16.mxu0 0
  %2832 = vmatpush1.bf16.msra.mxu0 %v335
  %2833 = vmatprep.subr.bf16.mxu0 0
  %2834 = vmatpush1.bf16.msra.mxu0 %v336
  %2835 = vmatprep.subr.bf16.mxu0 0
  %2836 = vmatpush1.bf16.msra.mxu0 %v337
  %2837 = vmatprep.subr.bf16.mxu0 0
  %2838 = vmatpush1.bf16.msra.mxu0 %v338
  %2839 = vmatprep.subr.bf16.mxu0 0
  %2840 = vmatpush1.bf16.msra.mxu0 %v339
  %2841 = vmatprep.subr.bf16.mxu0 0
  %2842 = vmatpush1.bf16.msra.mxu0 0
  %2843 = vmatprep.subr.bf16.mxu0 0
  %2844 = vmatpush1.bf16.msra.mxu0 0
  %2845 = vmatprep.subr.bf16.mxu0 0
  %2846 = vmatpush1.bf16.msra.mxu0 0
  %2847 = vmatprep.subr.bf16.mxu0 0
  %2848 = vmatpush1.bf16.msra.mxu0 0
  %2849 = vmatprep.subr.bf16.mxu0 0
  %2850 = vmatpush1.bf16.msra.mxu0 0
  %2851 = vmatprep.subr.bf16.mxu0 0
  %2852 = vmatpush1.bf16.msra.mxu0 0
  %2853 = vmatprep.subr.bf16.mxu0 0
  %2854 = vmatpush1.bf16.msra.mxu0 0
  %2855 = vmatprep.subr.bf16.mxu0 0
  %2856 = vmatpush1.bf16.msra.mxu0 0
  %2857 = vmatprep.mubr.bf16.mxu0 0
  %2858 = vmatmul.mubr.bf16.gmra.mrb[0].mxu0 %v2821
  %v2859 = vpop.f32.mrb[0].mxu0
  %v2860 = vadd.f32 0.0, %v2859
  %v2861 = vpop.f32.mrb[0].mxu0
  %v2862 = vpop.f32.mrb[0].mxu0
  %v2863 = vadd.f32 0.0, %v2862
  %v2864 = vpop.f32.mrb[0].mxu0
  %2865 = vmatprep.mubr.bf16.mxu0 0
  %2866 = vmatmul.mubr.bf16.gmra.mrb[0].mxu0 %v2822
  %v2867 = vpop.f32.mrb[0].mxu0
  %v2868 = vadd.f32 0.0, %v2867
  %v2869 = vpop.f32.mrb[0].mxu0
  %v2870 = vpop.f32.mrb[0].mxu0
  %v2871 = vadd.f32 0.0, %v2870
  %v2872 = vpop.f32.mrb[0].mxu0
  %2873 = vmatprep.mubr.bf16.mxu0 0
  %2874 = vmatmul.mubr.bf16.gmra.mrb[0].mxu0 %v2823
  %v2875 = vpop.f32.mrb[0].mxu0
  %v2876 = vadd.f32 0.0, %v2875
  %v2877 = vpop.f32.mrb[0].mxu0
  %v2878 = vpop.f32.mrb[0].mxu0
  %v2879 = vadd.f32 0.0, %v2878
  %v2880 = vpop.f32.mrb[0].mxu0
  %2881 = vmatprep.mubr.bf16.mxu0 0
  %2882 = vmatmul.mubr.bf16.gmra.mrb[0].mxu0 %v2824
  %v2883 = vpop.f32.mrb[0].mxu0
  %v2884 = vadd.f32 0.0, %v2883
  %v2885 = vpop.f32.mrb[0].mxu0
  %v2886 = vpop.f32.mrb[0].mxu0
  %v2887 = vadd.f32 0.0, %v2886
  %v2888 = vpop.f32.mrb[0].mxu0
  %2889 = vdwg.mxu0
  %v2890 = vmul.f32 %v2860, 2.0
  %v2891 = vmul.f32 %v2863, 2.0
  %v2892 = vmul.f32 %v2868, 2.0
  %v2893 = vmul.f32 %v2871, 2.0
  %v2894 = vmul.f32 %v2876, 2.0
  %v2895 = vmul.f32 %v2879, 2.0
  %v2896 = vmul.f32 %v2884, 2.0
  %v2897 = vmul.f32 %v2887, 2.0
  %v2898 = vsub.f32 %v2890, %v2641
  %v2899 = vsub.f32 %v2891, %v2644
  %v2900 = vsub.f32 %v2892, %v2649
  %v2901 = vsub.f32 %v2893, %v2652
  %v2902 = vsub.f32 %v2894, %v2657
  %v2903 = vsub.f32 %v2895, %v2660
  %v2904 = vsub.f32 %v2896, %v2665
  %v2905 = vsub.f32 %v2897, %v2668
  %v2906 = vpack.c.bf16 %v2749, %v2748
  %v2907 = vpack.c.bf16 %v2751, %v2750
  %v2908 = vpack.c.bf16 %v2899, %v2898
  %v2909 = vpack.c.bf16 %v2901, %v2900
  %v2914 = vunpack.c.l.b16 %v1985
  %v2915 = vunpack.c.h.b16 %v1985
  %v2916 = vunpack.c.l.b16 %v1986
  %v2917 = vunpack.c.h.b16 %v1986
  %v2918 = vunpack.c.l.b16 %v1987
  %v2919 = vunpack.c.h.b16 %v1987
  %v2920 = vunpack.c.l.b16 %v1988
  %v2921 = vunpack.c.h.b16 %v1988
  %v2922 = vpack.c.b16 %v2916, %v2914
  %v2923 = vpack.c.b16 %v2917, %v2915
  %v2924 = vpack.c.b16 %v2920, %v2918
  %v2925 = vpack.c.b16 %v2921, %v2919
  %v2929 = vsel %vm1299, %v2923, 0
  %v2932 = vsel %vm1299, %v2925, 0
  %2934 = vmatprep.subr.bf16.mxu0 0
  %2935 = vmatpush1.bf16.msra.mxu0 %v2602
  %2936 = vmatprep.subr.bf16.mxu0 0
  %2937 = vmatpush1.bf16.msra.mxu0 %v2603
  %2938 = vmatprep.subr.bf16.mxu0 0
  %2939 = vmatpush1.bf16.msra.mxu0 %v2671
  %2940 = vmatprep.subr.bf16.mxu0 0
  %2941 = vmatpush1.bf16.msra.mxu0 %v2672
  %2942 = vmatprep.subr.bf16.mxu0 0
  %2943 = vmatpush1.bf16.msra.mxu0 %v2906
  %2944 = vmatprep.subr.bf16.mxu0 0
  %2945 = vmatpush1.bf16.msra.mxu0 %v2907
  %2946 = vmatprep.subr.bf16.mxu0 0
  %2947 = vmatpush1.bf16.msra.mxu0 %v2821
  %2948 = vmatprep.subr.bf16.mxu0 0
  %2949 = vmatpush1.bf16.msra.mxu0 %v2822
  %2950 = vmatprep.subr.bf16.mxu0 0
  %2951 = vmatpush1.bf16.msra.mxu0 %v2908
  %2952 = vmatprep.subr.bf16.mxu0 0
  %2953 = vmatpush1.bf16.msra.mxu0 %v2909
  %2954 = vmatprep.subr.bf16.mxu0 0
  %2955 = vmatpush1.bf16.msra.mxu0 0
  %2956 = vmatprep.subr.bf16.mxu0 0
  %2957 = vmatpush1.bf16.msra.mxu0 0
  %2958 = vmatprep.subr.bf16.mxu0 0
  %2959 = vmatpush1.bf16.msra.mxu0 0
  %2960 = vmatprep.subr.bf16.mxu0 0
  %2961 = vmatpush1.bf16.msra.mxu0 0
  %2962 = vmatprep.subr.bf16.mxu0 0
  %2963 = vmatpush1.bf16.msra.mxu0 0
  %2964 = vmatprep.subr.bf16.mxu0 0
  %2965 = vmatpush1.bf16.msra.mxu0 0
  %2966 = vmatprep.mubr.bf16.mxu0 %v2929
  %2967 = vmatmul.mubr.bf16.gmra.mrb[0].mxu0 %v2922
  %v2968 = vpop.f32.mrb[0].mxu0
  %v2969 = vadd.f32 0.0, %v2968
  %v2970 = vpop.f32.mrb[0].mxu0
  %v2971 = vpop.f32.mrb[0].mxu0
  %v2972 = vadd.f32 0.0, %v2971
  %v2973 = vpop.f32.mrb[0].mxu0
  %2974 = vmatprep.mubr.bf16.mxu0 %v2932
  %2975 = vmatmul.mubr.bf16.gmra.mrb[0].mxu0 %v2924
  %v2976 = vpop.f32.mrb[0].mxu0
  %v2977 = vadd.f32 0.0, %v2976
  %v2978 = vpop.f32.mrb[0].mxu0
  %v2979 = vpop.f32.mrb[0].mxu0
  %v2980 = vadd.f32 0.0, %v2979
  %v2981 = vpop.f32.mrb[0].mxu0
  %2982 = vdwg.mxu0
  %v2983 = vpack.c.bf16 %v2753, %v2752
  %v2984 = vpack.c.bf16 %v2755, %v2754
  %v2985 = vpack.c.bf16 %v2903, %v2902
  %v2986 = vpack.c.bf16 %v2905, %v2904
  %2987 = vmatprep.subr.bf16.mxu0 0
  %2988 = vmatpush1.bf16.msra.mxu0 %v2604
  %2989 = vmatprep.subr.bf16.mxu0 0
  %2990 = vmatpush1.bf16.msra.mxu0 %v2605
  %2991 = vmatprep.subr.bf16.mxu0 0
  %2992 = vmatpush1.bf16.msra.mxu0 %v2673
  %2993 = vmatprep.subr.bf16.mxu0 0
  %2994 = vmatpush1.bf16.msra.mxu0 %v2674
  %2995 = vmatprep.subr.bf16.mxu0 0
  %2996 = vmatpush1.bf16.msra.mxu0 %v2983
  %2997 = vmatprep.subr.bf16.mxu0 0
  %2998 = vmatpush1.bf16.msra.mxu0 %v2984
  %2999 = vmatprep.subr.bf16.mxu0 0
  %3000 = vmatpush1.bf16.msra.mxu0 %v2823
  %3001 = vmatprep.subr.bf16.mxu0 0
  %3002 = vmatpush1.bf16.msra.mxu0 %v2824
  %3003 = vmatprep.subr.bf16.mxu0 0
  %3004 = vmatpush1.bf16.msra.mxu0 %v2985
  %3005 = vmatprep.subr.bf16.mxu0 0
  %3006 = vmatpush1.bf16.msra.mxu0 %v2986
  %3007 = vmatprep.subr.bf16.mxu0 0
  %3008 = vmatpush1.bf16.msra.mxu0 0
  %3009 = vmatprep.subr.bf16.mxu0 0
  %3010 = vmatpush1.bf16.msra.mxu0 0
  %3011 = vmatprep.subr.bf16.mxu0 0
  %3012 = vmatpush1.bf16.msra.mxu0 0
  %3013 = vmatprep.subr.bf16.mxu0 0
  %3014 = vmatpush1.bf16.msra.mxu0 0
  %3015 = vmatprep.subr.bf16.mxu0 0
  %3016 = vmatpush1.bf16.msra.mxu0 0
  %3017 = vmatprep.subr.bf16.mxu0 0
  %3018 = vmatpush1.bf16.msra.mxu0 0
  %3019 = vmatprep.mubr.bf16.mxu0 %v2929
  %3020 = vmatmul.mubr.bf16.gmra.mrb[0].mxu0 %v2922
  %v3021 = vpop.f32.mrb[0].mxu0
  %v3022 = vadd.f32 0.0, %v3021
  %v3023 = vpop.f32.mrb[0].mxu0
  %v3024 = vpop.f32.mrb[0].mxu0
  %v3025 = vadd.f32 0.0, %v3024
  %v3026 = vpop.f32.mrb[0].mxu0
  %3027 = vmatprep.mubr.bf16.mxu0 %v2932
  %3028 = vmatmul.mubr.bf16.gmra.mrb[0].mxu0 %v2924
  %v3029 = vpop.f32.mrb[0].mxu0
  %v3030 = vadd.f32 0.0, %v3029
  %v3031 = vpop.f32.mrb[0].mxu0
  %v3032 = vpop.f32.mrb[0].mxu0
  %v3033 = vadd.f32 0.0, %v3032
  %v3034 = vpop.f32.mrb[0].mxu0
  %3035 = vdwg.mxu0
  %v3036 = vadd.f32 %v2314, %v2969
  %v3037 = vadd.f32 %v2317, %v2972
  %v3038 = vadd.f32 %v2322, %v2977
  %v3039 = vadd.f32 %v2325, %v2980
  %v3040 = vadd.f32 %v2532, %v3022
  %v3041 = vadd.f32 %v2535, %v3025
  %v3042 = vadd.f32 %v2540, %v3030
  %v3043 = vadd.f32 %v2543, %v3033
  %v3044 = vtanh.pop %v3036
  %v3045 = vtanh.pop %v3037
  %v3046 = vtanh.pop %v3038
  %v3047 = vtanh.pop %v3039
  %v3048 = vtanh.pop %v3040
  %v3049 = vtanh.pop %v3041
  %v3050 = vtanh.pop %v3042
  %v3051 = vtanh.pop %v3043
  %v3052 = vmul.f32 %v2369, %v1465
  %v3053 = vmul.f32 %v2371, %v1466
  %v3054 = vmul.f32 %v2373, %v1467
  %v3055 = vmul.f32 %v2375, %v1468
  %v3056 = vmul.f32 %v2587, %v1469
  %v3057 = vmul.f32 %v2589, %v1470
  %v3058 = vmul.f32 %v2591, %v1471
  %v3059 = vmul.f32 %v2593, %v1472
  %v3060 = vsub.f32 1.0, %v2369
  %v3061 = vsub.f32 1.0, %v2371
  %v3062 = vsub.f32 1.0, %v2373
  %v3063 = vsub.f32 1.0, %v2375
  %v3064 = vsub.f32 1.0, %v2587
  %v3065 = vsub.f32 1.0, %v2589
  %v3066 = vsub.f32 1.0, %v2591
  %v3067 = vsub.f32 1.0, %v2593
  %v3068 = vmul.f32 %v3060, %v3044
  %v3069 = vmul.f32 %v3061, %v3045
  %v3070 = vmul.f32 %v3062, %v3046
  %v3071 = vmul.f32 %v3063, %v3047
  %v3072 = vmul.f32 %v3064, %v3048
  %v3073 = vmul.f32 %v3065, %v3049
  %v3074 = vmul.f32 %v3066, %v3050
  %v3075 = vmul.f32 %v3067, %v3051
  %v3076 = vadd.f32 %v3052, %v3068
  %v3077 = vadd.f32 %v3053, %v3069
  %v3078 = vadd.f32 %v3054, %v3070
  %v3079 = vadd.f32 %v3055, %v3071
  %v3080 = vadd.f32 %v3056, %v3072
  %v3081 = vadd.f32 %v3057, %v3073
  %v3082 = vadd.f32 %v3058, %v3074
  %v3083 = vadd.f32 %v3059, %v3075
  %s3084 = scalar_lea.vmem %s9, 64
  %3085 = vst [vmem:[%s3084] sm:$0xff] %v3076
  %3086 = vst [vmem:[%s3084 + $0x8] sm:$0xff] %v3077
  %3087 = vst [vmem:[%s3084 + $0x10] sm:$0xff] %v3078
  %3088 = vst [vmem:[%s3084 + $0x18] sm:$0xff] %v3079
  %3089 = vst [vmem:[%s3084 + $0x20] sm:$0xff] %v3080
  %3090 = vst [vmem:[%s3084 + $0x28] sm:$0xff] %v3081
  %3091 = vst [vmem:[%s3084 + $0x30] sm:$0xff] %v3082
  %3092 = vst [vmem:[%s3084 + $0x38] sm:$0xff] %v3083
  // Predicated region
  $region38: #{dcgru_model_forward.1} parent=0 // pred_check
    _
  $region39: #{dcgru_model_forward.1} parent=0 // pred_check_branch
    %3094 = sbr.rel (0) target = $region41
  $region40: #{dcgru_model_forward.1} parent=0 // pred_region
    _
  $region41: #{dcgru_model_forward.1} parent=0 // pred_fallthru
    _
  // Predicated region
  $region42: #{dcgru_model_forward.1} parent=0 // pred_check
    _
  $region43: #{dcgru_model_forward.1} parent=0 // pred_check_branch
    %3096 = sbr.rel (0) target = $region45
  $region44: #{dcgru_model_forward.1} parent=0 // pred_region
    _
  $region45: #{dcgru_model_forward.1} parent=0 // pred_fallthru
    _

</llo_original>
